<compile_context>
chip_gen: v5e
topology: v5e:2x2
jax: 0.10.0
libtpu: 0.0.40
codegen_flags: <defaults>
</compile_context>

<pallas_src>
import functools

import numpy as np

import jax
import jax.numpy as jnp
from jax.experimental import pallas as pl
from jax.experimental.pallas import tpu as pltpu

EPS = 1e-5
LRELU_SLOPE = 0.2
CP = 8          # channel padding: every activation group is 8 channels wide

_VMEM = functools.partial(pl.BlockSpec, memory_space=pltpu.MemorySpace.VMEM)


# ----------------------------- fused Pallas kernel -------------------------- #

def _build_fused_kernel(H, W, n_body):
    L = W * CP               # lane width of every activation slab (e.g. 128)
    inv_hw = 1.0 / float(H * W)

    def kernel(*refs):
        # ---- parse refs: 4 data inputs, weights, 1 output, 4 VMEM scratch ----
        x_ref, y2_ref, c_ref, g_ref = refs[0], refs[1], refs[2], refs[3]
        i = 4
        head = refs[i:i + 4]; i += 4
        body = [refs[i + 4 * j:i + 4 * j + 4] for j in range(n_body)]
        i += 4 * n_body
        tail = refs[i:i + 2]; i += 2
        head2 = refs[i:i + 4]; i += 4
        tail2 = refs[i:i + 2]; i += 2
        out_ref = refs[i]; i += 1
        pad_xc, pad_y1, pad_y2, pad_w = refs[i:i + 4]

        # Zero only the 2-row halo ring of each padded buffer (interiors are
        # always fully rewritten before they are read).
        zrow = jnp.zeros((1, L), jnp.float32)
        for p in (pad_xc, pad_y1, pad_y2, pad_w):
            p[0:1, :] = zrow
            p[H + 1:H + 2, :] = zrow

        def put(pad_ref, act):          # (H, L) activation -> padded interior
            pad_ref[1:H + 1, :] = act

        def conv(pads, w_ref, b_ref):
            """3x3 'same' conv, banded-weight formulation.

            pads : tuple of padded (H+2, L) refs, one per 8-channel input group
            w_ref: (3*len(pads), L, L) bf16 block-banded weights, [dy*ng + g]
            b_ref: (1, L) f32 lane-packed bias
            """
            ng = len(pads)
            acc = jnp.zeros((H, L), jnp.float32)
            for dy in range(3):
                for g, pad_ref in enumerate(pads):
                    band = pad_ref[dy:dy + H, :].astype(jnp.bfloat16)
                    acc = acc + jnp.dot(band, w_ref[dy * ng + g],
                                        preferred_element_type=jnp.float32)
            return acc + b_ref[...]

        def chan_bcast(rowvec):
            """(1, L) row -> per-channel sum over the W lane groups, broadcast
            back to every lane, via the 0/1 reduce matrix on the (idle) MXU."""
            r8 = jnp.broadcast_to(rowvec, (8, L))
            return jnp.dot(r8, g_ref[...],
                           preferred_element_type=jnp.float32)[0:1, :]

        def bn_lrelu(z, gamma_ref, beta_ref):
            # BatchNorm2d, training-mode batch stats, biased variance, two-pass
            # (numerically safe) form; then LeakyReLU(0.2) = max(y, 0.2*y).
            mean = chan_bcast(jnp.sum(z, axis=0, keepdims=True)) * inv_hw
            d = z - mean
            var = chan_bcast(jnp.sum(d * d, axis=0, keepdims=True)) * inv_hw
            var = jnp.maximum(var, 0.0)
            y = d * (jax.lax.rsqrt(var + EPS) * gamma_ref[...]) + beta_ref[...]
            return jnp.maximum(y, LRELU_SLOPE * y)

        # torch.cat([x, c.expand(...)], 1): c occupies disjoint channel slots.
        xc = x_ref[...] + c_ref[...]
        y2v = y2_ref[...]
        put(pad_xc, xc)                 # kept: reused by head2
        put(pad_y2, y2v)                # kept: reused by head2

        # head + body (the second __init__ loop's weights are already folded
        # into body[0]/body[1] at init time, exactly as in the reference).
        h = bn_lrelu(conv((pad_xc,), head[0], head[1]), head[2], head[3])
        for blk in body:
            put(pad_w, h)
            h = bn_lrelu(conv((pad_w,), blk[0], blk[1]), blk[2], blk[3])

        # tail: conv + tanh (output channels padded 3 -> 8 with zero weights).
        put(pad_w, h)
        y1 = jnp.tanh(conv((pad_w,), tail[0], tail[1]))
        put(pad_y1, y1)                 # kept: reused by head2

        # head2 on torch.cat((x||c, y1, y2), 1): the three 8-channel groups
        # stay in their own padded slabs; the banded weight is split per group.
        # y2's center-crop is the identity (same-padding keeps spatial size).
        a = bn_lrelu(conv((pad_xc, pad_y1, pad_y2), head2[0], head2[1]),
                     head2[2], head2[3])
        # self.body2 is an empty nn.Sequential in the reference -> identity.

        # tail2: conv + sigmoid, then the alpha blend a1*y2 + (1-a1)*y1.
        put(pad_w, a)
        a1 = jax.nn.sigmoid(conv((pad_w,), tail2[0], tail2[1]))
        out_ref[...] = a1 * y2v + (1.0 - a1) * y1   # padded lanes blend to 0

    return kernel


# ------------------------- parameter packing (host) ------------------------- #

def _band_w(w_dense, W_sp, in_slots):
    """(3,3,Cin,Cout) dense conv weight -> (3*n_groups, W*CP, W*CP) bf16
    block-banded matrices (indexed [dy*n_groups + g]).  Horizontal "same"
    zero-padding is folded in by omitting out-of-row taps; rows for unused
    channel slots stay zero so padded lanes never contribute."""
    w = np.asarray(w_dense, np.float32)
    cout = w.shape[-1]
    ng = max(g for g, _ in in_slots) + 1
    L = W_sp * CP
    m = np.zeros((3 * ng, L, L), np.float32)
    for dy in range(3):
        for dx in range(3):
            for ci, (g, slot) in enumerate(in_slots):
                vals = w[dy, dx, ci, :]
                for wo in range(W_sp):
                    wk = wo + dx - 1
                    if 0 <= wk < W_sp:
                        m[dy * ng + g, wk * CP + slot,
                          wo * CP:wo * CP + cout] = vals
    return jnp.asarray(m, jnp.bfloat16)


def _lane_vec(v, W_sp):
    """(Cout,) per-channel vector -> (1, W*CP) f32 lane-packed (tiled per
    pixel, zero in padded channel slots)."""
    v = np.asarray(v, np.float32)
    slot = np.zeros((CP,), np.float32)
    slot[:v.shape[0]] = v
    return jnp.asarray(np.tile(slot, W_sp)[None, :])


def _reduce_mat(W_sp):
    """(W*CP, W*CP) 0/1 matrix: (row @ G)[j] = sum over lanes i with the same
    channel slot (i % CP == j % CP) -> per-channel reduce + lane re-broadcast."""
    idx = np.arange(W_sp * CP)
    return jnp.asarray((idx[:, None] % CP == idx[None, :] % CP)
                       .astype(np.float32))


def pack_params(dense, W_sp):
    nc_im = int(dense['tail']['b'].shape[0])

    def slots(n):
        return [(0, s) for s in range(n)]

    def block(p, in_slots):
        return (_band_w(p['w'], W_sp, in_slots), _lane_vec(p['b'], W_sp),
                _lane_vec(p['gamma'], W_sp), _lane_vec(p['beta'], W_sp))

    def conv_only(p, in_slots):
        return (_band_w(p['w'], W_sp, in_slots), _lane_vec(p['b'], W_sp))

    # head2 input channel order: [x (nc_im), c (2) | y1 (nc_im) | y2 (nc_im)]
    # -> the three 8-wide slab groups (xc, y1, y2).
    h2_slots = ([(0, s) for s in range(nc_im + 2)]
                + [(1, s) for s in range(nc_im)]
                + [(2, s) for s in range(nc_im)])

    return {
        'G': _reduce_mat(W_sp),
        'head': block(dense['head'], slots(nc_im + 2)),
        'body': [block(b, slots(int(b['w'].shape[2]))) for b in dense['body']],
        'tail': conv_only(dense['tail'], slots(int(dense['tail']['w'].shape[2]))),
        'head2': block(dense['head2'], h2_slots),
        'tail2': conv_only(dense['tail2'],
                           slots(int(dense['tail2']['w'].shape[2]))),
    }


# --------------------------- dense parameter init --------------------------- #

def _conv_dense(key, cin, cout, scale=0.1):
    kw, kb = jax.random.split(key)
    return {'w': scale * jax.random.normal(kw, (3, 3, cin, cout), jnp.float32),
            'b': scale * jax.random.normal(kb, (cout,), jnp.float32)}


def _block_dense(key, cin, cout):
    p = _conv_dense(key, cin, cout)
    p['gamma'] = jnp.ones((cout,), jnp.float32)    # BatchNorm2d default init
    p['beta'] = jnp.zeros((cout,), jnp.float32)
    return p


def init_params(key, nc_im=3, nfc=8, min_nfc=8, num_layer=5):
    assert nfc == CP and min_nfc == CP, "kernel is specialized to 8-wide groups"
    ks = iter(jax.random.split(key, 4 * num_layer + 8))
    dense = {'head': _block_dense(next(ks), nc_im + 2, nfc)}
    body = []
    N = nfc
    for i in range(num_layer - 2):
        N = nfc // (2 ** (i + 1))
        cin, cout = max(2 * N, min_nfc), max(N, min_nfc)
        body.append(_block_dense(next(ks), cin, cout))
    dense['tail'] = _conv_dense(next(ks), max(N, min_nfc), nc_im)
    dense['head2'] = _block_dense(next(ks), nc_im * 3 + 2, nfc)
    # Reference __init__ quirk: the second loop registers block1/block2 on
    # self.body again (overwriting the first loop's); self.body2 stays empty.
    for i in range(2):
        N = nfc // (2 ** (i + 1))
        cin, cout = max(2 * N, min_nfc), max(N, min_nfc)
        body[i] = _block_dense(next(ks), cin, cout)
    dense['body'] = body
    dense['tail2'] = _conv_dense(next(ks), max(N, min_nfc), nc_im)
    return dense


# ----------------------------------- forward --------------------------------- #

def forward(packed, x, y2, c):
    """x, y2: (1, nc_im, H, W) f32 NCHW; c: (2,) f32.  Returns (1, nc_im, H, W)."""
    B, C, H, W = x.shape
    assert B == 1, "batch must be 1 (c is expanded with a leading dim of 1)"
    L = W * CP
    n_body = len(packed['body'])
    assert packed['G'].shape[0] == L, "params were packed for a different W"

    # center-crop y2 to the generator output size (identity when shapes match)
    ind = (y2.shape[2] - H) // 2
    if ind > 0:
        y2 = y2[:, :, ind:y2.shape[2] - ind, ind:y2.shape[3] - ind]

    # NCHW -> lane-dense (H, W*CP) slabs (tiny one-time relayout, fused by XLA)
    x_slab = (jnp.zeros((H, W, CP), jnp.float32)
              .at[:, :, :C].set(jnp.transpose(x[0], (1, 2, 0)))).reshape(H, L)
    y2_slab = (jnp.zeros((H, W, CP), jnp.float32)
               .at[:, :, :C].set(jnp.transpose(y2[0], (1, 2, 0)))).reshape(H, L)
    c_lane = jnp.tile(jnp.zeros((CP,), jnp.float32).at[C:C + c.shape[0]].set(c),
                      W)[None, :]

    flat = list(packed['head'])
    for blk in packed['body']:
        flat += list(blk)
    flat += list(packed['tail']) + list(packed['head2']) + list(packed['tail2'])
    inputs = [x_slab, y2_slab, c_lane, packed['G']] + flat

    # Raise the scoped-VMEM limit only when the working set needs it (default
    # is 16 MiB on v5e / 32 MiB on v6e+); cap at v7x's 64 MiB physical VMEM.
    est = sum(int(np.prod(a.shape)) * a.dtype.itemsize for a in inputs)
    est += H * L * 4 + 4 * (H + 2) * L * 4           # output + halo scratch
    kwargs = {}
    if 2 * est > 12 * (1 << 20):
        kwargs['compiler_params'] = pltpu.CompilerParams(
            vmem_limit_bytes=int(min(2 * est, 64 * (1 << 20))))

    out = pl.pallas_call(
        _build_fused_kernel(H, W, n_body),
        out_shape=jax.ShapeDtypeStruct((H, L), jnp.float32),
        in_specs=[_VMEM() for _ in range(len(inputs))],
        out_specs=_VMEM(),
        scratch_shapes=[pltpu.VMEM((H + 2, L), jnp.float32) for _ in range(4)],
        **kwargs,
    )(*inputs)

    return jnp.transpose(out.reshape(H, W, CP)[:, :, :C], (2, 0, 1))[None]


# -------------------- pure-JAX reference (validation only) ------------------ #

def _forward_reference(dense, x, y2, c):
    def conv(z, p):                       # z: NHWC, p['w']: (3,3,Cin,Cout) HWIO
        return jax.lax.conv_general_dilated(
            z, p['w'], window_strides=(1, 1), padding=((1, 1), (1, 1)),
            dimension_numbers=('NHWC', 'HWIO', 'NHWC'),
            precision=jax.lax.Precision.HIGHEST) + p['b']

    def bn_lrelu(z, p):
        mean = jnp.mean(z, axis=(0, 1, 2), keepdims=True)
        var = jnp.mean((z - mean) ** 2, axis=(0, 1, 2), keepdims=True)
        y = (z - mean) * jax.lax.rsqrt(var + EPS) * p['gamma'] + p['beta']
        return jnp.where(y >= 0, y, LRELU_SLOPE * y)

    B, C, H, W = x.shape
    ind = (y2.shape[2] - H) // 2
    if ind > 0:
        y2 = y2[:, :, ind:y2.shape[2] - ind, ind:y2.shape[3] - ind]
    xt = jnp.transpose(x, (0, 2, 3, 1))
    y2t = jnp.transpose(y2, (0, 2, 3, 1))
    cb = jnp.broadcast_to(c[None, None, None, :], (B, H, W, c.shape[0]))
    xc = jnp.concatenate([xt, cb], axis=-1)

    h = bn_lrelu(conv(xc, dense['head']), dense['head'])
    for blk in dense['body']:
        h = bn_lrelu(conv(h, blk), blk)
    y1 = jnp.tanh(conv(h, dense['tail']))
    a = bn_lrelu(conv(jnp.concatenate([xc, y1, y2t], axis=-1), dense['head2']),
                 dense['head2'])
    a1 = jax.nn.sigmoid(conv(a, dense['tail2']))
    out = a1 * y2t + (1.0 - a1) * y1
    return jnp.transpose(out, (0, 3, 1, 2))


# ------------------------------------ main ----------------------------------- #

if __name__ == "__main__":
    nc_im, nfc, min_nfc, num_layer = 3, 8, 8, 5
    H = W = 16

    key = jax.random.PRNGKey(0)
    k_p, k_x, k_y, k_c = jax.random.split(key, 4)

    dense = init_params(k_p, nc_im, nfc, min_nfc, num_layer)
    packed = pack_params(dense, W)

    x = jax.random.normal(k_x, (1, nc_im, H, W), jnp.float32)
    y2 = jax.random.normal(k_y, (1, nc_im, H, W), jnp.float32)
    c = jax.random.normal(k_c, (2,), jnp.float32)

    out = jax.jit(forward)(packed, x, y2, c)
    jax.block_until_ready(out)
    assert out.shape == (1, nc_im, H, W) and out.dtype == jnp.float32
    assert bool(jnp.all(jnp.isfinite(out)))

    ref = _forward_reference(dense, x, y2, c)
    err = float(jnp.max(jnp.abs(out - ref)))
    assert err < 5e-2, f"mismatch vs pure-JAX reference: max abs err = {err}"

    print("KERNEL_OK")
</pallas_src>

<mosaic_0001>
module attributes {stable_mosaic.version = 11 : i64} {
  func.func @kernel(%arg0: memref<16x128xf32, #tpu.memory_space<vmem>>, %arg1: memref<16x128xf32, #tpu.memory_space<vmem>>, %arg2: memref<1x128xf32, #tpu.memory_space<vmem>>, %arg3: memref<128x128xf32, #tpu.memory_space<vmem>>, %arg4: memref<3x128x128xbf16, #tpu.memory_space<vmem>>, %arg5: memref<1x128xf32, #tpu.memory_space<vmem>>, %arg6: memref<1x128xf32, #tpu.memory_space<vmem>>, %arg7: memref<1x128xf32, #tpu.memory_space<vmem>>, %arg8: memref<3x128x128xbf16, #tpu.memory_space<vmem>>, %arg9: memref<1x128xf32, #tpu.memory_space<vmem>>, %arg10: memref<1x128xf32, #tpu.memory_space<vmem>>, %arg11: memref<1x128xf32, #tpu.memory_space<vmem>>, %arg12: memref<3x128x128xbf16, #tpu.memory_space<vmem>>, %arg13: memref<1x128xf32, #tpu.memory_space<vmem>>, %arg14: memref<1x128xf32, #tpu.memory_space<vmem>>, %arg15: memref<1x128xf32, #tpu.memory_space<vmem>>, %arg16: memref<3x128x128xbf16, #tpu.memory_space<vmem>>, %arg17: memref<1x128xf32, #tpu.memory_space<vmem>>, %arg18: memref<1x128xf32, #tpu.memory_space<vmem>>, %arg19: memref<1x128xf32, #tpu.memory_space<vmem>>, %arg20: memref<3x128x128xbf16, #tpu.memory_space<vmem>>, %arg21: memref<1x128xf32, #tpu.memory_space<vmem>>, %arg22: memref<9x128x128xbf16, #tpu.memory_space<vmem>>, %arg23: memref<1x128xf32, #tpu.memory_space<vmem>>, %arg24: memref<1x128xf32, #tpu.memory_space<vmem>>, %arg25: memref<1x128xf32, #tpu.memory_space<vmem>>, %arg26: memref<3x128x128xbf16, #tpu.memory_space<vmem>>, %arg27: memref<1x128xf32, #tpu.memory_space<vmem>>, %arg28: memref<16x128xf32, #tpu.memory_space<vmem>>, %arg29: memref<18x128xf32, #tpu.memory_space<vmem>>, %arg30: memref<18x128xf32, #tpu.memory_space<vmem>>, %arg31: memref<18x128xf32, #tpu.memory_space<vmem>>, %arg32: memref<18x128xf32, #tpu.memory_space<vmem>>) attributes {dimension_semantics = [], scalar_prefetch = 0 : i64, scratch_operands = 4 : i64, tpu.core_type = #tpu.core_type<tc>} {
    %cst = arith.constant 0.000000e+00 : f32
    %0 = vector.broadcast %cst : f32 to vector<1x128xf32>
    %c0 = arith.constant 0 : index
    %c0_0 = arith.constant 0 : index
    %1 = vector.load %arg29[%c0, %c0_0] : memref<18x128xf32, #tpu.memory_space<vmem>>, vector<1x128xf32>
    tpu.vector_store %arg29[%c0, %c0_0], %0 {strides = array<i32>} : memref<18x128xf32, #tpu.memory_space<vmem>>, vector<1x128xf32>,
    %c17 = arith.constant 17 : index
    %c0_1 = arith.constant 0 : index
    %2 = vector.load %arg29[%c17, %c0_1] : memref<18x128xf32, #tpu.memory_space<vmem>>, vector<1x128xf32>
    tpu.vector_store %arg29[%c17, %c0_1], %0 {strides = array<i32>} : memref<18x128xf32, #tpu.memory_space<vmem>>, vector<1x128xf32>,
    %c0_2 = arith.constant 0 : index
    %c0_3 = arith.constant 0 : index
    %3 = vector.load %arg30[%c0_2, %c0_3] : memref<18x128xf32, #tpu.memory_space<vmem>>, vector<1x128xf32>
    tpu.vector_store %arg30[%c0_2, %c0_3], %0 {strides = array<i32>} : memref<18x128xf32, #tpu.memory_space<vmem>>, vector<1x128xf32>,
    %c17_4 = arith.constant 17 : index
    %c0_5 = arith.constant 0 : index
    %4 = vector.load %arg30[%c17_4, %c0_5] : memref<18x128xf32, #tpu.memory_space<vmem>>, vector<1x128xf32>
    tpu.vector_store %arg30[%c17_4, %c0_5], %0 {strides = array<i32>} : memref<18x128xf32, #tpu.memory_space<vmem>>, vector<1x128xf32>,
    %c0_6 = arith.constant 0 : index
    %c0_7 = arith.constant 0 : index
    %5 = vector.load %arg31[%c0_6, %c0_7] : memref<18x128xf32, #tpu.memory_space<vmem>>, vector<1x128xf32>
    tpu.vector_store %arg31[%c0_6, %c0_7], %0 {strides = array<i32>} : memref<18x128xf32, #tpu.memory_space<vmem>>, vector<1x128xf32>,
    %c17_8 = arith.constant 17 : index
    %c0_9 = arith.constant 0 : index
    %6 = vector.load %arg31[%c17_8, %c0_9] : memref<18x128xf32, #tpu.memory_space<vmem>>, vector<1x128xf32>
    tpu.vector_store %arg31[%c17_8, %c0_9], %0 {strides = array<i32>} : memref<18x128xf32, #tpu.memory_space<vmem>>, vector<1x128xf32>,
    %c0_10 = arith.constant 0 : index
    %c0_11 = arith.constant 0 : index
    %7 = vector.load %arg32[%c0_10, %c0_11] : memref<18x128xf32, #tpu.memory_space<vmem>>, vector<1x128xf32>
    tpu.vector_store %arg32[%c0_10, %c0_11], %0 {strides = array<i32>} : memref<18x128xf32, #tpu.memory_space<vmem>>, vector<1x128xf32>,
    %c17_12 = arith.constant 17 : index
    %c0_13 = arith.constant 0 : index
    %8 = vector.load %arg32[%c17_12, %c0_13] : memref<18x128xf32, #tpu.memory_space<vmem>>, vector<1x128xf32>
    tpu.vector_store %arg32[%c17_12, %c0_13], %0 {strides = array<i32>} : memref<18x128xf32, #tpu.memory_space<vmem>>, vector<1x128xf32>,
    %c0_14 = arith.constant 0 : index
    %c0_15 = arith.constant 0 : index
    %9 = vector.load %arg0[%c0_14, %c0_15] : memref<16x128xf32, #tpu.memory_space<vmem>>, vector<16x128xf32>
    %c0_16 = arith.constant 0 : index
    %c0_17 = arith.constant 0 : index
    %10 = vector.load %arg2[%c0_16, %c0_17] : memref<1x128xf32, #tpu.memory_space<vmem>>, vector<1x128xf32>
    %11 = vector.broadcast %10 : vector<1x128xf32> to vector<16x128xf32>
    %12 = arith.addf %9, %11 : vector<16x128xf32>
    %c0_18 = arith.constant 0 : index
    %c0_19 = arith.constant 0 : index
    %13 = vector.load %arg1[%c0_18, %c0_19] : memref<16x128xf32, #tpu.memory_space<vmem>>, vector<16x128xf32>
    %c1 = arith.constant 1 : index
    %c0_20 = arith.constant 0 : index
    %14 = vector.load %arg29[%c1, %c0_20] : memref<18x128xf32, #tpu.memory_space<vmem>>, vector<16x128xf32>
    tpu.vector_store %arg29[%c1, %c0_20], %12 {strides = array<i32>} : memref<18x128xf32, #tpu.memory_space<vmem>>, vector<16x128xf32>,
    %c1_21 = arith.constant 1 : index
    %c0_22 = arith.constant 0 : index
    %15 = vector.load %arg31[%c1_21, %c0_22] : memref<18x128xf32, #tpu.memory_space<vmem>>, vector<16x128xf32>
    tpu.vector_store %arg31[%c1_21, %c0_22], %13 {strides = array<i32>} : memref<18x128xf32, #tpu.memory_space<vmem>>, vector<16x128xf32>,
    %cst_23 = arith.constant 0.000000e+00 : f32
    %16 = vector.broadcast %cst_23 : f32 to vector<16x128xf32>
    %c0_24 = arith.constant 0 : index
    %c0_25 = arith.constant 0 : index
    %17 = vector.load %arg29[%c0_24, %c0_25] : memref<18x128xf32, #tpu.memory_space<vmem>>, vector<16x128xf32>
    %18 = arith.truncf %17 : vector<16x128xf32> to vector<16x128xbf16>
    %c0_26 = arith.constant 0 : index
    %c0_27 = arith.constant 0 : index
    %c0_28 = arith.constant 0 : index
    %19 = vector.load %arg4[%c0_26, %c0_27, %c0_28] : memref<3x128x128xbf16, #tpu.memory_space<vmem>>, vector<1x128x128xbf16>
    %20 = vector.shape_cast %19 : vector<1x128x128xbf16> to vector<128x128xbf16>
    %cst_29 = arith.constant dense<0.000000e+00> : vector<16x128xf32>
    %21 = tpu.matmul %18, %20, %cst_29 {dimension_numbers = #tpu.dot_dimension_numbers<[1], [0], [0], [1], [0, 0, 1, 1], [], []>} : vector<16x128xbf16>, vector<128x128xbf16>, vector<16x128xf32> -> vector<16x128xf32>
    %22 = arith.addf %16, %21 : vector<16x128xf32>
    %c1_30 = arith.constant 1 : index
    %c0_31 = arith.constant 0 : index
    %23 = vector.load %arg29[%c1_30, %c0_31] : memref<18x128xf32, #tpu.memory_space<vmem>>, vector<16x128xf32>
    %24 = arith.truncf %23 : vector<16x128xf32> to vector<16x128xbf16>
    %c1_32 = arith.constant 1 : index
    %c0_33 = arith.constant 0 : index
    %c0_34 = arith.constant 0 : index
    %25 = vector.load %arg4[%c1_32, %c0_33, %c0_34] : memref<3x128x128xbf16, #tpu.memory_space<vmem>>, vector<1x128x128xbf16>
    %26 = vector.shape_cast %25 : vector<1x128x128xbf16> to vector<128x128xbf16>
    %cst_35 = arith.constant dense<0.000000e+00> : vector<16x128xf32>
    %27 = tpu.matmul %24, %26, %cst_35 {dimension_numbers = #tpu.dot_dimension_numbers<[1], [0], [0], [1], [0, 0, 1, 1], [], []>} : vector<16x128xbf16>, vector<128x128xbf16>, vector<16x128xf32> -> vector<16x128xf32>
    %28 = arith.addf %22, %27 : vector<16x128xf32>
    %c2 = arith.constant 2 : index
    %c0_36 = arith.constant 0 : index
    %29 = vector.load %arg29[%c2, %c0_36] : memref<18x128xf32, #tpu.memory_space<vmem>>, vector<16x128xf32>
    %30 = arith.truncf %29 : vector<16x128xf32> to vector<16x128xbf16>
    %c2_37 = arith.constant 2 : index
    %c0_38 = arith.constant 0 : index
    %c0_39 = arith.constant 0 : index
    %31 = vector.load %arg4[%c2_37, %c0_38, %c0_39] : memref<3x128x128xbf16, #tpu.memory_space<vmem>>, vector<1x128x128xbf16>
    %32 = vector.shape_cast %31 : vector<1x128x128xbf16> to vector<128x128xbf16>
    %cst_40 = arith.constant dense<0.000000e+00> : vector<16x128xf32>
    %33 = tpu.matmul %30, %32, %cst_40 {dimension_numbers = #tpu.dot_dimension_numbers<[1], [0], [0], [1], [0, 0, 1, 1], [], []>} : vector<16x128xbf16>, vector<128x128xbf16>, vector<16x128xf32> -> vector<16x128xf32>
    %34 = arith.addf %28, %33 : vector<16x128xf32>
    %c0_41 = arith.constant 0 : index
    %c0_42 = arith.constant 0 : index
    %35 = vector.load %arg5[%c0_41, %c0_42] : memref<1x128xf32, #tpu.memory_space<vmem>>, vector<1x128xf32>
    %36 = vector.broadcast %35 : vector<1x128xf32> to vector<16x128xf32>
    %37 = arith.addf %34, %36 : vector<16x128xf32>
    %cst_43 = arith.constant dense<0.000000e+00> : vector<128xf32>
    %38 = vector.multi_reduction <add>, %37, %cst_43 [0] : vector<16x128xf32> to vector<128xf32>
    %39 = vector.shape_cast %38 : vector<128xf32> to vector<1x128xf32>
    %40 = vector.shape_cast %39 : vector<1x128xf32> to vector<1x128xf32>
    %41 = vector.broadcast %40 : vector<1x128xf32> to vector<8x128xf32>
    %c0_44 = arith.constant 0 : index
    %c0_45 = arith.constant 0 : index
    %42 = vector.load %arg3[%c0_44, %c0_45] : memref<128x128xf32, #tpu.memory_space<vmem>>, vector<128x128xf32>
    %cst_46 = arith.constant dense<0.000000e+00> : vector<8x128xf32>
    %43 = tpu.matmul %41, %42, %cst_46 {dimension_numbers = #tpu.dot_dimension_numbers<[1], [0], [0], [1], [0, 0, 1, 1], [], []>} : vector<8x128xf32>, vector<128x128xf32>, vector<8x128xf32> -> vector<8x128xf32>
    %44 = vector.extract_strided_slice %43 {offsets = [0, 0], sizes = [1, 128], strides = [1, 1]} : vector<8x128xf32> to vector<1x128xf32>
    %cst_47 = arith.constant 3.906250e-03 : f32
    %45 = vector.broadcast %cst_47 : f32 to vector<1x128xf32>
    %46 = arith.mulf %44, %45 : vector<1x128xf32>
    %47 = vector.broadcast %46 : vector<1x128xf32> to vector<16x128xf32>
    %48 = arith.subf %37, %47 : vector<16x128xf32>
    %49 = arith.mulf %48, %48 : vector<16x128xf32>
    %cst_48 = arith.constant dense<0.000000e+00> : vector<128xf32>
    %50 = vector.multi_reduction <add>, %49, %cst_48 [0] : vector<16x128xf32> to vector<128xf32>
    %51 = vector.shape_cast %50 : vector<128xf32> to vector<1x128xf32>
    %52 = vector.shape_cast %51 : vector<1x128xf32> to vector<1x128xf32>
    %53 = vector.broadcast %52 : vector<1x128xf32> to vector<8x128xf32>
    %c0_49 = arith.constant 0 : index
    %c0_50 = arith.constant 0 : index
    %54 = vector.load %arg3[%c0_49, %c0_50] : memref<128x128xf32, #tpu.memory_space<vmem>>, vector<128x128xf32>
    %cst_51 = arith.constant dense<0.000000e+00> : vector<8x128xf32>
    %55 = tpu.matmul %53, %54, %cst_51 {dimension_numbers = #tpu.dot_dimension_numbers<[1], [0], [0], [1], [0, 0, 1, 1], [], []>} : vector<8x128xf32>, vector<128x128xf32>, vector<8x128xf32> -> vector<8x128xf32>
    %56 = vector.extract_strided_slice %55 {offsets = [0, 0], sizes = [1, 128], strides = [1, 1]} : vector<8x128xf32> to vector<1x128xf32>
    %cst_52 = arith.constant 3.906250e-03 : f32
    %57 = vector.broadcast %cst_52 : f32 to vector<1x128xf32>
    %58 = arith.mulf %56, %57 : vector<1x128xf32>
    %cst_53 = arith.constant 0.000000e+00 : f32
    %59 = vector.broadcast %cst_53 : f32 to vector<1x128xf32>
    %60 = arith.maximumf %58, %59 : vector<1x128xf32>
    %cst_54 = arith.constant 9.99999974E-6 : f32
    %61 = vector.broadcast %cst_54 : f32 to vector<1x128xf32>
    %62 = arith.addf %60, %61 : vector<1x128xf32>
    %63 = math.rsqrt %62 : vector<1x128xf32>
    %c0_55 = arith.constant 0 : index
    %c0_56 = arith.constant 0 : index
    %64 = vector.load %arg6[%c0_55, %c0_56] : memref<1x128xf32, #tpu.memory_space<vmem>>, vector<1x128xf32>
    %65 = arith.mulf %63, %64 : vector<1x128xf32>
    %66 = vector.broadcast %65 : vector<1x128xf32> to vector<16x128xf32>
    %67 = arith.mulf %48, %66 : vector<16x128xf32>
    %c0_57 = arith.constant 0 : index
    %c0_58 = arith.constant 0 : index
    %68 = vector.load %arg7[%c0_57, %c0_58] : memref<1x128xf32, #tpu.memory_space<vmem>>, vector<1x128xf32>
    %69 = vector.broadcast %68 : vector<1x128xf32> to vector<16x128xf32>
    %70 = arith.addf %67, %69 : vector<16x128xf32>
    %cst_59 = arith.constant 2.000000e-01 : f32
    %71 = vector.broadcast %cst_59 : f32 to vector<16x128xf32>
    %72 = arith.mulf %71, %70 : vector<16x128xf32>
    %73 = arith.maximumf %70, %72 : vector<16x128xf32>
    %c1_60 = arith.constant 1 : index
    %c0_61 = arith.constant 0 : index
    %74 = vector.load %arg32[%c1_60, %c0_61] : memref<18x128xf32, #tpu.memory_space<vmem>>, vector<16x128xf32>
    tpu.vector_store %arg32[%c1_60, %c0_61], %73 {strides = array<i32>} : memref<18x128xf32, #tpu.memory_space<vmem>>, vector<16x128xf32>,
    %cst_62 = arith.constant 0.000000e+00 : f32
    %75 = vector.broadcast %cst_62 : f32 to vector<16x128xf32>
    %c0_63 = arith.constant 0 : index
    %c0_64 = arith.constant 0 : index
    %76 = vector.load %arg32[%c0_63, %c0_64] : memref<18x128xf32, #tpu.memory_space<vmem>>, vector<16x128xf32>
    %77 = arith.truncf %76 : vector<16x128xf32> to vector<16x128xbf16>
    %c0_65 = arith.constant 0 : index
    %c0_66 = arith.constant 0 : index
    %c0_67 = arith.constant 0 : index
    %78 = vector.load %arg8[%c0_65, %c0_66, %c0_67] : memref<3x128x128xbf16, #tpu.memory_space<vmem>>, vector<1x128x128xbf16>
    %79 = vector.shape_cast %78 : vector<1x128x128xbf16> to vector<128x128xbf16>
    %cst_68 = arith.constant dense<0.000000e+00> : vector<16x128xf32>
    %80 = tpu.matmul %77, %79, %cst_68 {dimension_numbers = #tpu.dot_dimension_numbers<[1], [0], [0], [1], [0, 0, 1, 1], [], []>} : vector<16x128xbf16>, vector<128x128xbf16>, vector<16x128xf32> -> vector<16x128xf32>
    %81 = arith.addf %75, %80 : vector<16x128xf32>
    %c1_69 = arith.constant 1 : index
    %c0_70 = arith.constant 0 : index
    %82 = vector.load %arg32[%c1_69, %c0_70] : memref<18x128xf32, #tpu.memory_space<vmem>>, vector<16x128xf32>
    %83 = arith.truncf %82 : vector<16x128xf32> to vector<16x128xbf16>
    %c1_71 = arith.constant 1 : index
    %c0_72 = arith.constant 0 : index
    %c0_73 = arith.constant 0 : index
    %84 = vector.load %arg8[%c1_71, %c0_72, %c0_73] : memref<3x128x128xbf16, #tpu.memory_space<vmem>>, vector<1x128x128xbf16>
    %85 = vector.shape_cast %84 : vector<1x128x128xbf16> to vector<128x128xbf16>
    %cst_74 = arith.constant dense<0.000000e+00> : vector<16x128xf32>
    %86 = tpu.matmul %83, %85, %cst_74 {dimension_numbers = #tpu.dot_dimension_numbers<[1], [0], [0], [1], [0, 0, 1, 1], [], []>} : vector<16x128xbf16>, vector<128x128xbf16>, vector<16x128xf32> -> vector<16x128xf32>
    %87 = arith.addf %81, %86 : vector<16x128xf32>
    %c2_75 = arith.constant 2 : index
    %c0_76 = arith.constant 0 : index
    %88 = vector.load %arg32[%c2_75, %c0_76] : memref<18x128xf32, #tpu.memory_space<vmem>>, vector<16x128xf32>
    %89 = arith.truncf %88 : vector<16x128xf32> to vector<16x128xbf16>
    %c2_77 = arith.constant 2 : index
    %c0_78 = arith.constant 0 : index
    %c0_79 = arith.constant 0 : index
    %90 = vector.load %arg8[%c2_77, %c0_78, %c0_79] : memref<3x128x128xbf16, #tpu.memory_space<vmem>>, vector<1x128x128xbf16>
    %91 = vector.shape_cast %90 : vector<1x128x128xbf16> to vector<128x128xbf16>
    %cst_80 = arith.constant dense<0.000000e+00> : vector<16x128xf32>
    %92 = tpu.matmul %89, %91, %cst_80 {dimension_numbers = #tpu.dot_dimension_numbers<[1], [0], [0], [1], [0, 0, 1, 1], [], []>} : vector<16x128xbf16>, vector<128x128xbf16>, vector<16x128xf32> -> vector<16x128xf32>
    %93 = arith.addf %87, %92 : vector<16x128xf32>
    %c0_81 = arith.constant 0 : index
    %c0_82 = arith.constant 0 : index
    %94 = vector.load %arg9[%c0_81, %c0_82] : memref<1x128xf32, #tpu.memory_space<vmem>>, vector<1x128xf32>
    %95 = vector.broadcast %94 : vector<1x128xf32> to vector<16x128xf32>
    %96 = arith.addf %93, %95 : vector<16x128xf32>
    %cst_83 = arith.constant dense<0.000000e+00> : vector<128xf32>
    %97 = vector.multi_reduction <add>, %96, %cst_83 [0] : vector<16x128xf32> to vector<128xf32>
    %98 = vector.shape_cast %97 : vector<128xf32> to vector<1x128xf32>
    %99 = vector.shape_cast %98 : vector<1x128xf32> to vector<1x128xf32>
    %100 = vector.broadcast %99 : vector<1x128xf32> to vector<8x128xf32>
    %c0_84 = arith.constant 0 : index
    %c0_85 = arith.constant 0 : index
    %101 = vector.load %arg3[%c0_84, %c0_85] : memref<128x128xf32, #tpu.memory_space<vmem>>, vector<128x128xf32>
    %cst_86 = arith.constant dense<0.000000e+00> : vector<8x128xf32>
    %102 = tpu.matmul %100, %101, %cst_86 {dimension_numbers = #tpu.dot_dimension_numbers<[1], [0], [0], [1], [0, 0, 1, 1], [], []>} : vector<8x128xf32>, vector<128x128xf32>, vector<8x128xf32> -> vector<8x128xf32>
    %103 = vector.extract_strided_slice %102 {offsets = [0, 0], sizes = [1, 128], strides = [1, 1]} : vector<8x128xf32> to vector<1x128xf32>
    %cst_87 = arith.constant 3.906250e-03 : f32
    %104 = vector.broadcast %cst_87 : f32 to vector<1x128xf32>
    %105 = arith.mulf %103, %104 : vector<1x128xf32>
    %106 = vector.broadcast %105 : vector<1x128xf32> to vector<16x128xf32>
    %107 = arith.subf %96, %106 : vector<16x128xf32>
    %108 = arith.mulf %107, %107 : vector<16x128xf32>
    %cst_88 = arith.constant dense<0.000000e+00> : vector<128xf32>
    %109 = vector.multi_reduction <add>, %108, %cst_88 [0] : vector<16x128xf32> to vector<128xf32>
    %110 = vector.shape_cast %109 : vector<128xf32> to vector<1x128xf32>
    %111 = vector.shape_cast %110 : vector<1x128xf32> to vector<1x128xf32>
    %112 = vector.broadcast %111 : vector<1x128xf32> to vector<8x128xf32>
    %c0_89 = arith.constant 0 : index
    %c0_90 = arith.constant 0 : index
    %113 = vector.load %arg3[%c0_89, %c0_90] : memref<128x128xf32, #tpu.memory_space<vmem>>, vector<128x128xf32>
    %cst_91 = arith.constant dense<0.000000e+00> : vector<8x128xf32>
    %114 = tpu.matmul %112, %113, %cst_91 {dimension_numbers = #tpu.dot_dimension_numbers<[1], [0], [0], [1], [0, 0, 1, 1], [], []>} : vector<8x128xf32>, vector<128x128xf32>, vector<8x128xf32> -> vector<8x128xf32>
    %115 = vector.extract_strided_slice %114 {offsets = [0, 0], sizes = [1, 128], strides = [1, 1]} : vector<8x128xf32> to vector<1x128xf32>
    %cst_92 = arith.constant 3.906250e-03 : f32
    %116 = vector.broadcast %cst_92 : f32 to vector<1x128xf32>
    %117 = arith.mulf %115, %116 : vector<1x128xf32>
    %cst_93 = arith.constant 0.000000e+00 : f32
    %118 = vector.broadcast %cst_93 : f32 to vector<1x128xf32>
    %119 = arith.maximumf %117, %118 : vector<1x128xf32>
    %cst_94 = arith.constant 9.99999974E-6 : f32
    %120 = vector.broadcast %cst_94 : f32 to vector<1x128xf32>
    %121 = arith.addf %119, %120 : vector<1x128xf32>
    %122 = math.rsqrt %121 : vector<1x128xf32>
    %c0_95 = arith.constant 0 : index
    %c0_96 = arith.constant 0 : index
    %123 = vector.load %arg10[%c0_95, %c0_96] : memref<1x128xf32, #tpu.memory_space<vmem>>, vector<1x128xf32>
    %124 = arith.mulf %122, %123 : vector<1x128xf32>
    %125 = vector.broadcast %124 : vector<1x128xf32> to vector<16x128xf32>
    %126 = arith.mulf %107, %125 : vector<16x128xf32>
    %c0_97 = arith.constant 0 : index
    %c0_98 = arith.constant 0 : index
    %127 = vector.load %arg11[%c0_97, %c0_98] : memref<1x128xf32, #tpu.memory_space<vmem>>, vector<1x128xf32>
    %128 = vector.broadcast %127 : vector<1x128xf32> to vector<16x128xf32>
    %129 = arith.addf %126, %128 : vector<16x128xf32>
    %cst_99 = arith.constant 2.000000e-01 : f32
    %130 = vector.broadcast %cst_99 : f32 to vector<16x128xf32>
    %131 = arith.mulf %130, %129 : vector<16x128xf32>
    %132 = arith.maximumf %129, %131 : vector<16x128xf32>
    %c1_100 = arith.constant 1 : index
    %c0_101 = arith.constant 0 : index
    %133 = vector.load %arg32[%c1_100, %c0_101] : memref<18x128xf32, #tpu.memory_space<vmem>>, vector<16x128xf32>
    tpu.vector_store %arg32[%c1_100, %c0_101], %132 {strides = array<i32>} : memref<18x128xf32, #tpu.memory_space<vmem>>, vector<16x128xf32>,
    %cst_102 = arith.constant 0.000000e+00 : f32
    %134 = vector.broadcast %cst_102 : f32 to vector<16x128xf32>
    %c0_103 = arith.constant 0 : index
    %c0_104 = arith.constant 0 : index
    %135 = vector.load %arg32[%c0_103, %c0_104] : memref<18x128xf32, #tpu.memory_space<vmem>>, vector<16x128xf32>
    %136 = arith.truncf %135 : vector<16x128xf32> to vector<16x128xbf16>
    %c0_105 = arith.constant 0 : index
    %c0_106 = arith.constant 0 : index
    %c0_107 = arith.constant 0 : index
    %137 = vector.load %arg12[%c0_105, %c0_106, %c0_107] : memref<3x128x128xbf16, #tpu.memory_space<vmem>>, vector<1x128x128xbf16>
    %138 = vector.shape_cast %137 : vector<1x128x128xbf16> to vector<128x128xbf16>
    %cst_108 = arith.constant dense<0.000000e+00> : vector<16x128xf32>
    %139 = tpu.matmul %136, %138, %cst_108 {dimension_numbers = #tpu.dot_dimension_numbers<[1], [0], [0], [1], [0, 0, 1, 1], [], []>} : vector<16x128xbf16>, vector<128x128xbf16>, vector<16x128xf32> -> vector<16x128xf32>
    %140 = arith.addf %134, %139 : vector<16x128xf32>
    %c1_109 = arith.constant 1 : index
    %c0_110 = arith.constant 0 : index
    %141 = vector.load %arg32[%c1_109, %c0_110] : memref<18x128xf32, #tpu.memory_space<vmem>>, vector<16x128xf32>
    %142 = arith.truncf %141 : vector<16x128xf32> to vector<16x128xbf16>
    %c1_111 = arith.constant 1 : index
    %c0_112 = arith.constant 0 : index
    %c0_113 = arith.constant 0 : index
    %143 = vector.load %arg12[%c1_111, %c0_112, %c0_113] : memref<3x128x128xbf16, #tpu.memory_space<vmem>>, vector<1x128x128xbf16>
    %144 = vector.shape_cast %143 : vector<1x128x128xbf16> to vector<128x128xbf16>
    %cst_114 = arith.constant dense<0.000000e+00> : vector<16x128xf32>
    %145 = tpu.matmul %142, %144, %cst_114 {dimension_numbers = #tpu.dot_dimension_numbers<[1], [0], [0], [1], [0, 0, 1, 1], [], []>} : vector<16x128xbf16>, vector<128x128xbf16>, vector<16x128xf32> -> vector<16x128xf32>
    %146 = arith.addf %140, %145 : vector<16x128xf32>
    %c2_115 = arith.constant 2 : index
    %c0_116 = arith.constant 0 : index
    %147 = vector.load %arg32[%c2_115, %c0_116] : memref<18x128xf32, #tpu.memory_space<vmem>>, vector<16x128xf32>
    %148 = arith.truncf %147 : vector<16x128xf32> to vector<16x128xbf16>
    %c2_117 = arith.constant 2 : index
    %c0_118 = arith.constant 0 : index
    %c0_119 = arith.constant 0 : index
    %149 = vector.load %arg12[%c2_117, %c0_118, %c0_119] : memref<3x128x128xbf16, #tpu.memory_space<vmem>>, vector<1x128x128xbf16>
    %150 = vector.shape_cast %149 : vector<1x128x128xbf16> to vector<128x128xbf16>
    %cst_120 = arith.constant dense<0.000000e+00> : vector<16x128xf32>
    %151 = tpu.matmul %148, %150, %cst_120 {dimension_numbers = #tpu.dot_dimension_numbers<[1], [0], [0], [1], [0, 0, 1, 1], [], []>} : vector<16x128xbf16>, vector<128x128xbf16>, vector<16x128xf32> -> vector<16x128xf32>
    %152 = arith.addf %146, %151 : vector<16x128xf32>
    %c0_121 = arith.constant 0 : index
    %c0_122 = arith.constant 0 : index
    %153 = vector.load %arg13[%c0_121, %c0_122] : memref<1x128xf32, #tpu.memory_space<vmem>>, vector<1x128xf32>
    %154 = vector.broadcast %153 : vector<1x128xf32> to vector<16x128xf32>
    %155 = arith.addf %152, %154 : vector<16x128xf32>
    %cst_123 = arith.constant dense<0.000000e+00> : vector<128xf32>
    %156 = vector.multi_reduction <add>, %155, %cst_123 [0] : vector<16x128xf32> to vector<128xf32>
    %157 = vector.shape_cast %156 : vector<128xf32> to vector<1x128xf32>
    %158 = vector.shape_cast %157 : vector<1x128xf32> to vector<1x128xf32>
    %159 = vector.broadcast %158 : vector<1x128xf32> to vector<8x128xf32>
    %c0_124 = arith.constant 0 : index
    %c0_125 = arith.constant 0 : index
    %160 = vector.load %arg3[%c0_124, %c0_125] : memref<128x128xf32, #tpu.memory_space<vmem>>, vector<128x128xf32>
    %cst_126 = arith.constant dense<0.000000e+00> : vector<8x128xf32>
    %161 = tpu.matmul %159, %160, %cst_126 {dimension_numbers = #tpu.dot_dimension_numbers<[1], [0], [0], [1], [0, 0, 1, 1], [], []>} : vector<8x128xf32>, vector<128x128xf32>, vector<8x128xf32> -> vector<8x128xf32>
    %162 = vector.extract_strided_slice %161 {offsets = [0, 0], sizes = [1, 128], strides = [1, 1]} : vector<8x128xf32> to vector<1x128xf32>
    %cst_127 = arith.constant 3.906250e-03 : f32
    %163 = vector.broadcast %cst_127 : f32 to vector<1x128xf32>
    %164 = arith.mulf %162, %163 : vector<1x128xf32>
    %165 = vector.broadcast %164 : vector<1x128xf32> to vector<16x128xf32>
    %166 = arith.subf %155, %165 : vector<16x128xf32>
    %167 = arith.mulf %166, %166 : vector<16x128xf32>
    %cst_128 = arith.constant dense<0.000000e+00> : vector<128xf32>
    %168 = vector.multi_reduction <add>, %167, %cst_128 [0] : vector<16x128xf32> to vector<128xf32>
    %169 = vector.shape_cast %168 : vector<128xf32> to vector<1x128xf32>
    %170 = vector.shape_cast %169 : vector<1x128xf32> to vector<1x128xf32>
    %171 = vector.broadcast %170 : vector<1x128xf32> to vector<8x128xf32>
    %c0_129 = arith.constant 0 : index
    %c0_130 = arith.constant 0 : index
    %172 = vector.load %arg3[%c0_129, %c0_130] : memref<128x128xf32, #tpu.memory_space<vmem>>, vector<128x128xf32>
    %cst_131 = arith.constant dense<0.000000e+00> : vector<8x128xf32>
    %173 = tpu.matmul %171, %172, %cst_131 {dimension_numbers = #tpu.dot_dimension_numbers<[1], [0], [0], [1], [0, 0, 1, 1], [], []>} : vector<8x128xf32>, vector<128x128xf32>, vector<8x128xf32> -> vector<8x128xf32>
    %174 = vector.extract_strided_slice %173 {offsets = [0, 0], sizes = [1, 128], strides = [1, 1]} : vector<8x128xf32> to vector<1x128xf32>
    %cst_132 = arith.constant 3.906250e-03 : f32
    %175 = vector.broadcast %cst_132 : f32 to vector<1x128xf32>
    %176 = arith.mulf %174, %175 : vector<1x128xf32>
    %cst_133 = arith.constant 0.000000e+00 : f32
    %177 = vector.broadcast %cst_133 : f32 to vector<1x128xf32>
    %178 = arith.maximumf %176, %177 : vector<1x128xf32>
    %cst_134 = arith.constant 9.99999974E-6 : f32
    %179 = vector.broadcast %cst_134 : f32 to vector<1x128xf32>
    %180 = arith.addf %178, %179 : vector<1x128xf32>
    %181 = math.rsqrt %180 : vector<1x128xf32>
    %c0_135 = arith.constant 0 : index
    %c0_136 = arith.constant 0 : index
    %182 = vector.load %arg14[%c0_135, %c0_136] : memref<1x128xf32, #tpu.memory_space<vmem>>, vector<1x128xf32>
    %183 = arith.mulf %181, %182 : vector<1x128xf32>
    %184 = vector.broadcast %183 : vector<1x128xf32> to vector<16x128xf32>
    %185 = arith.mulf %166, %184 : vector<16x128xf32>
    %c0_137 = arith.constant 0 : index
    %c0_138 = arith.constant 0 : index
    %186 = vector.load %arg15[%c0_137, %c0_138] : memref<1x128xf32, #tpu.memory_space<vmem>>, vector<1x128xf32>
    %187 = vector.broadcast %186 : vector<1x128xf32> to vector<16x128xf32>
    %188 = arith.addf %185, %187 : vector<16x128xf32>
    %cst_139 = arith.constant 2.000000e-01 : f32
    %189 = vector.broadcast %cst_139 : f32 to vector<16x128xf32>
    %190 = arith.mulf %189, %188 : vector<16x128xf32>
    %191 = arith.maximumf %188, %190 : vector<16x128xf32>
    %c1_140 = arith.constant 1 : index
    %c0_141 = arith.constant 0 : index
    %192 = vector.load %arg32[%c1_140, %c0_141] : memref<18x128xf32, #tpu.memory_space<vmem>>, vector<16x128xf32>
    tpu.vector_store %arg32[%c1_140, %c0_141], %191 {strides = array<i32>} : memref<18x128xf32, #tpu.memory_space<vmem>>, vector<16x128xf32>,
    %cst_142 = arith.constant 0.000000e+00 : f32
    %193 = vector.broadcast %cst_142 : f32 to vector<16x128xf32>
    %c0_143 = arith.constant 0 : index
    %c0_144 = arith.constant 0 : index
    %194 = vector.load %arg32[%c0_143, %c0_144] : memref<18x128xf32, #tpu.memory_space<vmem>>, vector<16x128xf32>
    %195 = arith.truncf %194 : vector<16x128xf32> to vector<16x128xbf16>
    %c0_145 = arith.constant 0 : index
    %c0_146 = arith.constant 0 : index
    %c0_147 = arith.constant 0 : index
    %196 = vector.load %arg16[%c0_145, %c0_146, %c0_147] : memref<3x128x128xbf16, #tpu.memory_space<vmem>>, vector<1x128x128xbf16>
    %197 = vector.shape_cast %196 : vector<1x128x128xbf16> to vector<128x128xbf16>
    %cst_148 = arith.constant dense<0.000000e+00> : vector<16x128xf32>
    %198 = tpu.matmul %195, %197, %cst_148 {dimension_numbers = #tpu.dot_dimension_numbers<[1], [0], [0], [1], [0, 0, 1, 1], [], []>} : vector<16x128xbf16>, vector<128x128xbf16>, vector<16x128xf32> -> vector<16x128xf32>
    %199 = arith.addf %193, %198 : vector<16x128xf32>
    %c1_149 = arith.constant 1 : index
    %c0_150 = arith.constant 0 : index
    %200 = vector.load %arg32[%c1_149, %c0_150] : memref<18x128xf32, #tpu.memory_space<vmem>>, vector<16x128xf32>
    %201 = arith.truncf %200 : vector<16x128xf32> to vector<16x128xbf16>
    %c1_151 = arith.constant 1 : index
    %c0_152 = arith.constant 0 : index
    %c0_153 = arith.constant 0 : index
    %202 = vector.load %arg16[%c1_151, %c0_152, %c0_153] : memref<3x128x128xbf16, #tpu.memory_space<vmem>>, vector<1x128x128xbf16>
    %203 = vector.shape_cast %202 : vector<1x128x128xbf16> to vector<128x128xbf16>
    %cst_154 = arith.constant dense<0.000000e+00> : vector<16x128xf32>
    %204 = tpu.matmul %201, %203, %cst_154 {dimension_numbers = #tpu.dot_dimension_numbers<[1], [0], [0], [1], [0, 0, 1, 1], [], []>} : vector<16x128xbf16>, vector<128x128xbf16>, vector<16x128xf32> -> vector<16x128xf32>
    %205 = arith.addf %199, %204 : vector<16x128xf32>
    %c2_155 = arith.constant 2 : index
    %c0_156 = arith.constant 0 : index
    %206 = vector.load %arg32[%c2_155, %c0_156] : memref<18x128xf32, #tpu.memory_space<vmem>>, vector<16x128xf32>
    %207 = arith.truncf %206 : vector<16x128xf32> to vector<16x128xbf16>
    %c2_157 = arith.constant 2 : index
    %c0_158 = arith.constant 0 : index
    %c0_159 = arith.constant 0 : index
    %208 = vector.load %arg16[%c2_157, %c0_158, %c0_159] : memref<3x128x128xbf16, #tpu.memory_space<vmem>>, vector<1x128x128xbf16>
    %209 = vector.shape_cast %208 : vector<1x128x128xbf16> to vector<128x128xbf16>
    %cst_160 = arith.constant dense<0.000000e+00> : vector<16x128xf32>
    %210 = tpu.matmul %207, %209, %cst_160 {dimension_numbers = #tpu.dot_dimension_numbers<[1], [0], [0], [1], [0, 0, 1, 1], [], []>} : vector<16x128xbf16>, vector<128x128xbf16>, vector<16x128xf32> -> vector<16x128xf32>
    %211 = arith.addf %205, %210 : vector<16x128xf32>
    %c0_161 = arith.constant 0 : index
    %c0_162 = arith.constant 0 : index
    %212 = vector.load %arg17[%c0_161, %c0_162] : memref<1x128xf32, #tpu.memory_space<vmem>>, vector<1x128xf32>
    %213 = vector.broadcast %212 : vector<1x128xf32> to vector<16x128xf32>
    %214 = arith.addf %211, %213 : vector<16x128xf32>
    %cst_163 = arith.constant dense<0.000000e+00> : vector<128xf32>
    %215 = vector.multi_reduction <add>, %214, %cst_163 [0] : vector<16x128xf32> to vector<128xf32>
    %216 = vector.shape_cast %215 : vector<128xf32> to vector<1x128xf32>
    %217 = vector.shape_cast %216 : vector<1x128xf32> to vector<1x128xf32>
    %218 = vector.broadcast %217 : vector<1x128xf32> to vector<8x128xf32>
    %c0_164 = arith.constant 0 : index
    %c0_165 = arith.constant 0 : index
    %219 = vector.load %arg3[%c0_164, %c0_165] : memref<128x128xf32, #tpu.memory_space<vmem>>, vector<128x128xf32>
    %cst_166 = arith.constant dense<0.000000e+00> : vector<8x128xf32>
    %220 = tpu.matmul %218, %219, %cst_166 {dimension_numbers = #tpu.dot_dimension_numbers<[1], [0], [0], [1], [0, 0, 1, 1], [], []>} : vector<8x128xf32>, vector<128x128xf32>, vector<8x128xf32> -> vector<8x128xf32>
    %221 = vector.extract_strided_slice %220 {offsets = [0, 0], sizes = [1, 128], strides = [1, 1]} : vector<8x128xf32> to vector<1x128xf32>
    %cst_167 = arith.constant 3.906250e-03 : f32
    %222 = vector.broadcast %cst_167 : f32 to vector<1x128xf32>
    %223 = arith.mulf %221, %222 : vector<1x128xf32>
    %224 = vector.broadcast %223 : vector<1x128xf32> to vector<16x128xf32>
    %225 = arith.subf %214, %224 : vector<16x128xf32>
    %226 = arith.mulf %225, %225 : vector<16x128xf32>
    %cst_168 = arith.constant dense<0.000000e+00> : vector<128xf32>
    %227 = vector.multi_reduction <add>, %226, %cst_168 [0] : vector<16x128xf32> to vector<128xf32>
    %228 = vector.shape_cast %227 : vector<128xf32> to vector<1x128xf32>
    %229 = vector.shape_cast %228 : vector<1x128xf32> to vector<1x128xf32>
    %230 = vector.broadcast %229 : vector<1x128xf32> to vector<8x128xf32>
    %c0_169 = arith.constant 0 : index
    %c0_170 = arith.constant 0 : index
    %231 = vector.load %arg3[%c0_169, %c0_170] : memref<128x128xf32, #tpu.memory_space<vmem>>, vector<128x128xf32>
    %cst_171 = arith.constant dense<0.000000e+00> : vector<8x128xf32>
    %232 = tpu.matmul %230, %231, %cst_171 {dimension_numbers = #tpu.dot_dimension_numbers<[1], [0], [0], [1], [0, 0, 1, 1], [], []>} : vector<8x128xf32>, vector<128x128xf32>, vector<8x128xf32> -> vector<8x128xf32>
    %233 = vector.extract_strided_slice %232 {offsets = [0, 0], sizes = [1, 128], strides = [1, 1]} : vector<8x128xf32> to vector<1x128xf32>
    %cst_172 = arith.constant 3.906250e-03 : f32
    %234 = vector.broadcast %cst_172 : f32 to vector<1x128xf32>
    %235 = arith.mulf %233, %234 : vector<1x128xf32>
    %cst_173 = arith.constant 0.000000e+00 : f32
    %236 = vector.broadcast %cst_173 : f32 to vector<1x128xf32>
    %237 = arith.maximumf %235, %236 : vector<1x128xf32>
    %cst_174 = arith.constant 9.99999974E-6 : f32
    %238 = vector.broadcast %cst_174 : f32 to vector<1x128xf32>
    %239 = arith.addf %237, %238 : vector<1x128xf32>
    %240 = math.rsqrt %239 : vector<1x128xf32>
    %c0_175 = arith.constant 0 : index
    %c0_176 = arith.constant 0 : index
    %241 = vector.load %arg18[%c0_175, %c0_176] : memref<1x128xf32, #tpu.memory_space<vmem>>, vector<1x128xf32>
    %242 = arith.mulf %240, %241 : vector<1x128xf32>
    %243 = vector.broadcast %242 : vector<1x128xf32> to vector<16x128xf32>
    %244 = arith.mulf %225, %243 : vector<16x128xf32>
    %c0_177 = arith.constant 0 : index
    %c0_178 = arith.constant 0 : index
    %245 = vector.load %arg19[%c0_177, %c0_178] : memref<1x128xf32, #tpu.memory_space<vmem>>, vector<1x128xf32>
    %246 = vector.broadcast %245 : vector<1x128xf32> to vector<16x128xf32>
    %247 = arith.addf %244, %246 : vector<16x128xf32>
    %cst_179 = arith.constant 2.000000e-01 : f32
    %248 = vector.broadcast %cst_179 : f32 to vector<16x128xf32>
    %249 = arith.mulf %248, %247 : vector<16x128xf32>
    %250 = arith.maximumf %247, %249 : vector<16x128xf32>
    %c1_180 = arith.constant 1 : index
    %c0_181 = arith.constant 0 : index
    %251 = vector.load %arg32[%c1_180, %c0_181] : memref<18x128xf32, #tpu.memory_space<vmem>>, vector<16x128xf32>
    tpu.vector_store %arg32[%c1_180, %c0_181], %250 {strides = array<i32>} : memref<18x128xf32, #tpu.memory_space<vmem>>, vector<16x128xf32>,
    %cst_182 = arith.constant 0.000000e+00 : f32
    %252 = vector.broadcast %cst_182 : f32 to vector<16x128xf32>
    %c0_183 = arith.constant 0 : index
    %c0_184 = arith.constant 0 : index
    %253 = vector.load %arg32[%c0_183, %c0_184] : memref<18x128xf32, #tpu.memory_space<vmem>>, vector<16x128xf32>
    %254 = arith.truncf %253 : vector<16x128xf32> to vector<16x128xbf16>
    %c0_185 = arith.constant 0 : index
    %c0_186 = arith.constant 0 : index
    %c0_187 = arith.constant 0 : index
    %255 = vector.load %arg20[%c0_185, %c0_186, %c0_187] : memref<3x128x128xbf16, #tpu.memory_space<vmem>>, vector<1x128x128xbf16>
    %256 = vector.shape_cast %255 : vector<1x128x128xbf16> to vector<128x128xbf16>
    %cst_188 = arith.constant dense<0.000000e+00> : vector<16x128xf32>
    %257 = tpu.matmul %254, %256, %cst_188 {dimension_numbers = #tpu.dot_dimension_numbers<[1], [0], [0], [1], [0, 0, 1, 1], [], []>} : vector<16x128xbf16>, vector<128x128xbf16>, vector<16x128xf32> -> vector<16x128xf32>
    %258 = arith.addf %252, %257 : vector<16x128xf32>
    %c1_189 = arith.constant 1 : index
    %c0_190 = arith.constant 0 : index
    %259 = vector.load %arg32[%c1_189, %c0_190] : memref<18x128xf32, #tpu.memory_space<vmem>>, vector<16x128xf32>
    %260 = arith.truncf %259 : vector<16x128xf32> to vector<16x128xbf16>
    %c1_191 = arith.constant 1 : index
    %c0_192 = arith.constant 0 : index
    %c0_193 = arith.constant 0 : index
    %261 = vector.load %arg20[%c1_191, %c0_192, %c0_193] : memref<3x128x128xbf16, #tpu.memory_space<vmem>>, vector<1x128x128xbf16>
    %262 = vector.shape_cast %261 : vector<1x128x128xbf16> to vector<128x128xbf16>
    %cst_194 = arith.constant dense<0.000000e+00> : vector<16x128xf32>
    %263 = tpu.matmul %260, %262, %cst_194 {dimension_numbers = #tpu.dot_dimension_numbers<[1], [0], [0], [1], [0, 0, 1, 1], [], []>} : vector<16x128xbf16>, vector<128x128xbf16>, vector<16x128xf32> -> vector<16x128xf32>
    %264 = arith.addf %258, %263 : vector<16x128xf32>
    %c2_195 = arith.constant 2 : index
    %c0_196 = arith.constant 0 : index
    %265 = vector.load %arg32[%c2_195, %c0_196] : memref<18x128xf32, #tpu.memory_space<vmem>>, vector<16x128xf32>
    %266 = arith.truncf %265 : vector<16x128xf32> to vector<16x128xbf16>
    %c2_197 = arith.constant 2 : index
    %c0_198 = arith.constant 0 : index
    %c0_199 = arith.constant 0 : index
    %267 = vector.load %arg20[%c2_197, %c0_198, %c0_199] : memref<3x128x128xbf16, #tpu.memory_space<vmem>>, vector<1x128x128xbf16>
    %268 = vector.shape_cast %267 : vector<1x128x128xbf16> to vector<128x128xbf16>
    %cst_200 = arith.constant dense<0.000000e+00> : vector<16x128xf32>
    %269 = tpu.matmul %266, %268, %cst_200 {dimension_numbers = #tpu.dot_dimension_numbers<[1], [0], [0], [1], [0, 0, 1, 1], [], []>} : vector<16x128xbf16>, vector<128x128xbf16>, vector<16x128xf32> -> vector<16x128xf32>
    %270 = arith.addf %264, %269 : vector<16x128xf32>
    %c0_201 = arith.constant 0 : index
    %c0_202 = arith.constant 0 : index
    %271 = vector.load %arg21[%c0_201, %c0_202] : memref<1x128xf32, #tpu.memory_space<vmem>>, vector<1x128xf32>
    %272 = vector.broadcast %271 : vector<1x128xf32> to vector<16x128xf32>
    %273 = arith.addf %270, %272 : vector<16x128xf32>
    %274 = math.tanh %273 : vector<16x128xf32>
    %c1_203 = arith.constant 1 : index
    %c0_204 = arith.constant 0 : index
    %275 = vector.load %arg30[%c1_203, %c0_204] : memref<18x128xf32, #tpu.memory_space<vmem>>, vector<16x128xf32>
    tpu.vector_store %arg30[%c1_203, %c0_204], %274 {strides = array<i32>} : memref<18x128xf32, #tpu.memory_space<vmem>>, vector<16x128xf32>,
    %cst_205 = arith.constant 0.000000e+00 : f32
    %276 = vector.broadcast %cst_205 : f32 to vector<16x128xf32>
    %c0_206 = arith.constant 0 : index
    %c0_207 = arith.constant 0 : index
    %277 = vector.load %arg29[%c0_206, %c0_207] : memref<18x128xf32, #tpu.memory_space<vmem>>, vector<16x128xf32>
    %278 = arith.truncf %277 : vector<16x128xf32> to vector<16x128xbf16>
    %c0_208 = arith.constant 0 : index
    %c0_209 = arith.constant 0 : index
    %c0_210 = arith.constant 0 : index
    %279 = vector.load %arg22[%c0_208, %c0_209, %c0_210] : memref<9x128x128xbf16, #tpu.memory_space<vmem>>, vector<1x128x128xbf16>
    %280 = vector.shape_cast %279 : vector<1x128x128xbf16> to vector<128x128xbf16>
    %cst_211 = arith.constant dense<0.000000e+00> : vector<16x128xf32>
    %281 = tpu.matmul %278, %280, %cst_211 {dimension_numbers = #tpu.dot_dimension_numbers<[1], [0], [0], [1], [0, 0, 1, 1], [], []>} : vector<16x128xbf16>, vector<128x128xbf16>, vector<16x128xf32> -> vector<16x128xf32>
    %282 = arith.addf %276, %281 : vector<16x128xf32>
    %c0_212 = arith.constant 0 : index
    %c0_213 = arith.constant 0 : index
    %283 = vector.load %arg30[%c0_212, %c0_213] : memref<18x128xf32, #tpu.memory_space<vmem>>, vector<16x128xf32>
    %284 = arith.truncf %283 : vector<16x128xf32> to vector<16x128xbf16>
    %c1_214 = arith.constant 1 : index
    %c0_215 = arith.constant 0 : index
    %c0_216 = arith.constant 0 : index
    %285 = vector.load %arg22[%c1_214, %c0_215, %c0_216] : memref<9x128x128xbf16, #tpu.memory_space<vmem>>, vector<1x128x128xbf16>
    %286 = vector.shape_cast %285 : vector<1x128x128xbf16> to vector<128x128xbf16>
    %cst_217 = arith.constant dense<0.000000e+00> : vector<16x128xf32>
    %287 = tpu.matmul %284, %286, %cst_217 {dimension_numbers = #tpu.dot_dimension_numbers<[1], [0], [0], [1], [0, 0, 1, 1], [], []>} : vector<16x128xbf16>, vector<128x128xbf16>, vector<16x128xf32> -> vector<16x128xf32>
    %288 = arith.addf %282, %287 : vector<16x128xf32>
    %c0_218 = arith.constant 0 : index
    %c0_219 = arith.constant 0 : index
    %289 = vector.load %arg31[%c0_218, %c0_219] : memref<18x128xf32, #tpu.memory_space<vmem>>, vector<16x128xf32>
    %290 = arith.truncf %289 : vector<16x128xf32> to vector<16x128xbf16>
    %c2_220 = arith.constant 2 : index
    %c0_221 = arith.constant 0 : index
    %c0_222 = arith.constant 0 : index
    %291 = vector.load %arg22[%c2_220, %c0_221, %c0_222] : memref<9x128x128xbf16, #tpu.memory_space<vmem>>, vector<1x128x128xbf16>
    %292 = vector.shape_cast %291 : vector<1x128x128xbf16> to vector<128x128xbf16>
    %cst_223 = arith.constant dense<0.000000e+00> : vector<16x128xf32>
    %293 = tpu.matmul %290, %292, %cst_223 {dimension_numbers = #tpu.dot_dimension_numbers<[1], [0], [0], [1], [0, 0, 1, 1], [], []>} : vector<16x128xbf16>, vector<128x128xbf16>, vector<16x128xf32> -> vector<16x128xf32>
    %294 = arith.addf %288, %293 : vector<16x128xf32>
    %c1_224 = arith.constant 1 : index
    %c0_225 = arith.constant 0 : index
    %295 = vector.load %arg29[%c1_224, %c0_225] : memref<18x128xf32, #tpu.memory_space<vmem>>, vector<16x128xf32>
    %296 = arith.truncf %295 : vector<16x128xf32> to vector<16x128xbf16>
    %c3 = arith.constant 3 : index
    %c0_226 = arith.constant 0 : index
    %c0_227 = arith.constant 0 : index
    %297 = vector.load %arg22[%c3, %c0_226, %c0_227] : memref<9x128x128xbf16, #tpu.memory_space<vmem>>, vector<1x128x128xbf16>
    %298 = vector.shape_cast %297 : vector<1x128x128xbf16> to vector<128x128xbf16>
    %cst_228 = arith.constant dense<0.000000e+00> : vector<16x128xf32>
    %299 = tpu.matmul %296, %298, %cst_228 {dimension_numbers = #tpu.dot_dimension_numbers<[1], [0], [0], [1], [0, 0, 1, 1], [], []>} : vector<16x128xbf16>, vector<128x128xbf16>, vector<16x128xf32> -> vector<16x128xf32>
    %300 = arith.addf %294, %299 : vector<16x128xf32>
    %c1_229 = arith.constant 1 : index
    %c0_230 = arith.constant 0 : index
    %301 = vector.load %arg30[%c1_229, %c0_230] : memref<18x128xf32, #tpu.memory_space<vmem>>, vector<16x128xf32>
    %302 = arith.truncf %301 : vector<16x128xf32> to vector<16x128xbf16>
    %c4 = arith.constant 4 : index
    %c0_231 = arith.constant 0 : index
    %c0_232 = arith.constant 0 : index
    %303 = vector.load %arg22[%c4, %c0_231, %c0_232] : memref<9x128x128xbf16, #tpu.memory_space<vmem>>, vector<1x128x128xbf16>
    %304 = vector.shape_cast %303 : vector<1x128x128xbf16> to vector<128x128xbf16>
    %cst_233 = arith.constant dense<0.000000e+00> : vector<16x128xf32>
    %305 = tpu.matmul %302, %304, %cst_233 {dimension_numbers = #tpu.dot_dimension_numbers<[1], [0], [0], [1], [0, 0, 1, 1], [], []>} : vector<16x128xbf16>, vector<128x128xbf16>, vector<16x128xf32> -> vector<16x128xf32>
    %306 = arith.addf %300, %305 : vector<16x128xf32>
    %c1_234 = arith.constant 1 : index
    %c0_235 = arith.constant 0 : index
    %307 = vector.load %arg31[%c1_234, %c0_235] : memref<18x128xf32, #tpu.memory_space<vmem>>, vector<16x128xf32>
    %308 = arith.truncf %307 : vector<16x128xf32> to vector<16x128xbf16>
    %c5 = arith.constant 5 : index
    %c0_236 = arith.constant 0 : index
    %c0_237 = arith.constant 0 : index
    %309 = vector.load %arg22[%c5, %c0_236, %c0_237] : memref<9x128x128xbf16, #tpu.memory_space<vmem>>, vector<1x128x128xbf16>
    %310 = vector.shape_cast %309 : vector<1x128x128xbf16> to vector<128x128xbf16>
    %cst_238 = arith.constant dense<0.000000e+00> : vector<16x128xf32>
    %311 = tpu.matmul %308, %310, %cst_238 {dimension_numbers = #tpu.dot_dimension_numbers<[1], [0], [0], [1], [0, 0, 1, 1], [], []>} : vector<16x128xbf16>, vector<128x128xbf16>, vector<16x128xf32> -> vector<16x128xf32>
    %312 = arith.addf %306, %311 : vector<16x128xf32>
    %c2_239 = arith.constant 2 : index
    %c0_240 = arith.constant 0 : index
    %313 = vector.load %arg29[%c2_239, %c0_240] : memref<18x128xf32, #tpu.memory_space<vmem>>, vector<16x128xf32>
    %314 = arith.truncf %313 : vector<16x128xf32> to vector<16x128xbf16>
    %c6 = arith.constant 6 : index
    %c0_241 = arith.constant 0 : index
    %c0_242 = arith.constant 0 : index
    %315 = vector.load %arg22[%c6, %c0_241, %c0_242] : memref<9x128x128xbf16, #tpu.memory_space<vmem>>, vector<1x128x128xbf16>
    %316 = vector.shape_cast %315 : vector<1x128x128xbf16> to vector<128x128xbf16>
    %cst_243 = arith.constant dense<0.000000e+00> : vector<16x128xf32>
    %317 = tpu.matmul %314, %316, %cst_243 {dimension_numbers = #tpu.dot_dimension_numbers<[1], [0], [0], [1], [0, 0, 1, 1], [], []>} : vector<16x128xbf16>, vector<128x128xbf16>, vector<16x128xf32> -> vector<16x128xf32>
    %318 = arith.addf %312, %317 : vector<16x128xf32>
    %c2_244 = arith.constant 2 : index
    %c0_245 = arith.constant 0 : index
    %319 = vector.load %arg30[%c2_244, %c0_245] : memref<18x128xf32, #tpu.memory_space<vmem>>, vector<16x128xf32>
    %320 = arith.truncf %319 : vector<16x128xf32> to vector<16x128xbf16>
    %c7 = arith.constant 7 : index
    %c0_246 = arith.constant 0 : index
    %c0_247 = arith.constant 0 : index
    %321 = vector.load %arg22[%c7, %c0_246, %c0_247] : memref<9x128x128xbf16, #tpu.memory_space<vmem>>, vector<1x128x128xbf16>
    %322 = vector.shape_cast %321 : vector<1x128x128xbf16> to vector<128x128xbf16>
    %cst_248 = arith.constant dense<0.000000e+00> : vector<16x128xf32>
    %323 = tpu.matmul %320, %322, %cst_248 {dimension_numbers = #tpu.dot_dimension_numbers<[1], [0], [0], [1], [0, 0, 1, 1], [], []>} : vector<16x128xbf16>, vector<128x128xbf16>, vector<16x128xf32> -> vector<16x128xf32>
    %324 = arith.addf %318, %323 : vector<16x128xf32>
    %c2_249 = arith.constant 2 : index
    %c0_250 = arith.constant 0 : index
    %325 = vector.load %arg31[%c2_249, %c0_250] : memref<18x128xf32, #tpu.memory_space<vmem>>, vector<16x128xf32>
    %326 = arith.truncf %325 : vector<16x128xf32> to vector<16x128xbf16>
    %c8 = arith.constant 8 : index
    %c0_251 = arith.constant 0 : index
    %c0_252 = arith.constant 0 : index
    %327 = vector.load %arg22[%c8, %c0_251, %c0_252] : memref<9x128x128xbf16, #tpu.memory_space<vmem>>, vector<1x128x128xbf16>
    %328 = vector.shape_cast %327 : vector<1x128x128xbf16> to vector<128x128xbf16>
    %cst_253 = arith.constant dense<0.000000e+00> : vector<16x128xf32>
    %329 = tpu.matmul %326, %328, %cst_253 {dimension_numbers = #tpu.dot_dimension_numbers<[1], [0], [0], [1], [0, 0, 1, 1], [], []>} : vector<16x128xbf16>, vector<128x128xbf16>, vector<16x128xf32> -> vector<16x128xf32>
    %330 = arith.addf %324, %329 : vector<16x128xf32>
    %c0_254 = arith.constant 0 : index
    %c0_255 = arith.constant 0 : index
    %331 = vector.load %arg23[%c0_254, %c0_255] : memref<1x128xf32, #tpu.memory_space<vmem>>, vector<1x128xf32>
    %332 = vector.broadcast %331 : vector<1x128xf32> to vector<16x128xf32>
    %333 = arith.addf %330, %332 : vector<16x128xf32>
    %cst_256 = arith.constant dense<0.000000e+00> : vector<128xf32>
    %334 = vector.multi_reduction <add>, %333, %cst_256 [0] : vector<16x128xf32> to vector<128xf32>
    %335 = vector.shape_cast %334 : vector<128xf32> to vector<1x128xf32>
    %336 = vector.shape_cast %335 : vector<1x128xf32> to vector<1x128xf32>
    %337 = vector.broadcast %336 : vector<1x128xf32> to vector<8x128xf32>
    %c0_257 = arith.constant 0 : index
    %c0_258 = arith.constant 0 : index
    %338 = vector.load %arg3[%c0_257, %c0_258] : memref<128x128xf32, #tpu.memory_space<vmem>>, vector<128x128xf32>
    %cst_259 = arith.constant dense<0.000000e+00> : vector<8x128xf32>
    %339 = tpu.matmul %337, %338, %cst_259 {dimension_numbers = #tpu.dot_dimension_numbers<[1], [0], [0], [1], [0, 0, 1, 1], [], []>} : vector<8x128xf32>, vector<128x128xf32>, vector<8x128xf32> -> vector<8x128xf32>
    %340 = vector.extract_strided_slice %339 {offsets = [0, 0], sizes = [1, 128], strides = [1, 1]} : vector<8x128xf32> to vector<1x128xf32>
    %cst_260 = arith.constant 3.906250e-03 : f32
    %341 = vector.broadcast %cst_260 : f32 to vector<1x128xf32>
    %342 = arith.mulf %340, %341 : vector<1x128xf32>
    %343 = vector.broadcast %342 : vector<1x128xf32> to vector<16x128xf32>
    %344 = arith.subf %333, %343 : vector<16x128xf32>
    %345 = arith.mulf %344, %344 : vector<16x128xf32>
    %cst_261 = arith.constant dense<0.000000e+00> : vector<128xf32>
    %346 = vector.multi_reduction <add>, %345, %cst_261 [0] : vector<16x128xf32> to vector<128xf32>
    %347 = vector.shape_cast %346 : vector<128xf32> to vector<1x128xf32>
    %348 = vector.shape_cast %347 : vector<1x128xf32> to vector<1x128xf32>
    %349 = vector.broadcast %348 : vector<1x128xf32> to vector<8x128xf32>
    %c0_262 = arith.constant 0 : index
    %c0_263 = arith.constant 0 : index
    %350 = vector.load %arg3[%c0_262, %c0_263] : memref<128x128xf32, #tpu.memory_space<vmem>>, vector<128x128xf32>
    %cst_264 = arith.constant dense<0.000000e+00> : vector<8x128xf32>
    %351 = tpu.matmul %349, %350, %cst_264 {dimension_numbers = #tpu.dot_dimension_numbers<[1], [0], [0], [1], [0, 0, 1, 1], [], []>} : vector<8x128xf32>, vector<128x128xf32>, vector<8x128xf32> -> vector<8x128xf32>
    %352 = vector.extract_strided_slice %351 {offsets = [0, 0], sizes = [1, 128], strides = [1, 1]} : vector<8x128xf32> to vector<1x128xf32>
    %cst_265 = arith.constant 3.906250e-03 : f32
    %353 = vector.broadcast %cst_265 : f32 to vector<1x128xf32>
    %354 = arith.mulf %352, %353 : vector<1x128xf32>
    %cst_266 = arith.constant 0.000000e+00 : f32
    %355 = vector.broadcast %cst_266 : f32 to vector<1x128xf32>
    %356 = arith.maximumf %354, %355 : vector<1x128xf32>
    %cst_267 = arith.constant 9.99999974E-6 : f32
    %357 = vector.broadcast %cst_267 : f32 to vector<1x128xf32>
    %358 = arith.addf %356, %357 : vector<1x128xf32>
    %359 = math.rsqrt %358 : vector<1x128xf32>
    %c0_268 = arith.constant 0 : index
    %c0_269 = arith.constant 0 : index
    %360 = vector.load %arg24[%c0_268, %c0_269] : memref<1x128xf32, #tpu.memory_space<vmem>>, vector<1x128xf32>
    %361 = arith.mulf %359, %360 : vector<1x128xf32>
    %362 = vector.broadcast %361 : vector<1x128xf32> to vector<16x128xf32>
    %363 = arith.mulf %344, %362 : vector<16x128xf32>
    %c0_270 = arith.constant 0 : index
    %c0_271 = arith.constant 0 : index
    %364 = vector.load %arg25[%c0_270, %c0_271] : memref<1x128xf32, #tpu.memory_space<vmem>>, vector<1x128xf32>
    %365 = vector.broadcast %364 : vector<1x128xf32> to vector<16x128xf32>
    %366 = arith.addf %363, %365 : vector<16x128xf32>
    %cst_272 = arith.constant 2.000000e-01 : f32
    %367 = vector.broadcast %cst_272 : f32 to vector<16x128xf32>
    %368 = arith.mulf %367, %366 : vector<16x128xf32>
    %369 = arith.maximumf %366, %368 : vector<16x128xf32>
    %c1_273 = arith.constant 1 : index
    %c0_274 = arith.constant 0 : index
    %370 = vector.load %arg32[%c1_273, %c0_274] : memref<18x128xf32, #tpu.memory_space<vmem>>, vector<16x128xf32>
    tpu.vector_store %arg32[%c1_273, %c0_274], %369 {strides = array<i32>} : memref<18x128xf32, #tpu.memory_space<vmem>>, vector<16x128xf32>,
    %cst_275 = arith.constant 0.000000e+00 : f32
    %371 = vector.broadcast %cst_275 : f32 to vector<16x128xf32>
    %c0_276 = arith.constant 0 : index
    %c0_277 = arith.constant 0 : index
    %372 = vector.load %arg32[%c0_276, %c0_277] : memref<18x128xf32, #tpu.memory_space<vmem>>, vector<16x128xf32>
    %373 = arith.truncf %372 : vector<16x128xf32> to vector<16x128xbf16>
    %c0_278 = arith.constant 0 : index
    %c0_279 = arith.constant 0 : index
    %c0_280 = arith.constant 0 : index
    %374 = vector.load %arg26[%c0_278, %c0_279, %c0_280] : memref<3x128x128xbf16, #tpu.memory_space<vmem>>, vector<1x128x128xbf16>
    %375 = vector.shape_cast %374 : vector<1x128x128xbf16> to vector<128x128xbf16>
    %cst_281 = arith.constant dense<0.000000e+00> : vector<16x128xf32>
    %376 = tpu.matmul %373, %375, %cst_281 {dimension_numbers = #tpu.dot_dimension_numbers<[1], [0], [0], [1], [0, 0, 1, 1], [], []>} : vector<16x128xbf16>, vector<128x128xbf16>, vector<16x128xf32> -> vector<16x128xf32>
    %377 = arith.addf %371, %376 : vector<16x128xf32>
    %c1_282 = arith.constant 1 : index
    %c0_283 = arith.constant 0 : index
    %378 = vector.load %arg32[%c1_282, %c0_283] : memref<18x128xf32, #tpu.memory_space<vmem>>, vector<16x128xf32>
    %379 = arith.truncf %378 : vector<16x128xf32> to vector<16x128xbf16>
    %c1_284 = arith.constant 1 : index
    %c0_285 = arith.constant 0 : index
    %c0_286 = arith.constant 0 : index
    %380 = vector.load %arg26[%c1_284, %c0_285, %c0_286] : memref<3x128x128xbf16, #tpu.memory_space<vmem>>, vector<1x128x128xbf16>
    %381 = vector.shape_cast %380 : vector<1x128x128xbf16> to vector<128x128xbf16>
    %cst_287 = arith.constant dense<0.000000e+00> : vector<16x128xf32>
    %382 = tpu.matmul %379, %381, %cst_287 {dimension_numbers = #tpu.dot_dimension_numbers<[1], [0], [0], [1], [0, 0, 1, 1], [], []>} : vector<16x128xbf16>, vector<128x128xbf16>, vector<16x128xf32> -> vector<16x128xf32>
    %383 = arith.addf %377, %382 : vector<16x128xf32>
    %c2_288 = arith.constant 2 : index
    %c0_289 = arith.constant 0 : index
    %384 = vector.load %arg32[%c2_288, %c0_289] : memref<18x128xf32, #tpu.memory_space<vmem>>, vector<16x128xf32>
    %385 = arith.truncf %384 : vector<16x128xf32> to vector<16x128xbf16>
    %c2_290 = arith.constant 2 : index
    %c0_291 = arith.constant 0 : index
    %c0_292 = arith.constant 0 : index
    %386 = vector.load %arg26[%c2_290, %c0_291, %c0_292] : memref<3x128x128xbf16, #tpu.memory_space<vmem>>, vector<1x128x128xbf16>
    %387 = vector.shape_cast %386 : vector<1x128x128xbf16> to vector<128x128xbf16>
    %cst_293 = arith.constant dense<0.000000e+00> : vector<16x128xf32>
    %388 = tpu.matmul %385, %387, %cst_293 {dimension_numbers = #tpu.dot_dimension_numbers<[1], [0], [0], [1], [0, 0, 1, 1], [], []>} : vector<16x128xbf16>, vector<128x128xbf16>, vector<16x128xf32> -> vector<16x128xf32>
    %389 = arith.addf %383, %388 : vector<16x128xf32>
    %c0_294 = arith.constant 0 : index
    %c0_295 = arith.constant 0 : index
    %390 = vector.load %arg27[%c0_294, %c0_295] : memref<1x128xf32, #tpu.memory_space<vmem>>, vector<1x128xf32>
    %391 = vector.broadcast %390 : vector<1x128xf32> to vector<16x128xf32>
    %392 = arith.addf %389, %391 : vector<16x128xf32>
    %393 = arith.negf %392 : vector<16x128xf32>
    %394 = math.exp %393 : vector<16x128xf32>
    %cst_296 = arith.constant 1.000000e+00 : f32
    %395 = vector.broadcast %cst_296 : f32 to vector<16x128xf32>
    %396 = arith.addf %395, %394 : vector<16x128xf32>
    %397 = arith.divf %395, %396 : vector<16x128xf32>
    %398 = arith.mulf %397, %13 : vector<16x128xf32>
    %cst_297 = arith.constant 1.000000e+00 : f32
    %399 = vector.broadcast %cst_297 : f32 to vector<16x128xf32>
    %400 = arith.subf %399, %397 : vector<16x128xf32>
    %401 = arith.mulf %400, %274 : vector<16x128xf32>
    %402 = arith.addf %398, %401 : vector<16x128xf32>
    %c0_298 = arith.constant 0 : index
    %c0_299 = arith.constant 0 : index
    %403 = vector.load %arg28[%c0_298, %c0_299] : memref<16x128xf32, #tpu.memory_space<vmem>>, vector<16x128xf32>
    tpu.vector_store %arg28[%c0_298, %c0_299], %402 {strides = array<i32>} : memref<16x128xf32, #tpu.memory_space<vmem>>, vector<16x128xf32>,
    return
  }
}

</mosaic_0001>

<llo_original>
// kernel: tile.8
$region0: #{tile.8}
  #allocation0 [shape = 's32[1]{0}', space=sflag, size = 0x4, scoped, tag = 'scoped memory for tile.8']
  %s0 = inlined_call_operand.vmem [shape: f32[8], index: 0, kind: input, shape index: {}]
  %s1 = inlined_call_operand.vmem [shape: f32[16,8], index: 1, kind: output, shape index: {}]
  // Predicated region
  $region2: #{tile.8} parent=0 // pred_check
    _
  $region3: #{tile.8} parent=0 // pred_check_branch
    %3 = sbr.rel (0) target = $region5
  $region4: #{tile.8} parent=0 // pred_region
    _
  $region5: #{tile.8} parent=0 // pred_fallthru
    _
  %v4 = vld [vmem:[%s0] ss:$0 sm:$0xff]
  %5 = vst [vmem:[%s1] sm:$0xff] %v4
  %s6 = scalar_lea.vmem %s1, 8
  %7 = vst [vmem:[%s6] sm:$0xff] %v4

// kernel: tile.9
$region0: #{tile.9}
  %s0 = inlined_call_operand.vmem [shape: f32[16,8], index: 0, kind: input, shape index: {}]
  %s1 = inlined_call_operand.vmem [shape: f32[1,128], index: 1, kind: output, shape index: {}]
  $region1: #{tile.9} parent=0
    #allocation0 [shape = 'u8[4096]{0}', space=vmem, size = 0x1000, scoped, tag = 'scoped mem for output reshape']
    %v2 = vld [vmem:[%s0] sm:$0x1]
    %vm3 = vcmask 64512
    %4 = vst.msk [vmem:[#allocation0] sm:$0x1] %vm3, %v2
    %s5 = scalar_lea.vmem %s0, 15
    %v6 = vld [vmem:[%s5] sm:$0x1]
    %7 = vrot.lane.b32.xlu0 %v6, 120
    %v8 = vpop.permute.xlu0 %7
    %vm9 = vcmask 1048512
    %10 = vst.msk [vmem:[#allocation0] sm:$0x1] %vm9, %v8
    %s11 = scalar_lea.vmem %s0, 14
    %v12 = vld [vmem:[%s11] sm:$0x1]
    %13 = vrot.lane.b32.xlu0 %v12, 112
    %v14 = vpop.permute.xlu0 %13
    %vm15 = vcmask 982912
    %16 = vst.msk [vmem:[#allocation0] sm:$0x1] %vm15, %v14
    %s17 = scalar_lea.vmem %s0, 13
    %v18 = vld [vmem:[%s17] sm:$0x1]
    %19 = vrot.lane.b32.xlu0 %v18, 104
    %v20 = vpop.permute.xlu0 %19
    %vm21 = vcmask 917312
    %22 = vst.msk [vmem:[#allocation0] sm:$0x1] %vm21, %v20
    %s23 = scalar_lea.vmem %s0, 12
    %v24 = vld [vmem:[%s23] sm:$0x1]
    %25 = vrot.lane.b32.xlu0 %v24, 96
    %v26 = vpop.permute.xlu0 %25
    %vm27 = vcmask 851712
    %28 = vst.msk [vmem:[#allocation0] sm:$0x1] %vm27, %v26
    %s29 = scalar_lea.vmem %s0, 11
    %v30 = vld [vmem:[%s29] sm:$0x1]
    %31 = vrot.lane.b32.xlu0 %v30, 88
    %v32 = vpop.permute.xlu0 %31
    %vm33 = vcmask 786112
    %34 = vst.msk [vmem:[#allocation0] sm:$0x1] %vm33, %v32
    %s35 = scalar_lea.vmem %s0, 10
    %v36 = vld [vmem:[%s35] sm:$0x1]
    %37 = vrot.lane.b32.xlu0 %v36, 80
    %v38 = vpop.permute.xlu0 %37
    %vm39 = vcmask 720512
    %40 = vst.msk [vmem:[#allocation0] sm:$0x1] %vm39, %v38
    %s41 = scalar_lea.vmem %s0, 9
    %v42 = vld [vmem:[%s41] sm:$0x1]
    %43 = vrot.lane.b32.xlu0 %v42, 72
    %v44 = vpop.permute.xlu0 %43
    %vm45 = vcmask 654912
    %46 = vst.msk [vmem:[#allocation0] sm:$0x1] %vm45, %v44
    %s47 = scalar_lea.vmem %s0, 8
    %v48 = vld [vmem:[%s47] sm:$0x1]
    %49 = vrot.lane.b32.xlu0 %v48, 64
    %v50 = vpop.permute.xlu0 %49
    %vm51 = vcmask 589312
    %52 = vst.msk [vmem:[#allocation0] sm:$0x1] %vm51, %v50
    %s53 = scalar_lea.vmem %s0, 7
    %v54 = vld [vmem:[%s53] sm:$0x1]
    %55 = vrot.lane.b32.xlu0 %v54, 56
    %v56 = vpop.permute.xlu0 %55
    %vm57 = vcmask 523712
    %58 = vst.msk [vmem:[#allocation0] sm:$0x1] %vm57, %v56
    %s59 = scalar_lea.vmem %s0, 6
    %v60 = vld [vmem:[%s59] sm:$0x1]
    %61 = vrot.lane.b32.xlu0 %v60, 48
    %v62 = vpop.permute.xlu0 %61
    %vm63 = vcmask 458112
    %64 = vst.msk [vmem:[#allocation0] sm:$0x1] %vm63, %v62
    %s65 = scalar_lea.vmem %s0, 5
    %v66 = vld [vmem:[%s65] sm:$0x1]
    %67 = vrot.lane.b32.xlu0 %v66, 40
    %v68 = vpop.permute.xlu0 %67
    %vm69 = vcmask 392512
    %70 = vst.msk [vmem:[#allocation0] sm:$0x1] %vm69, %v68
    %s71 = scalar_lea.vmem %s0, 4
    %v72 = vld [vmem:[%s71] sm:$0x1]
    %73 = vrot.lane.b32.xlu0 %v72, 32
    %v74 = vpop.permute.xlu0 %73
    %vm75 = vcmask 326912
    %76 = vst.msk [vmem:[#allocation0] sm:$0x1] %vm75, %v74
    %s77 = scalar_lea.vmem %s0, 3
    %v78 = vld [vmem:[%s77] sm:$0x1]
    %79 = vrot.lane.b32.xlu0 %v78, 24
    %v80 = vpop.permute.xlu0 %79
    %vm81 = vcmask 261312
    %82 = vst.msk [vmem:[#allocation0] sm:$0x1] %vm81, %v80
    %s83 = scalar_lea.vmem %s0, 2
    %v84 = vld [vmem:[%s83] sm:$0x1]
    %85 = vrot.lane.b32.xlu0 %v84, 16
    %v86 = vpop.permute.xlu0 %85
    %vm87 = vcmask 195712
    %88 = vst.msk [vmem:[#allocation0] sm:$0x1] %vm87, %v86
    %s89 = scalar_lea.vmem %s0, 1
    %v90 = vld [vmem:[%s89] sm:$0x1]
    %91 = vrot.lane.b32.xlu0 %v90, 8
    %v92 = vpop.permute.xlu0 %91
    %vm93 = vcmask 130112
    %94 = vst.msk [vmem:[#allocation0] sm:$0x1] %vm93, %v92
    %s96 = ssub.s32 2, 1
    %v97 = vld [vmem:[#allocation0] sm:%s96]
    %s99 = ssub.s32 2, 1
    %100 = vst [vmem:[%s1] sm:%s99] %v97

// kernel: forward.1
$region0: #{forward.1}
  #allocation0 [shape = 'u32[]', space=smem, size = 0x4, offset = 0x4, fixed_abs, tag = 'smem constant byte address 0x4 - core index']
  #allocation1 [shape = 'u32[72,128]{1,0:T(1,128)}', space=vmem, size = 0x9000, scoped, tag = 'internal scratch']
  #allocation2 [shape = 'f32[18,128]{1,0:T(8,128)}', space=vmem, size = 0x3000, scoped, tag = 'scratch operand']
  #allocation3 [shape = 'f32[18,128]{1,0:T(8,128)}', space=vmem, size = 0x3000, scoped, tag = 'scratch operand']
  #allocation4 [shape = 'f32[18,128]{1,0:T(8,128)}', space=vmem, size = 0x3000, scoped, tag = 'scratch operand']
  #allocation5 [shape = 'f32[18,128]{1,0:T(8,128)}', space=vmem, size = 0x3000, scoped, tag = 'scratch operand']
  %s0 = inlined_call_operand.vmem [shape: f32[16,128], index: 0, kind: input, shape index: {}]
  %s1 = inlined_call_operand.vmem [shape: f32[16,128], index: 1, kind: input, shape index: {}]
  %s2 = inlined_call_operand.vmem [shape: f32[1,128], index: 2, kind: input, shape index: {}]
  %s3 = inlined_call_operand.hbm [shape: f32[128,128], index: 3, kind: input, shape index: {}]
  %s4 = inlined_call_operand.vmem [shape: bf16[3,128,128], index: 4, kind: input, shape index: {}]
  %s5 = inlined_call_operand.vmem [shape: f32[1,128], index: 5, kind: input, shape index: {}]
  %s6 = inlined_call_operand.vmem [shape: f32[1,128], index: 6, kind: input, shape index: {}]
  %s7 = inlined_call_operand.vmem [shape: f32[1,128], index: 7, kind: input, shape index: {}]
  %s8 = inlined_call_operand.vmem [shape: bf16[3,128,128], index: 8, kind: input, shape index: {}]
  %s9 = inlined_call_operand.vmem [shape: f32[1,128], index: 9, kind: input, shape index: {}]
  %s10 = inlined_call_operand.vmem [shape: f32[1,128], index: 10, kind: input, shape index: {}]
  %s11 = inlined_call_operand.vmem [shape: f32[1,128], index: 11, kind: input, shape index: {}]
  %s12 = inlined_call_operand.vmem [shape: bf16[3,128,128], index: 12, kind: input, shape index: {}]
  %s13 = inlined_call_operand.vmem [shape: f32[1,128], index: 13, kind: input, shape index: {}]
  %s14 = inlined_call_operand.vmem [shape: f32[1,128], index: 14, kind: input, shape index: {}]
  %s15 = inlined_call_operand.vmem [shape: f32[1,128], index: 15, kind: input, shape index: {}]
  %s16 = inlined_call_operand.vmem [shape: bf16[3,128,128], index: 16, kind: input, shape index: {}]
  %s17 = inlined_call_operand.vmem [shape: f32[1,128], index: 17, kind: input, shape index: {}]
  %s18 = inlined_call_operand.vmem [shape: f32[1,128], index: 18, kind: input, shape index: {}]
  %s19 = inlined_call_operand.vmem [shape: f32[1,128], index: 19, kind: input, shape index: {}]
  %s20 = inlined_call_operand.hbm [shape: bf16[3,128,128], index: 20, kind: input, shape index: {}]
  %s21 = inlined_call_operand.vmem [shape: f32[1,128], index: 21, kind: input, shape index: {}]
  %s22 = inlined_call_operand.hbm [shape: bf16[9,128,128], index: 22, kind: input, shape index: {}]
  %s23 = inlined_call_operand.vmem [shape: f32[1,128], index: 23, kind: input, shape index: {}]
  %s24 = inlined_call_operand.vmem [shape: f32[1,128], index: 24, kind: input, shape index: {}]
  %s25 = inlined_call_operand.vmem [shape: f32[1,128], index: 25, kind: input, shape index: {}]
  %s26 = inlined_call_operand.hbm [shape: bf16[3,128,128], index: 26, kind: input, shape index: {}]
  %s27 = inlined_call_operand.vmem [shape: f32[1,128], index: 27, kind: input, shape index: {}]
  %s28 = inlined_call_operand.vmem [shape: f32[16,128], index: 28, kind: output, shape index: {}]
  %s29 = sld [smem:[#allocation0]]
  $region138: #{forward.1} parent=0
    _
  %s31 = ssub.s32 1, %s29
  %s32 = scalar_select 0, %s31, %s29
  $region1: #{forward.1} parent=0
    #allocation6 [shape = 'u8[65536]{0}', space=vmem, size = 0x10000, scoped, tag = 'input window, operand 3, single buffered']
    #allocation7 [shape = 's32[1]{0}', space=sflag, size = 0x4, scoped, tag = 'scoped memory for forward.1']
    #allocation8 [shape = 'u8[98304]{0}', space=vmem, size = 0x18000, scoped, tag = 'input window, operand 20, single buffered']
    #allocation9 [shape = 's32[1]{0}', space=sflag, size = 0x4, scoped, tag = 'scoped memory for forward.1']
    #allocation10 [shape = 'u8[294912]{0}', space=vmem, size = 0x48000, scoped, tag = 'input window, operand 22, single buffered']
    #allocation11 [shape = 'u8[98304]{0}', space=vmem, size = 0x18000, scoped, tag = 'input window, operand 26, single buffered']
    #allocation12 [shape = 's32[1]{0}', space=sflag, size = 0x4, scoped, tag = 'scoped memory for forward.1']
    %33 = vsyncpa [#allocation7], 0
    %34 = vsyncpa [#allocation9], 0
    %35 = vsyncpa [#allocation12], 0
    // Predicated region
    $region2: #{forward.1} parent=1 // pred_check
      _
    $region3: #{forward.1} parent=1 // pred_check_branch
      %37 = sbr.rel (0) target = $region5
    $region4: #{forward.1} parent=1 // pred_region
      _
    $region5: #{forward.1} parent=1 // pred_fallthru
      _
    // Predicated region
    $region6: #{forward.1} parent=1 // pred_check
      _
    $region7: #{forward.1} parent=1 // pred_check_branch
      %39 = sbr.rel (0) target = $region9
    $region8: #{forward.1} parent=1 // pred_region
      _
    $region9: #{forward.1} parent=1 // pred_fallthru
      _
    // Predicated region
    $region10: #{forward.1} parent=1 // pred_check
      _
    $region11: #{forward.1} parent=1 // pred_check_branch
      %41 = sbr.rel (0) target = $region13
    $region12: #{forward.1} parent=1 // pred_region
      _
    $region13: #{forward.1} parent=1 // pred_fallthru
      _
    // Predicated region
    $region14: #{forward.1} parent=1 // pred_check
      _
    $region15: #{forward.1} parent=1 // pred_check_branch
      %43 = sbr.rel (0) target = $region17
    $region16: #{forward.1} parent=1 // pred_region
      %45 = vsyncadd [#allocation7], 0
      %s46 = sshll.u32 %s3, 4
      %s47 = int_to_ptr.hbm [resolvable:$true] %s46
      %s48 = sshll.u32 [#allocation6], 4
      %s49 = int_to_ptr.vmem [resolvable:$true] %s48
      %54 = dma.hbm_to_vmem [thread:$0]  %s47, 2048, %s49, [#allocation7], 128, 128, 8
    $region17: #{forward.1} parent=1 // pred_fallthru
      _
    // Predicated region
    $region18: #{forward.1} parent=1 // pred_check
      _
    $region19: #{forward.1} parent=1 // pred_check_branch
      %56 = sbr.rel (0) target = $region21
    $region20: #{forward.1} parent=1 // pred_region
      _
    $region21: #{forward.1} parent=1 // pred_fallthru
      _
    // Predicated region
    $region22: #{forward.1} parent=1 // pred_check
      _
    $region23: #{forward.1} parent=1 // pred_check_branch
      %58 = sbr.rel (0) target = $region25
    $region24: #{forward.1} parent=1 // pred_region
      _
    $region25: #{forward.1} parent=1 // pred_fallthru
      _
    // Predicated region
    $region26: #{forward.1} parent=1 // pred_check
      _
    $region27: #{forward.1} parent=1 // pred_check_branch
      %60 = sbr.rel (0) target = $region29
    $region28: #{forward.1} parent=1 // pred_region
      _
    $region29: #{forward.1} parent=1 // pred_fallthru
      _
    // Predicated region
    $region30: #{forward.1} parent=1 // pred_check
      _
    $region31: #{forward.1} parent=1 // pred_check_branch
      %62 = sbr.rel (0) target = $region33
    $region32: #{forward.1} parent=1 // pred_region
      _
    $region33: #{forward.1} parent=1 // pred_fallthru
      _
    // Predicated region
    $region34: #{forward.1} parent=1 // pred_check
      _
    $region35: #{forward.1} parent=1 // pred_check_branch
      %64 = sbr.rel (0) target = $region37
    $region36: #{forward.1} parent=1 // pred_region
      _
    $region37: #{forward.1} parent=1 // pred_fallthru
      _
    // Predicated region
    $region38: #{forward.1} parent=1 // pred_check
      _
    $region39: #{forward.1} parent=1 // pred_check_branch
      %66 = sbr.rel (0) target = $region41
    $region40: #{forward.1} parent=1 // pred_region
      _
    $region41: #{forward.1} parent=1 // pred_fallthru
      _
    // Predicated region
    $region42: #{forward.1} parent=1 // pred_check
      _
    $region43: #{forward.1} parent=1 // pred_check_branch
      %68 = sbr.rel (0) target = $region45
    $region44: #{forward.1} parent=1 // pred_region
      _
    $region45: #{forward.1} parent=1 // pred_fallthru
      _
    // Predicated region
    $region46: #{forward.1} parent=1 // pred_check
      _
    $region47: #{forward.1} parent=1 // pred_check_branch
      %70 = sbr.rel (0) target = $region49
    $region48: #{forward.1} parent=1 // pred_region
      _
    $region49: #{forward.1} parent=1 // pred_fallthru
      _
    // Predicated region
    $region50: #{forward.1} parent=1 // pred_check
      _
    $region51: #{forward.1} parent=1 // pred_check_branch
      %72 = sbr.rel (0) target = $region53
    $region52: #{forward.1} parent=1 // pred_region
      _
    $region53: #{forward.1} parent=1 // pred_fallthru
      _
    // Predicated region
    $region54: #{forward.1} parent=1 // pred_check
      _
    $region55: #{forward.1} parent=1 // pred_check_branch
      %74 = sbr.rel (0) target = $region57
    $region56: #{forward.1} parent=1 // pred_region
      _
    $region57: #{forward.1} parent=1 // pred_fallthru
      _
    // Predicated region
    $region58: #{forward.1} parent=1 // pred_check
      _
    $region59: #{forward.1} parent=1 // pred_check_branch
      %76 = sbr.rel (0) target = $region61
    $region60: #{forward.1} parent=1 // pred_region
      _
    $region61: #{forward.1} parent=1 // pred_fallthru
      _
    // Predicated region
    $region62: #{forward.1} parent=1 // pred_check
      _
    $region63: #{forward.1} parent=1 // pred_check_branch
      %78 = sbr.rel (0) target = $region65
    $region64: #{forward.1} parent=1 // pred_region
      _
    $region65: #{forward.1} parent=1 // pred_fallthru
      _
    // Predicated region
    $region66: #{forward.1} parent=1 // pred_check
      _
    $region67: #{forward.1} parent=1 // pred_check_branch
      %80 = sbr.rel (0) target = $region69
    $region68: #{forward.1} parent=1 // pred_region
      _
    $region69: #{forward.1} parent=1 // pred_fallthru
      _
    // Predicated region
    $region70: #{forward.1} parent=1 // pred_check
      _
    $region71: #{forward.1} parent=1 // pred_check_branch
      %82 = sbr.rel (0) target = $region73
    $region72: #{forward.1} parent=1 // pred_region
      _
    $region73: #{forward.1} parent=1 // pred_fallthru
      _
    // Predicated region
    $region74: #{forward.1} parent=1 // pred_check
      _
    $region75: #{forward.1} parent=1 // pred_check_branch
      %84 = sbr.rel (0) target = $region77
    $region76: #{forward.1} parent=1 // pred_region
      _
    $region77: #{forward.1} parent=1 // pred_fallthru
      _
    // Predicated region
    $region78: #{forward.1} parent=1 // pred_check
      _
    $region79: #{forward.1} parent=1 // pred_check_branch
      %86 = sbr.rel (0) target = $region81
    $region80: #{forward.1} parent=1 // pred_region
      _
    $region81: #{forward.1} parent=1 // pred_fallthru
      _
    // Predicated region
    $region82: #{forward.1} parent=1 // pred_check
      _
    $region83: #{forward.1} parent=1 // pred_check_branch
      %88 = sbr.rel (0) target = $region85
    $region84: #{forward.1} parent=1 // pred_region
      %90 = vsyncadd [#allocation9], 0
      %s91 = sshll.u32 %s20, 4
      %s92 = int_to_ptr.hbm [resolvable:$true] %s91
      %s93 = sshll.u32 [#allocation8], 4
      %s94 = int_to_ptr.vmem [resolvable:$true] %s93
      %99 = dma.hbm_to_vmem [thread:$0]  %s92, 3072, %s94, [#allocation9], 64, 64, 4
    $region85: #{forward.1} parent=1 // pred_fallthru
      _
    // Predicated region
    $region86: #{forward.1} parent=1 // pred_check
      _
    $region87: #{forward.1} parent=1 // pred_check_branch
      %101 = sbr.rel (0) target = $region89
    $region88: #{forward.1} parent=1 // pred_region
      _
    $region89: #{forward.1} parent=1 // pred_fallthru
      _
    // Predicated region
    $region90: #{forward.1} parent=1 // pred_check
      _
    $region91: #{forward.1} parent=1 // pred_check_branch
      %103 = sbr.rel (0) target = $region93
    $region92: #{forward.1} parent=1 // pred_region
      %105 = vsyncadd [#allocation9], 0
      %s106 = sshll.u32 %s22, 4
      %s107 = int_to_ptr.hbm [resolvable:$true] %s106
      %s108 = sshll.u32 [#allocation10], 4
      %s109 = int_to_ptr.vmem [resolvable:$true] %s108
      %114 = dma.hbm_to_vmem [thread:$0]  %s107, 9216, %s109, [#allocation9], 64, 64, 4
    $region93: #{forward.1} parent=1 // pred_fallthru
      _
    // Predicated region
    $region94: #{forward.1} parent=1 // pred_check
      _
    $region95: #{forward.1} parent=1 // pred_check_branch
      %116 = sbr.rel (0) target = $region97
    $region96: #{forward.1} parent=1 // pred_region
      _
    $region97: #{forward.1} parent=1 // pred_fallthru
      _
    // Predicated region
    $region98: #{forward.1} parent=1 // pred_check
      _
    $region99: #{forward.1} parent=1 // pred_check_branch
      %118 = sbr.rel (0) target = $region101
    $region100: #{forward.1} parent=1 // pred_region
      _
    $region101: #{forward.1} parent=1 // pred_fallthru
      _
    // Predicated region
    $region102: #{forward.1} parent=1 // pred_check
      _
    $region103: #{forward.1} parent=1 // pred_check_branch
      %120 = sbr.rel (0) target = $region105
    $region104: #{forward.1} parent=1 // pred_region
      _
    $region105: #{forward.1} parent=1 // pred_fallthru
      _
    // Predicated region
    $region106: #{forward.1} parent=1 // pred_check
      _
    $region107: #{forward.1} parent=1 // pred_check_branch
      %122 = sbr.rel (0) target = $region109
    $region108: #{forward.1} parent=1 // pred_region
      %124 = vsyncadd [#allocation12], 0
      %s125 = sshll.u32 %s26, 4
      %s126 = int_to_ptr.hbm [resolvable:$true] %s125
      %s127 = sshll.u32 [#allocation11], 4
      %s128 = int_to_ptr.vmem [resolvable:$true] %s127
      %133 = dma.hbm_to_vmem [thread:$0]  %s126, 3072, %s128, [#allocation12], 64, 64, 4
    $region109: #{forward.1} parent=1 // pred_fallthru
      _
    // Predicated region
    $region110: #{forward.1} parent=1 // pred_check
      _
    $region111: #{forward.1} parent=1 // pred_check_branch
      %135 = sbr.rel (0) target = $region113
    $region112: #{forward.1} parent=1 // pred_region
      _
    $region113: #{forward.1} parent=1 // pred_fallthru
      _
    // Predicated region
    $region114: #{forward.1} parent=1 // pred_check
      _
    $region115: #{forward.1} parent=1 // pred_check_branch
      %137 = sbr.rel (0) target = $region117
    $region116: #{forward.1} parent=1 // pred_region
      %139 = dma.done [#allocation7], 2048
    $region117: #{forward.1} parent=1 // pred_fallthru
      _
    // Predicated region
    $region118: #{forward.1} parent=1 // pred_check
      _
    $region119: #{forward.1} parent=1 // pred_check_branch
      %141 = sbr.rel (0) target = $region121
    $region120: #{forward.1} parent=1 // pred_region
      %143 = dma.done [#allocation9], 3072
    $region121: #{forward.1} parent=1 // pred_fallthru
      _
    // Predicated region
    $region122: #{forward.1} parent=1 // pred_check
      _
    $region123: #{forward.1} parent=1 // pred_check_branch
      %145 = sbr.rel (0) target = $region125
    $region124: #{forward.1} parent=1 // pred_region
      %147 = dma.done [#allocation9], 9216
    $region125: #{forward.1} parent=1 // pred_fallthru
      _
    // Predicated region
    $region126: #{forward.1} parent=1 // pred_check
      _
    $region127: #{forward.1} parent=1 // pred_check_branch
      %149 = sbr.rel (0) target = $region129
    $region128: #{forward.1} parent=1 // pred_region
      %151 = dma.done [#allocation12], 3072
    $region129: #{forward.1} parent=1 // pred_fallthru
      _
    %152 = vst [vmem:[#allocation2] sm:$0x1] 0.0
    %153 = vst [vmem:[#allocation2 + $0x11] sm:$0x1] 0.0
    %154 = vst [vmem:[#allocation3] sm:$0x1] 0.0
    %155 = vst [vmem:[#allocation3 + $0x11] sm:$0x1] 0.0
    %156 = vst [vmem:[#allocation4] sm:$0x1] 0.0
    %157 = vst [vmem:[#allocation4 + $0x11] sm:$0x1] 0.0
    %158 = vst [vmem:[#allocation5] sm:$0x1] 0.0
    %159 = vst [vmem:[#allocation5 + $0x11] sm:$0x1] 0.0
    %v160 = vld [vmem:[%s0] sm:$0xff]
    %v161 = vld [vmem:[%s0 + $0x8] sm:$0xff]
    %v162 = vld [vmem:[%s2] sm:$0x1]
    %v164 = vperm.slane %v162, 0
    %v166 = vadd.f32 %v160, %v164
    %v167 = vadd.f32 %v161, %v164
    %v168 = vld [vmem:[%s1] sm:$0xff]
    %v169 = vld [vmem:[%s1 + $0x8] sm:$0xff]
    %170 = vst [vmem:[#allocation2 + $0x1] sm:$0xff] %v166
    %171 = vst [vmem:[#allocation2 + $0x9] sm:$0xff] %v167
    %172 = vst [vmem:[#allocation4 + $0x1] sm:$0xff] %v168
    %173 = vst [vmem:[#allocation4 + $0x9] sm:$0xff] %v169
    %v174 = vld [vmem:[#allocation2] sm:$0xff]
    %v175 = vld [vmem:[#allocation2 + $0x8] sm:$0xff]
    %v176 = vpack.c.bf16 %v175, %v174
    %v177 = vld [vmem:[%s4] sm:$0xf]
    %v178 = vld [vmem:[%s4 + $0x4] sm:$0xf]
    %v179 = vld [vmem:[%s4 + $0x8] sm:$0xf]
    %v180 = vld [vmem:[%s4 + $0xc] sm:$0xf]
    %v181 = vld [vmem:[%s4 + $0x10] sm:$0xf]
    %v182 = vld [vmem:[%s4 + $0x14] sm:$0xf]
    %v183 = vld [vmem:[%s4 + $0x18] sm:$0xf]
    %v184 = vld [vmem:[%s4 + $0x1c] sm:$0xf]
    %v185 = vld [vmem:[%s4 + $0x20] sm:$0xf]
    %v186 = vld [vmem:[%s4 + $0x24] sm:$0xf]
    %v187 = vld [vmem:[%s4 + $0x28] sm:$0xf]
    %v188 = vld [vmem:[%s4 + $0x2c] sm:$0xf]
    %v189 = vld [vmem:[%s4 + $0x30] sm:$0xf]
    %v190 = vld [vmem:[%s4 + $0x34] sm:$0xf]
    %v191 = vld [vmem:[%s4 + $0x38] sm:$0xf]
    %v192 = vld [vmem:[%s4 + $0x3c] sm:$0xf]
    %v193 = vld [vmem:[#allocation2 + $0x1] sm:$0xff]
    %v194 = vld [vmem:[#allocation2 + $0x9] sm:$0xff]
    %v195 = vpack.c.bf16 %v194, %v193
    %s196 = scalar_lea.vmem %s4, 64
    %v197 = vld [vmem:[%s196] sm:$0xf]
    %v198 = vld [vmem:[%s196 + $0x4] sm:$0xf]
    %v199 = vld [vmem:[%s196 + $0x8] sm:$0xf]
    %v200 = vld [vmem:[%s196 + $0xc] sm:$0xf]
    %v201 = vld [vmem:[%s196 + $0x10] sm:$0xf]
    %v202 = vld [vmem:[%s196 + $0x14] sm:$0xf]
    %v203 = vld [vmem:[%s196 + $0x18] sm:$0xf]
    %v204 = vld [vmem:[%s196 + $0x1c] sm:$0xf]
    %v205 = vld [vmem:[%s196 + $0x20] sm:$0xf]
    %v206 = vld [vmem:[%s196 + $0x24] sm:$0xf]
    %v207 = vld [vmem:[%s196 + $0x28] sm:$0xf]
    %v208 = vld [vmem:[%s196 + $0x2c] sm:$0xf]
    %v209 = vld [vmem:[%s196 + $0x30] sm:$0xf]
    %v210 = vld [vmem:[%s196 + $0x34] sm:$0xf]
    %v211 = vld [vmem:[%s196 + $0x38] sm:$0xf]
    %v212 = vld [vmem:[%s196 + $0x3c] sm:$0xf]
    %v229 = vunpack.c.l.b16 %v197
    %v230 = vunpack.c.l.b16 %v198
    %v231 = vunpack.c.l.b16 %v199
    %v232 = vunpack.c.l.b16 %v200
    %v233 = vunpack.c.l.b16 %v201
    %v234 = vunpack.c.l.b16 %v202
    %v235 = vunpack.c.l.b16 %v203
    %v236 = vunpack.c.l.b16 %v204
    %v237 = vunpack.c.l.b16 %v205
    %v238 = vunpack.c.l.b16 %v206
    %v239 = vunpack.c.l.b16 %v207
    %v240 = vunpack.c.l.b16 %v208
    %v241 = vunpack.c.l.b16 %v209
    %v242 = vunpack.c.l.b16 %v210
    %v243 = vunpack.c.l.b16 %v211
    %v244 = vunpack.c.l.b16 %v212
    %v245 = vpack.c.b16 %v230, %v229
    %v246 = vpack.c.b16 %v232, %v231
    %v247 = vpack.c.b16 %v234, %v233
    %v248 = vpack.c.b16 %v236, %v235
    %v249 = vpack.c.b16 %v238, %v237
    %v250 = vpack.c.b16 %v240, %v239
    %v251 = vpack.c.b16 %v242, %v241
    %v252 = vpack.c.b16 %v244, %v243
    %261 = vmatpush.bf16.msra.mxu0 %v252
    %262 = vmatpush.bf16.msra.mxu0 %v251
    %263 = vmatpush.bf16.msra.mxu0 %v250
    %264 = vmatpush.bf16.msra.mxu0 %v249
    %265 = vmatpush.bf16.msra.mxu0 %v248
    %266 = vmatpush.bf16.msra.mxu0 %v247
    %267 = vmatpush.bf16.msra.mxu0 %v246
    %268 = vmatpush.bf16.msra.mxu0 %v245
    %269 = vmatmul.bf16.gmra.mxu0 %v195
    %v270 = vpop.f32.mrf.mxu0
    %v271 = vadd.f32 0.0, %v270
    %v272 = vpop.f32.mrf.mxu0
    %v273 = vadd.f32 0.0, %v272
    %274 = vdwg.mxu0
    %v291 = vunpack.c.l.b16 %v177
    %v292 = vunpack.c.l.b16 %v178
    %v293 = vunpack.c.l.b16 %v179
    %v294 = vunpack.c.l.b16 %v180
    %v295 = vunpack.c.l.b16 %v181
    %v296 = vunpack.c.l.b16 %v182
    %v297 = vunpack.c.l.b16 %v183
    %v298 = vunpack.c.l.b16 %v184
    %v299 = vunpack.c.l.b16 %v185
    %v300 = vunpack.c.l.b16 %v186
    %v301 = vunpack.c.l.b16 %v187
    %v302 = vunpack.c.l.b16 %v188
    %v303 = vunpack.c.l.b16 %v189
    %v304 = vunpack.c.l.b16 %v190
    %v305 = vunpack.c.l.b16 %v191
    %v306 = vunpack.c.l.b16 %v192
    %v307 = vpack.c.b16 %v292, %v291
    %v308 = vpack.c.b16 %v294, %v293
    %v309 = vpack.c.b16 %v296, %v295
    %v310 = vpack.c.b16 %v298, %v297
    %v311 = vpack.c.b16 %v300, %v299
    %v312 = vpack.c.b16 %v302, %v301
    %v313 = vpack.c.b16 %v304, %v303
    %v314 = vpack.c.b16 %v306, %v305
    %323 = vmatpush.bf16.msra.mxu0 %v314
    %324 = vmatpush.bf16.msra.mxu0 %v313
    %325 = vmatpush.bf16.msra.mxu0 %v312
    %326 = vmatpush.bf16.msra.mxu0 %v311
    %327 = vmatpush.bf16.msra.mxu0 %v310
    %328 = vmatpush.bf16.msra.mxu0 %v309
    %329 = vmatpush.bf16.msra.mxu0 %v308
    %330 = vmatpush.bf16.msra.mxu0 %v307
    %331 = vmatmul.bf16.gmra.mxu0 %v176
    %v332 = vpop.f32.mrf.mxu0
    %v333 = vadd.f32 %v271, %v332
    %v334 = vpop.f32.mrf.mxu0
    %v335 = vadd.f32 %v273, %v334
    %336 = vdwg.mxu0
    %v337 = vld [vmem:[#allocation2 + $0x2] sm:$0xff]
    %v338 = vld [vmem:[#allocation2 + $0xa] sm:$0xff]
    %v339 = vpack.c.bf16 %v338, %v337
    %s340 = scalar_lea.vmem %s4, 128
    %v341 = vld [vmem:[%s340] sm:$0xf]
    %v342 = vld [vmem:[%s340 + $0x4] sm:$0xf]
    %v343 = vld [vmem:[%s340 + $0x8] sm:$0xf]
    %v344 = vld [vmem:[%s340 + $0xc] sm:$0xf]
    %v345 = vld [vmem:[%s340 + $0x10] sm:$0xf]
    %v346 = vld [vmem:[%s340 + $0x14] sm:$0xf]
    %v347 = vld [vmem:[%s340 + $0x18] sm:$0xf]
    %v348 = vld [vmem:[%s340 + $0x1c] sm:$0xf]
    %v349 = vld [vmem:[%s340 + $0x20] sm:$0xf]
    %v350 = vld [vmem:[%s340 + $0x24] sm:$0xf]
    %v351 = vld [vmem:[%s340 + $0x28] sm:$0xf]
    %v352 = vld [vmem:[%s340 + $0x2c] sm:$0xf]
    %v353 = vld [vmem:[%s340 + $0x30] sm:$0xf]
    %v354 = vld [vmem:[%s340 + $0x34] sm:$0xf]
    %v355 = vld [vmem:[%s340 + $0x38] sm:$0xf]
    %v356 = vld [vmem:[%s340 + $0x3c] sm:$0xf]
    %v373 = vunpack.c.l.b16 %v341
    %v374 = vunpack.c.l.b16 %v342
    %v375 = vunpack.c.l.b16 %v343
    %v376 = vunpack.c.l.b16 %v344
    %v377 = vunpack.c.l.b16 %v345
    %v378 = vunpack.c.l.b16 %v346
    %v379 = vunpack.c.l.b16 %v347
    %v380 = vunpack.c.l.b16 %v348
    %v381 = vunpack.c.l.b16 %v349
    %v382 = vunpack.c.l.b16 %v350
    %v383 = vunpack.c.l.b16 %v351
    %v384 = vunpack.c.l.b16 %v352
    %v385 = vunpack.c.l.b16 %v353
    %v386 = vunpack.c.l.b16 %v354
    %v387 = vunpack.c.l.b16 %v355
    %v388 = vunpack.c.l.b16 %v356
    %v389 = vpack.c.b16 %v374, %v373
    %v390 = vpack.c.b16 %v376, %v375
    %v391 = vpack.c.b16 %v378, %v377
    %v392 = vpack.c.b16 %v380, %v379
    %v393 = vpack.c.b16 %v382, %v381
    %v394 = vpack.c.b16 %v384, %v383
    %v395 = vpack.c.b16 %v386, %v385
    %v396 = vpack.c.b16 %v388, %v387
    %405 = vmatpush.bf16.msra.mxu0 %v396
    %406 = vmatpush.bf16.msra.mxu0 %v395
    %407 = vmatpush.bf16.msra.mxu0 %v394
    %408 = vmatpush.bf16.msra.mxu0 %v393
    %409 = vmatpush.bf16.msra.mxu0 %v392
    %410 = vmatpush.bf16.msra.mxu0 %v391
    %411 = vmatpush.bf16.msra.mxu0 %v390
    %412 = vmatpush.bf16.msra.mxu0 %v389
    %413 = vmatmul.bf16.gmra.mxu0 %v339
    %v414 = vpop.f32.mrf.mxu0
    %v415 = vadd.f32 0.0, %v414
    %v416 = vpop.f32.mrf.mxu0
    %v417 = vadd.f32 0.0, %v416
    %418 = vdwg.mxu0
    %v419 = vadd.f32 %v333, %v415
    %v420 = vadd.f32 %v335, %v417
    %v421 = vld [vmem:[%s5] sm:$0x1]
    %v423 = vperm.slane %v421, 0
    %v425 = vadd.f32 %v419, %v423
    %v426 = vadd.f32 %v420, %v423
    %v427 = vadd.f32 %v425, %v426
    %v428 = vrot.slane %v427, 4
    %v429 = vadd.f32 %v427, %v428
    %v430 = vrot.slane %v429, 2
    %v431 = vadd.f32 %v429, %v430
    %v432 = vrot.slane %v431, 1
    %v433 = vadd.f32 %v431, %v432
    %v434 = vld [vmem:[#allocation6] sm:$0xff]
    %v435 = vld [vmem:[#allocation6 + $0x8] sm:$0xff]
    %v436 = vld [vmem:[#allocation6 + $0x10] sm:$0xff]
    %v437 = vld [vmem:[#allocation6 + $0x18] sm:$0xff]
    %v438 = vld [vmem:[#allocation6 + $0x20] sm:$0xff]
    %v439 = vld [vmem:[#allocation6 + $0x28] sm:$0xff]
    %v440 = vld [vmem:[#allocation6 + $0x30] sm:$0xff]
    %v441 = vld [vmem:[#allocation6 + $0x38] sm:$0xff]
    %v442 = vld [vmem:[#allocation6 + $0x40] sm:$0xff]
    %v443 = vld [vmem:[#allocation6 + $0x48] sm:$0xff]
    %v444 = vld [vmem:[#allocation6 + $0x50] sm:$0xff]
    %v445 = vld [vmem:[#allocation6 + $0x58] sm:$0xff]
    %v446 = vld [vmem:[#allocation6 + $0x60] sm:$0xff]
    %v447 = vld [vmem:[#allocation6 + $0x68] sm:$0xff]
    %v448 = vld [vmem:[#allocation6 + $0x70] sm:$0xff]
    %v449 = vld [vmem:[#allocation6 + $0x78] sm:$0xff]
    %450 = vmatpush.msra.mxu0 %v449
    %451 = vmatpush.msra.mxu0 %v448
    %452 = vmatpush.msra.mxu0 %v447
    %453 = vmatpush.msra.mxu0 %v446
    %454 = vmatpush.msra.mxu0 %v445
    %455 = vmatpush.msra.mxu0 %v444
    %456 = vmatpush.msra.mxu0 %v443
    %457 = vmatpush.msra.mxu0 %v442
    %458 = vmatpush.msra.mxu0 %v441
    %459 = vmatpush.msra.mxu0 %v440
    %460 = vmatpush.msra.mxu0 %v439
    %461 = vmatpush.msra.mxu0 %v438
    %462 = vmatpush.msra.mxu0 %v437
    %463 = vmatpush.msra.mxu0 %v436
    %464 = vmatpush.msra.mxu0 %v435
    %465 = vmatpush.msra.mxu0 %v434
    %466 = vmatmul.f32.gmra.mxu0 %v433
    %v467 = vpop.f32.mrf.mxu0
    %v468 = vadd.f32 0.0, %v467
    %469 = vdwg.mxu0
    %v470 = vmul.f32 %v468, 0.00390625
    %v471 = vperm.slane %v470, 0
    %v472 = vsub.f32 %v425, %v471
    %v473 = vsub.f32 %v426, %v471
    %v474 = vmul.f32 %v472, %v472
    %v475 = vmul.f32 %v473, %v473
    %v476 = vadd.f32 %v474, %v475
    %v477 = vrot.slane %v476, 4
    %v478 = vadd.f32 %v476, %v477
    %v479 = vrot.slane %v478, 2
    %v480 = vadd.f32 %v478, %v479
    %v481 = vrot.slane %v480, 1
    %v482 = vadd.f32 %v480, %v481
    %483 = vmatpush.msra.mxu0 %v449
    %484 = vmatpush.msra.mxu0 %v448
    %485 = vmatpush.msra.mxu0 %v447
    %486 = vmatpush.msra.mxu0 %v446
    %487 = vmatpush.msra.mxu0 %v445
    %488 = vmatpush.msra.mxu0 %v444
    %489 = vmatpush.msra.mxu0 %v443
    %490 = vmatpush.msra.mxu0 %v442
    %491 = vmatpush.msra.mxu0 %v441
    %492 = vmatpush.msra.mxu0 %v440
    %493 = vmatpush.msra.mxu0 %v439
    %494 = vmatpush.msra.mxu0 %v438
    %495 = vmatpush.msra.mxu0 %v437
    %496 = vmatpush.msra.mxu0 %v436
    %497 = vmatpush.msra.mxu0 %v435
    %498 = vmatpush.msra.mxu0 %v434
    %499 = vmatmul.f32.gmra.mxu0 %v482
    %v500 = vpop.f32.mrf.mxu0
    %v501 = vadd.f32 0.0, %v500
    %502 = vdwg.mxu0
    %v503 = vmul.f32 %v501, 0.00390625
    %v504 = vmax.f32 %v503, 0.0
    %v505 = vadd.f32 %v504, 1e-05
    %v506 = vrsqrt.pop %v505
    %v507 = vmul.f32 %v506, %v505
    %v508 = vmul.f32 %v507, %v506
    %v509 = vmul.f32 0.5, %v508
    %v510 = vsub.f32 1.5, %v509
    %v511 = vmul.f32 %v506, %v510
    %vm512 = vweird.f32 %v505
    %vm513 = vweird.f32 %v506
    %vm514 = vmor %vm512, %vm513
    %v515 = vsel %vm514, %v506, %v511
    %v516 = vld [vmem:[%s6] sm:$0x1]
    %v517 = vmul.f32 %v515, %v516
    %v518 = vperm.slane %v517, 0
    %v519 = vmul.f32 %v472, %v518
    %v520 = vmul.f32 %v473, %v518
    %v521 = vld [vmem:[%s7] sm:$0x1]
    %v523 = vperm.slane %v521, 0
    %v525 = vadd.f32 %v519, %v523
    %v526 = vadd.f32 %v520, %v523
    %v527 = vmul.f32 %v525, 0.2
    %v528 = vmul.f32 %v526, 0.2
    %v529 = vmax.f32 %v525, %v527
    %v530 = vmax.f32 %v526, %v528
    %531 = vst [vmem:[#allocation5 + $0x1] sm:$0xff] %v529
    %532 = vst [vmem:[#allocation5 + $0x9] sm:$0xff] %v530
    %v533 = vld [vmem:[#allocation5] sm:$0xff]
    %v534 = vld [vmem:[#allocation5 + $0x8] sm:$0xff]
    %v535 = vpack.c.bf16 %v534, %v533
    %v536 = vld [vmem:[%s8] sm:$0xf]
    %v537 = vld [vmem:[%s8 + $0x4] sm:$0xf]
    %v538 = vld [vmem:[%s8 + $0x8] sm:$0xf]
    %v539 = vld [vmem:[%s8 + $0xc] sm:$0xf]
    %v540 = vld [vmem:[%s8 + $0x10] sm:$0xf]
    %v541 = vld [vmem:[%s8 + $0x14] sm:$0xf]
    %v542 = vld [vmem:[%s8 + $0x18] sm:$0xf]
    %v543 = vld [vmem:[%s8 + $0x1c] sm:$0xf]
    %v544 = vld [vmem:[%s8 + $0x20] sm:$0xf]
    %v545 = vld [vmem:[%s8 + $0x24] sm:$0xf]
    %v546 = vld [vmem:[%s8 + $0x28] sm:$0xf]
    %v547 = vld [vmem:[%s8 + $0x2c] sm:$0xf]
    %v548 = vld [vmem:[%s8 + $0x30] sm:$0xf]
    %v549 = vld [vmem:[%s8 + $0x34] sm:$0xf]
    %v550 = vld [vmem:[%s8 + $0x38] sm:$0xf]
    %v551 = vld [vmem:[%s8 + $0x3c] sm:$0xf]
    %v552 = vld [vmem:[#allocation5 + $0x1] sm:$0xff]
    %v553 = vld [vmem:[#allocation5 + $0x9] sm:$0xff]
    %v554 = vpack.c.bf16 %v553, %v552
    %s555 = scalar_lea.vmem %s8, 64
    %v556 = vld [vmem:[%s555] sm:$0xf]
    %v557 = vld [vmem:[%s555 + $0x4] sm:$0xf]
    %v558 = vld [vmem:[%s555 + $0x8] sm:$0xf]
    %v559 = vld [vmem:[%s555 + $0xc] sm:$0xf]
    %v560 = vld [vmem:[%s555 + $0x10] sm:$0xf]
    %v561 = vld [vmem:[%s555 + $0x14] sm:$0xf]
    %v562 = vld [vmem:[%s555 + $0x18] sm:$0xf]
    %v563 = vld [vmem:[%s555 + $0x1c] sm:$0xf]
    %v564 = vld [vmem:[%s555 + $0x20] sm:$0xf]
    %v565 = vld [vmem:[%s555 + $0x24] sm:$0xf]
    %v566 = vld [vmem:[%s555 + $0x28] sm:$0xf]
    %v567 = vld [vmem:[%s555 + $0x2c] sm:$0xf]
    %v568 = vld [vmem:[%s555 + $0x30] sm:$0xf]
    %v569 = vld [vmem:[%s555 + $0x34] sm:$0xf]
    %v570 = vld [vmem:[%s555 + $0x38] sm:$0xf]
    %v571 = vld [vmem:[%s555 + $0x3c] sm:$0xf]
    %v588 = vunpack.c.l.b16 %v556
    %v589 = vunpack.c.l.b16 %v557
    %v590 = vunpack.c.l.b16 %v558
    %v591 = vunpack.c.l.b16 %v559
    %v592 = vunpack.c.l.b16 %v560
    %v593 = vunpack.c.l.b16 %v561
    %v594 = vunpack.c.l.b16 %v562
    %v595 = vunpack.c.l.b16 %v563
    %v596 = vunpack.c.l.b16 %v564
    %v597 = vunpack.c.l.b16 %v565
    %v598 = vunpack.c.l.b16 %v566
    %v599 = vunpack.c.l.b16 %v567
    %v600 = vunpack.c.l.b16 %v568
    %v601 = vunpack.c.l.b16 %v569
    %v602 = vunpack.c.l.b16 %v570
    %v603 = vunpack.c.l.b16 %v571
    %v604 = vpack.c.b16 %v589, %v588
    %v605 = vpack.c.b16 %v591, %v590
    %v606 = vpack.c.b16 %v593, %v592
    %v607 = vpack.c.b16 %v595, %v594
    %v608 = vpack.c.b16 %v597, %v596
    %v609 = vpack.c.b16 %v599, %v598
    %v610 = vpack.c.b16 %v601, %v600
    %v611 = vpack.c.b16 %v603, %v602
    %620 = vmatpush.bf16.msra.mxu0 %v611
    %621 = vmatpush.bf16.msra.mxu0 %v610
    %622 = vmatpush.bf16.msra.mxu0 %v609
    %623 = vmatpush.bf16.msra.mxu0 %v608
    %624 = vmatpush.bf16.msra.mxu0 %v607
    %625 = vmatpush.bf16.msra.mxu0 %v606
    %626 = vmatpush.bf16.msra.mxu0 %v605
    %627 = vmatpush.bf16.msra.mxu0 %v604
    %628 = vmatmul.bf16.gmra.mxu0 %v554
    %v629 = vpop.f32.mrf.mxu0
    %v630 = vadd.f32 0.0, %v629
    %v631 = vpop.f32.mrf.mxu0
    %v632 = vadd.f32 0.0, %v631
    %633 = vdwg.mxu0
    %v650 = vunpack.c.l.b16 %v536
    %v651 = vunpack.c.l.b16 %v537
    %v652 = vunpack.c.l.b16 %v538
    %v653 = vunpack.c.l.b16 %v539
    %v654 = vunpack.c.l.b16 %v540
    %v655 = vunpack.c.l.b16 %v541
    %v656 = vunpack.c.l.b16 %v542
    %v657 = vunpack.c.l.b16 %v543
    %v658 = vunpack.c.l.b16 %v544
    %v659 = vunpack.c.l.b16 %v545
    %v660 = vunpack.c.l.b16 %v546
    %v661 = vunpack.c.l.b16 %v547
    %v662 = vunpack.c.l.b16 %v548
    %v663 = vunpack.c.l.b16 %v549
    %v664 = vunpack.c.l.b16 %v550
    %v665 = vunpack.c.l.b16 %v551
    %v666 = vpack.c.b16 %v651, %v650
    %v667 = vpack.c.b16 %v653, %v652
    %v668 = vpack.c.b16 %v655, %v654
    %v669 = vpack.c.b16 %v657, %v656
    %v670 = vpack.c.b16 %v659, %v658
    %v671 = vpack.c.b16 %v661, %v660
    %v672 = vpack.c.b16 %v663, %v662
    %v673 = vpack.c.b16 %v665, %v664
    %682 = vmatpush.bf16.msra.mxu0 %v673
    %683 = vmatpush.bf16.msra.mxu0 %v672
    %684 = vmatpush.bf16.msra.mxu0 %v671
    %685 = vmatpush.bf16.msra.mxu0 %v670
    %686 = vmatpush.bf16.msra.mxu0 %v669
    %687 = vmatpush.bf16.msra.mxu0 %v668
    %688 = vmatpush.bf16.msra.mxu0 %v667
    %689 = vmatpush.bf16.msra.mxu0 %v666
    %690 = vmatmul.bf16.gmra.mxu0 %v535
    %v691 = vpop.f32.mrf.mxu0
    %v692 = vadd.f32 %v630, %v691
    %v693 = vpop.f32.mrf.mxu0
    %v694 = vadd.f32 %v632, %v693
    %695 = vdwg.mxu0
    %v696 = vld [vmem:[#allocation5 + $0x2] sm:$0xff]
    %v697 = vld [vmem:[#allocation5 + $0xa] sm:$0xff]
    %v698 = vpack.c.bf16 %v697, %v696
    %s699 = scalar_lea.vmem %s8, 128
    %v700 = vld [vmem:[%s699] sm:$0xf]
    %v701 = vld [vmem:[%s699 + $0x4] sm:$0xf]
    %v702 = vld [vmem:[%s699 + $0x8] sm:$0xf]
    %v703 = vld [vmem:[%s699 + $0xc] sm:$0xf]
    %v704 = vld [vmem:[%s699 + $0x10] sm:$0xf]
    %v705 = vld [vmem:[%s699 + $0x14] sm:$0xf]
    %v706 = vld [vmem:[%s699 + $0x18] sm:$0xf]
    %v707 = vld [vmem:[%s699 + $0x1c] sm:$0xf]
    %v708 = vld [vmem:[%s699 + $0x20] sm:$0xf]
    %v709 = vld [vmem:[%s699 + $0x24] sm:$0xf]
    %v710 = vld [vmem:[%s699 + $0x28] sm:$0xf]
    %v711 = vld [vmem:[%s699 + $0x2c] sm:$0xf]
    %v712 = vld [vmem:[%s699 + $0x30] sm:$0xf]
    %v713 = vld [vmem:[%s699 + $0x34] sm:$0xf]
    %v714 = vld [vmem:[%s699 + $0x38] sm:$0xf]
    %v715 = vld [vmem:[%s699 + $0x3c] sm:$0xf]
    %v732 = vunpack.c.l.b16 %v700
    %v733 = vunpack.c.l.b16 %v701
    %v734 = vunpack.c.l.b16 %v702
    %v735 = vunpack.c.l.b16 %v703
    %v736 = vunpack.c.l.b16 %v704
    %v737 = vunpack.c.l.b16 %v705
    %v738 = vunpack.c.l.b16 %v706
    %v739 = vunpack.c.l.b16 %v707
    %v740 = vunpack.c.l.b16 %v708
    %v741 = vunpack.c.l.b16 %v709
    %v742 = vunpack.c.l.b16 %v710
    %v743 = vunpack.c.l.b16 %v711
    %v744 = vunpack.c.l.b16 %v712
    %v745 = vunpack.c.l.b16 %v713
    %v746 = vunpack.c.l.b16 %v714
    %v747 = vunpack.c.l.b16 %v715
    %v748 = vpack.c.b16 %v733, %v732
    %v749 = vpack.c.b16 %v735, %v734
    %v750 = vpack.c.b16 %v737, %v736
    %v751 = vpack.c.b16 %v739, %v738
    %v752 = vpack.c.b16 %v741, %v740
    %v753 = vpack.c.b16 %v743, %v742
    %v754 = vpack.c.b16 %v745, %v744
    %v755 = vpack.c.b16 %v747, %v746
    %764 = vmatpush.bf16.msra.mxu0 %v755
    %765 = vmatpush.bf16.msra.mxu0 %v754
    %766 = vmatpush.bf16.msra.mxu0 %v753
    %767 = vmatpush.bf16.msra.mxu0 %v752
    %768 = vmatpush.bf16.msra.mxu0 %v751
    %769 = vmatpush.bf16.msra.mxu0 %v750
    %770 = vmatpush.bf16.msra.mxu0 %v749
    %771 = vmatpush.bf16.msra.mxu0 %v748
    %772 = vmatmul.bf16.gmra.mxu0 %v698
    %v773 = vpop.f32.mrf.mxu0
    %v774 = vadd.f32 0.0, %v773
    %v775 = vpop.f32.mrf.mxu0
    %v776 = vadd.f32 0.0, %v775
    %777 = vdwg.mxu0
    %v778 = vadd.f32 %v692, %v774
    %v779 = vadd.f32 %v694, %v776
    %v780 = vld [vmem:[%s9] sm:$0x1]
    %v782 = vperm.slane %v780, 0
    %v784 = vadd.f32 %v778, %v782
    %v785 = vadd.f32 %v779, %v782
    %v786 = vadd.f32 %v784, %v785
    %v787 = vrot.slane %v786, 4
    %v788 = vadd.f32 %v786, %v787
    %v789 = vrot.slane %v788, 2
    %v790 = vadd.f32 %v788, %v789
    %v791 = vrot.slane %v790, 1
    %v792 = vadd.f32 %v790, %v791
    %v793 = vld [vmem:[#allocation6] sm:$0xff]
    %v794 = vld [vmem:[#allocation6 + $0x8] sm:$0xff]
    %v795 = vld [vmem:[#allocation6 + $0x10] sm:$0xff]
    %v796 = vld [vmem:[#allocation6 + $0x18] sm:$0xff]
    %v797 = vld [vmem:[#allocation6 + $0x20] sm:$0xff]
    %v798 = vld [vmem:[#allocation6 + $0x28] sm:$0xff]
    %v799 = vld [vmem:[#allocation6 + $0x30] sm:$0xff]
    %v800 = vld [vmem:[#allocation6 + $0x38] sm:$0xff]
    %v801 = vld [vmem:[#allocation6 + $0x40] sm:$0xff]
    %v802 = vld [vmem:[#allocation6 + $0x48] sm:$0xff]
    %v803 = vld [vmem:[#allocation6 + $0x50] sm:$0xff]
    %v804 = vld [vmem:[#allocation6 + $0x58] sm:$0xff]
    %v805 = vld [vmem:[#allocation6 + $0x60] sm:$0xff]
    %v806 = vld [vmem:[#allocation6 + $0x68] sm:$0xff]
    %v807 = vld [vmem:[#allocation6 + $0x70] sm:$0xff]
    %v808 = vld [vmem:[#allocation6 + $0x78] sm:$0xff]
    %809 = vmatpush.msra.mxu0 %v808
    %810 = vmatpush.msra.mxu0 %v807
    %811 = vmatpush.msra.mxu0 %v806
    %812 = vmatpush.msra.mxu0 %v805
    %813 = vmatpush.msra.mxu0 %v804
    %814 = vmatpush.msra.mxu0 %v803
    %815 = vmatpush.msra.mxu0 %v802
    %816 = vmatpush.msra.mxu0 %v801
    %817 = vmatpush.msra.mxu0 %v800
    %818 = vmatpush.msra.mxu0 %v799
    %819 = vmatpush.msra.mxu0 %v798
    %820 = vmatpush.msra.mxu0 %v797
    %821 = vmatpush.msra.mxu0 %v796
    %822 = vmatpush.msra.mxu0 %v795
    %823 = vmatpush.msra.mxu0 %v794
    %824 = vmatpush.msra.mxu0 %v793
    %825 = vmatmul.f32.gmra.mxu0 %v792
    %v826 = vpop.f32.mrf.mxu0
    %v827 = vadd.f32 0.0, %v826
    %828 = vdwg.mxu0
    %v829 = vmul.f32 %v827, 0.00390625
    %v830 = vperm.slane %v829, 0
    %v831 = vsub.f32 %v784, %v830
    %v832 = vsub.f32 %v785, %v830
    %v833 = vmul.f32 %v831, %v831
    %v834 = vmul.f32 %v832, %v832
    %v835 = vadd.f32 %v833, %v834
    %v836 = vrot.slane %v835, 4
    %v837 = vadd.f32 %v835, %v836
    %v838 = vrot.slane %v837, 2
    %v839 = vadd.f32 %v837, %v838
    %v840 = vrot.slane %v839, 1
    %v841 = vadd.f32 %v839, %v840
    %842 = vmatpush.msra.mxu0 %v808
    %843 = vmatpush.msra.mxu0 %v807
    %844 = vmatpush.msra.mxu0 %v806
    %845 = vmatpush.msra.mxu0 %v805
    %846 = vmatpush.msra.mxu0 %v804
    %847 = vmatpush.msra.mxu0 %v803
    %848 = vmatpush.msra.mxu0 %v802
    %849 = vmatpush.msra.mxu0 %v801
    %850 = vmatpush.msra.mxu0 %v800
    %851 = vmatpush.msra.mxu0 %v799
    %852 = vmatpush.msra.mxu0 %v798
    %853 = vmatpush.msra.mxu0 %v797
    %854 = vmatpush.msra.mxu0 %v796
    %855 = vmatpush.msra.mxu0 %v795
    %856 = vmatpush.msra.mxu0 %v794
    %857 = vmatpush.msra.mxu0 %v793
    %858 = vmatmul.f32.gmra.mxu0 %v841
    %v859 = vpop.f32.mrf.mxu0
    %v860 = vadd.f32 0.0, %v859
    %861 = vdwg.mxu0
    %v862 = vmul.f32 %v860, 0.00390625
    %v863 = vmax.f32 %v862, 0.0
    %v864 = vadd.f32 %v863, 1e-05
    %v865 = vrsqrt.pop %v864
    %v866 = vmul.f32 %v865, %v864
    %v867 = vmul.f32 %v866, %v865
    %v868 = vmul.f32 0.5, %v867
    %v869 = vsub.f32 1.5, %v868
    %v870 = vmul.f32 %v865, %v869
    %vm871 = vweird.f32 %v864
    %vm872 = vweird.f32 %v865
    %vm873 = vmor %vm871, %vm872
    %v874 = vsel %vm873, %v865, %v870
    %v875 = vld [vmem:[%s10] sm:$0x1]
    %v876 = vmul.f32 %v874, %v875
    %v877 = vperm.slane %v876, 0
    %v878 = vmul.f32 %v831, %v877
    %v879 = vmul.f32 %v832, %v877
    %v880 = vld [vmem:[%s11] sm:$0x1]
    %v882 = vperm.slane %v880, 0
    %v884 = vadd.f32 %v878, %v882
    %v885 = vadd.f32 %v879, %v882
    %v886 = vmul.f32 %v884, 0.2
    %v887 = vmul.f32 %v885, 0.2
    %v888 = vmax.f32 %v884, %v886
    %v889 = vmax.f32 %v885, %v887
    %890 = vst [vmem:[#allocation5 + $0x1] sm:$0xff] %v888
    %891 = vst [vmem:[#allocation5 + $0x9] sm:$0xff] %v889
    %v892 = vld [vmem:[#allocation5] sm:$0xff]
    %v893 = vld [vmem:[#allocation5 + $0x8] sm:$0xff]
    %v894 = vpack.c.bf16 %v893, %v892
    %v895 = vld [vmem:[%s12] sm:$0xf]
    %v896 = vld [vmem:[%s12 + $0x4] sm:$0xf]
    %v897 = vld [vmem:[%s12 + $0x8] sm:$0xf]
    %v898 = vld [vmem:[%s12 + $0xc] sm:$0xf]
    %v899 = vld [vmem:[%s12 + $0x10] sm:$0xf]
    %v900 = vld [vmem:[%s12 + $0x14] sm:$0xf]
    %v901 = vld [vmem:[%s12 + $0x18] sm:$0xf]
    %v902 = vld [vmem:[%s12 + $0x1c] sm:$0xf]
    %v903 = vld [vmem:[%s12 + $0x20] sm:$0xf]
    %v904 = vld [vmem:[%s12 + $0x24] sm:$0xf]
    %v905 = vld [vmem:[%s12 + $0x28] sm:$0xf]
    %v906 = vld [vmem:[%s12 + $0x2c] sm:$0xf]
    %v907 = vld [vmem:[%s12 + $0x30] sm:$0xf]
    %v908 = vld [vmem:[%s12 + $0x34] sm:$0xf]
    %v909 = vld [vmem:[%s12 + $0x38] sm:$0xf]
    %v910 = vld [vmem:[%s12 + $0x3c] sm:$0xf]
    %v911 = vld [vmem:[#allocation5 + $0x1] sm:$0xff]
    %v912 = vld [vmem:[#allocation5 + $0x9] sm:$0xff]
    %v913 = vpack.c.bf16 %v912, %v911
    %s914 = scalar_lea.vmem %s12, 64
    %v915 = vld [vmem:[%s914] sm:$0xf]
    %v916 = vld [vmem:[%s914 + $0x4] sm:$0xf]
    %v917 = vld [vmem:[%s914 + $0x8] sm:$0xf]
    %v918 = vld [vmem:[%s914 + $0xc] sm:$0xf]
    %v919 = vld [vmem:[%s914 + $0x10] sm:$0xf]
    %v920 = vld [vmem:[%s914 + $0x14] sm:$0xf]
    %v921 = vld [vmem:[%s914 + $0x18] sm:$0xf]
    %v922 = vld [vmem:[%s914 + $0x1c] sm:$0xf]
    %v923 = vld [vmem:[%s914 + $0x20] sm:$0xf]
    %v924 = vld [vmem:[%s914 + $0x24] sm:$0xf]
    %v925 = vld [vmem:[%s914 + $0x28] sm:$0xf]
    %v926 = vld [vmem:[%s914 + $0x2c] sm:$0xf]
    %v927 = vld [vmem:[%s914 + $0x30] sm:$0xf]
    %v928 = vld [vmem:[%s914 + $0x34] sm:$0xf]
    %v929 = vld [vmem:[%s914 + $0x38] sm:$0xf]
    %v930 = vld [vmem:[%s914 + $0x3c] sm:$0xf]
    %v947 = vunpack.c.l.b16 %v915
    %v948 = vunpack.c.l.b16 %v916
    %v949 = vunpack.c.l.b16 %v917
    %v950 = vunpack.c.l.b16 %v918
    %v951 = vunpack.c.l.b16 %v919
    %v952 = vunpack.c.l.b16 %v920
    %v953 = vunpack.c.l.b16 %v921
    %v954 = vunpack.c.l.b16 %v922
    %v955 = vunpack.c.l.b16 %v923
    %v956 = vunpack.c.l.b16 %v924
    %v957 = vunpack.c.l.b16 %v925
    %v958 = vunpack.c.l.b16 %v926
    %v959 = vunpack.c.l.b16 %v927
    %v960 = vunpack.c.l.b16 %v928
    %v961 = vunpack.c.l.b16 %v929
    %v962 = vunpack.c.l.b16 %v930
    %v963 = vpack.c.b16 %v948, %v947
    %v964 = vpack.c.b16 %v950, %v949
    %v965 = vpack.c.b16 %v952, %v951
    %v966 = vpack.c.b16 %v954, %v953
    %v967 = vpack.c.b16 %v956, %v955
    %v968 = vpack.c.b16 %v958, %v957
    %v969 = vpack.c.b16 %v960, %v959
    %v970 = vpack.c.b16 %v962, %v961
    %979 = vmatpush.bf16.msra.mxu0 %v970
    %980 = vmatpush.bf16.msra.mxu0 %v969
    %981 = vmatpush.bf16.msra.mxu0 %v968
    %982 = vmatpush.bf16.msra.mxu0 %v967
    %983 = vmatpush.bf16.msra.mxu0 %v966
    %984 = vmatpush.bf16.msra.mxu0 %v965
    %985 = vmatpush.bf16.msra.mxu0 %v964
    %986 = vmatpush.bf16.msra.mxu0 %v963
    %987 = vmatmul.bf16.gmra.mxu0 %v913
    %v988 = vpop.f32.mrf.mxu0
    %v989 = vadd.f32 0.0, %v988
    %v990 = vpop.f32.mrf.mxu0
    %v991 = vadd.f32 0.0, %v990
    %992 = vdwg.mxu0
    %v1009 = vunpack.c.l.b16 %v895
    %v1010 = vunpack.c.l.b16 %v896
    %v1011 = vunpack.c.l.b16 %v897
    %v1012 = vunpack.c.l.b16 %v898
    %v1013 = vunpack.c.l.b16 %v899
    %v1014 = vunpack.c.l.b16 %v900
    %v1015 = vunpack.c.l.b16 %v901
    %v1016 = vunpack.c.l.b16 %v902
    %v1017 = vunpack.c.l.b16 %v903
    %v1018 = vunpack.c.l.b16 %v904
    %v1019 = vunpack.c.l.b16 %v905
    %v1020 = vunpack.c.l.b16 %v906
    %v1021 = vunpack.c.l.b16 %v907
    %v1022 = vunpack.c.l.b16 %v908
    %v1023 = vunpack.c.l.b16 %v909
    %v1024 = vunpack.c.l.b16 %v910
    %v1025 = vpack.c.b16 %v1010, %v1009
    %v1026 = vpack.c.b16 %v1012, %v1011
    %v1027 = vpack.c.b16 %v1014, %v1013
    %v1028 = vpack.c.b16 %v1016, %v1015
    %v1029 = vpack.c.b16 %v1018, %v1017
    %v1030 = vpack.c.b16 %v1020, %v1019
    %v1031 = vpack.c.b16 %v1022, %v1021
    %v1032 = vpack.c.b16 %v1024, %v1023
    %1041 = vmatpush.bf16.msra.mxu0 %v1032
    %1042 = vmatpush.bf16.msra.mxu0 %v1031
    %1043 = vmatpush.bf16.msra.mxu0 %v1030
    %1044 = vmatpush.bf16.msra.mxu0 %v1029
    %1045 = vmatpush.bf16.msra.mxu0 %v1028
    %1046 = vmatpush.bf16.msra.mxu0 %v1027
    %1047 = vmatpush.bf16.msra.mxu0 %v1026
    %1048 = vmatpush.bf16.msra.mxu0 %v1025
    %1049 = vmatmul.bf16.gmra.mxu0 %v894
    %v1050 = vpop.f32.mrf.mxu0
    %v1051 = vadd.f32 %v989, %v1050
    %v1052 = vpop.f32.mrf.mxu0
    %v1053 = vadd.f32 %v991, %v1052
    %1054 = vdwg.mxu0
    %v1055 = vld [vmem:[#allocation5 + $0x2] sm:$0xff]
    %v1056 = vld [vmem:[#allocation5 + $0xa] sm:$0xff]
    %v1057 = vpack.c.bf16 %v1056, %v1055
    %s1058 = scalar_lea.vmem %s12, 128
    %v1059 = vld [vmem:[%s1058] sm:$0xf]
    %v1060 = vld [vmem:[%s1058 + $0x4] sm:$0xf]
    %v1061 = vld [vmem:[%s1058 + $0x8] sm:$0xf]
    %v1062 = vld [vmem:[%s1058 + $0xc] sm:$0xf]
    %v1063 = vld [vmem:[%s1058 + $0x10] sm:$0xf]
    %v1064 = vld [vmem:[%s1058 + $0x14] sm:$0xf]
    %v1065 = vld [vmem:[%s1058 + $0x18] sm:$0xf]
    %v1066 = vld [vmem:[%s1058 + $0x1c] sm:$0xf]
    %v1067 = vld [vmem:[%s1058 + $0x20] sm:$0xf]
    %v1068 = vld [vmem:[%s1058 + $0x24] sm:$0xf]
    %v1069 = vld [vmem:[%s1058 + $0x28] sm:$0xf]
    %v1070 = vld [vmem:[%s1058 + $0x2c] sm:$0xf]
    %v1071 = vld [vmem:[%s1058 + $0x30] sm:$0xf]
    %v1072 = vld [vmem:[%s1058 + $0x34] sm:$0xf]
    %v1073 = vld [vmem:[%s1058 + $0x38] sm:$0xf]
    %v1074 = vld [vmem:[%s1058 + $0x3c] sm:$0xf]
    %v1091 = vunpack.c.l.b16 %v1059
    %v1092 = vunpack.c.l.b16 %v1060
    %v1093 = vunpack.c.l.b16 %v1061
    %v1094 = vunpack.c.l.b16 %v1062
    %v1095 = vunpack.c.l.b16 %v1063
    %v1096 = vunpack.c.l.b16 %v1064
    %v1097 = vunpack.c.l.b16 %v1065
    %v1098 = vunpack.c.l.b16 %v1066
    %v1099 = vunpack.c.l.b16 %v1067
    %v1100 = vunpack.c.l.b16 %v1068
    %v1101 = vunpack.c.l.b16 %v1069
    %v1102 = vunpack.c.l.b16 %v1070
    %v1103 = vunpack.c.l.b16 %v1071
    %v1104 = vunpack.c.l.b16 %v1072
    %v1105 = vunpack.c.l.b16 %v1073
    %v1106 = vunpack.c.l.b16 %v1074
    %v1107 = vpack.c.b16 %v1092, %v1091
    %v1108 = vpack.c.b16 %v1094, %v1093
    %v1109 = vpack.c.b16 %v1096, %v1095
    %v1110 = vpack.c.b16 %v1098, %v1097
    %v1111 = vpack.c.b16 %v1100, %v1099
    %v1112 = vpack.c.b16 %v1102, %v1101
    %v1113 = vpack.c.b16 %v1104, %v1103
    %v1114 = vpack.c.b16 %v1106, %v1105
    %1123 = vmatpush.bf16.msra.mxu0 %v1114
    %1124 = vmatpush.bf16.msra.mxu0 %v1113
    %1125 = vmatpush.bf16.msra.mxu0 %v1112
    %1126 = vmatpush.bf16.msra.mxu0 %v1111
    %1127 = vmatpush.bf16.msra.mxu0 %v1110
    %1128 = vmatpush.bf16.msra.mxu0 %v1109
    %1129 = vmatpush.bf16.msra.mxu0 %v1108
    %1130 = vmatpush.bf16.msra.mxu0 %v1107
    %1131 = vmatmul.bf16.gmra.mxu0 %v1057
    %v1132 = vpop.f32.mrf.mxu0
    %v1133 = vadd.f32 0.0, %v1132
    %v1134 = vpop.f32.mrf.mxu0
    %v1135 = vadd.f32 0.0, %v1134
    %1136 = vdwg.mxu0
    %v1137 = vadd.f32 %v1051, %v1133
    %v1138 = vadd.f32 %v1053, %v1135
    %v1139 = vld [vmem:[%s13] sm:$0x1]
    %v1141 = vperm.slane %v1139, 0
    %v1143 = vadd.f32 %v1137, %v1141
    %v1144 = vadd.f32 %v1138, %v1141
    %v1145 = vadd.f32 %v1143, %v1144
    %v1146 = vrot.slane %v1145, 4
    %v1147 = vadd.f32 %v1145, %v1146
    %v1148 = vrot.slane %v1147, 2
    %v1149 = vadd.f32 %v1147, %v1148
    %v1150 = vrot.slane %v1149, 1
    %v1151 = vadd.f32 %v1149, %v1150
    %v1152 = vld [vmem:[#allocation6] sm:$0xff]
    %v1153 = vld [vmem:[#allocation6 + $0x8] sm:$0xff]
    %v1154 = vld [vmem:[#allocation6 + $0x10] sm:$0xff]
    %v1155 = vld [vmem:[#allocation6 + $0x18] sm:$0xff]
    %v1156 = vld [vmem:[#allocation6 + $0x20] sm:$0xff]
    %v1157 = vld [vmem:[#allocation6 + $0x28] sm:$0xff]
    %v1158 = vld [vmem:[#allocation6 + $0x30] sm:$0xff]
    %v1159 = vld [vmem:[#allocation6 + $0x38] sm:$0xff]
    %v1160 = vld [vmem:[#allocation6 + $0x40] sm:$0xff]
    %v1161 = vld [vmem:[#allocation6 + $0x48] sm:$0xff]
    %v1162 = vld [vmem:[#allocation6 + $0x50] sm:$0xff]
    %v1163 = vld [vmem:[#allocation6 + $0x58] sm:$0xff]
    %v1164 = vld [vmem:[#allocation6 + $0x60] sm:$0xff]
    %v1165 = vld [vmem:[#allocation6 + $0x68] sm:$0xff]
    %v1166 = vld [vmem:[#allocation6 + $0x70] sm:$0xff]
    %v1167 = vld [vmem:[#allocation6 + $0x78] sm:$0xff]
    %1168 = vmatpush.msra.mxu0 %v1167
    %1169 = vmatpush.msra.mxu0 %v1166
    %1170 = vmatpush.msra.mxu0 %v1165
    %1171 = vmatpush.msra.mxu0 %v1164
    %1172 = vmatpush.msra.mxu0 %v1163
    %1173 = vmatpush.msra.mxu0 %v1162
    %1174 = vmatpush.msra.mxu0 %v1161
    %1175 = vmatpush.msra.mxu0 %v1160
    %1176 = vmatpush.msra.mxu0 %v1159
    %1177 = vmatpush.msra.mxu0 %v1158
    %1178 = vmatpush.msra.mxu0 %v1157
    %1179 = vmatpush.msra.mxu0 %v1156
    %1180 = vmatpush.msra.mxu0 %v1155
    %1181 = vmatpush.msra.mxu0 %v1154
    %1182 = vmatpush.msra.mxu0 %v1153
    %1183 = vmatpush.msra.mxu0 %v1152
    %1184 = vmatmul.f32.gmra.mxu0 %v1151
    %v1185 = vpop.f32.mrf.mxu0
    %v1186 = vadd.f32 0.0, %v1185
    %1187 = vdwg.mxu0
    %v1188 = vmul.f32 %v1186, 0.00390625
    %v1189 = vperm.slane %v1188, 0
    %v1190 = vsub.f32 %v1143, %v1189
    %v1191 = vsub.f32 %v1144, %v1189
    %v1192 = vmul.f32 %v1190, %v1190
    %v1193 = vmul.f32 %v1191, %v1191
    %v1194 = vadd.f32 %v1192, %v1193
    %v1195 = vrot.slane %v1194, 4
    %v1196 = vadd.f32 %v1194, %v1195
    %v1197 = vrot.slane %v1196, 2
    %v1198 = vadd.f32 %v1196, %v1197
    %v1199 = vrot.slane %v1198, 1
    %v1200 = vadd.f32 %v1198, %v1199
    %1201 = vmatpush.msra.mxu0 %v1167
    %1202 = vmatpush.msra.mxu0 %v1166
    %1203 = vmatpush.msra.mxu0 %v1165
    %1204 = vmatpush.msra.mxu0 %v1164
    %1205 = vmatpush.msra.mxu0 %v1163
    %1206 = vmatpush.msra.mxu0 %v1162
    %1207 = vmatpush.msra.mxu0 %v1161
    %1208 = vmatpush.msra.mxu0 %v1160
    %1209 = vmatpush.msra.mxu0 %v1159
    %1210 = vmatpush.msra.mxu0 %v1158
    %1211 = vmatpush.msra.mxu0 %v1157
    %1212 = vmatpush.msra.mxu0 %v1156
    %1213 = vmatpush.msra.mxu0 %v1155
    %1214 = vmatpush.msra.mxu0 %v1154
    %1215 = vmatpush.msra.mxu0 %v1153
    %1216 = vmatpush.msra.mxu0 %v1152
    %1217 = vmatmul.f32.gmra.mxu0 %v1200
    %v1218 = vpop.f32.mrf.mxu0
    %v1219 = vadd.f32 0.0, %v1218
    %1220 = vdwg.mxu0
    %v1221 = vmul.f32 %v1219, 0.00390625
    %v1222 = vmax.f32 %v1221, 0.0
    %v1223 = vadd.f32 %v1222, 1e-05
    %v1224 = vrsqrt.pop %v1223
    %v1225 = vmul.f32 %v1224, %v1223
    %v1226 = vmul.f32 %v1225, %v1224
    %v1227 = vmul.f32 0.5, %v1226
    %v1228 = vsub.f32 1.5, %v1227
    %v1229 = vmul.f32 %v1224, %v1228
    %vm1230 = vweird.f32 %v1223
    %vm1231 = vweird.f32 %v1224
    %vm1232 = vmor %vm1230, %vm1231
    %v1233 = vsel %vm1232, %v1224, %v1229
    %v1234 = vld [vmem:[%s14] sm:$0x1]
    %v1235 = vmul.f32 %v1233, %v1234
    %v1236 = vperm.slane %v1235, 0
    %v1237 = vmul.f32 %v1190, %v1236
    %v1238 = vmul.f32 %v1191, %v1236
    %v1239 = vld [vmem:[%s15] sm:$0x1]
    %v1241 = vperm.slane %v1239, 0
    %v1243 = vadd.f32 %v1237, %v1241
    %v1244 = vadd.f32 %v1238, %v1241
    %v1245 = vmul.f32 %v1243, 0.2
    %v1246 = vmul.f32 %v1244, 0.2
    %v1247 = vmax.f32 %v1243, %v1245
    %v1248 = vmax.f32 %v1244, %v1246
    %1249 = vst [vmem:[#allocation5 + $0x1] sm:$0xff] %v1247
    %1250 = vst [vmem:[#allocation5 + $0x9] sm:$0xff] %v1248
    %v1251 = vld [vmem:[#allocation5] sm:$0xff]
    %v1252 = vld [vmem:[#allocation5 + $0x8] sm:$0xff]
    %v1253 = vpack.c.bf16 %v1252, %v1251
    %v1254 = vld [vmem:[%s16] sm:$0xf]
    %v1255 = vld [vmem:[%s16 + $0x4] sm:$0xf]
    %v1256 = vld [vmem:[%s16 + $0x8] sm:$0xf]
    %v1257 = vld [vmem:[%s16 + $0xc] sm:$0xf]
    %v1258 = vld [vmem:[%s16 + $0x10] sm:$0xf]
    %v1259 = vld [vmem:[%s16 + $0x14] sm:$0xf]
    %v1260 = vld [vmem:[%s16 + $0x18] sm:$0xf]
    %v1261 = vld [vmem:[%s16 + $0x1c] sm:$0xf]
    %v1262 = vld [vmem:[%s16 + $0x20] sm:$0xf]
    %v1263 = vld [vmem:[%s16 + $0x24] sm:$0xf]
    %v1264 = vld [vmem:[%s16 + $0x28] sm:$0xf]
    %v1265 = vld [vmem:[%s16 + $0x2c] sm:$0xf]
    %v1266 = vld [vmem:[%s16 + $0x30] sm:$0xf]
    %v1267 = vld [vmem:[%s16 + $0x34] sm:$0xf]
    %v1268 = vld [vmem:[%s16 + $0x38] sm:$0xf]
    %v1269 = vld [vmem:[%s16 + $0x3c] sm:$0xf]
    %v1270 = vld [vmem:[#allocation5 + $0x1] sm:$0xff]
    %v1271 = vld [vmem:[#allocation5 + $0x9] sm:$0xff]
    %v1272 = vpack.c.bf16 %v1271, %v1270
    %s1273 = scalar_lea.vmem %s16, 64
    %v1274 = vld [vmem:[%s1273] sm:$0xf]
    %v1275 = vld [vmem:[%s1273 + $0x4] sm:$0xf]
    %v1276 = vld [vmem:[%s1273 + $0x8] sm:$0xf]
    %v1277 = vld [vmem:[%s1273 + $0xc] sm:$0xf]
    %v1278 = vld [vmem:[%s1273 + $0x10] sm:$0xf]
    %v1279 = vld [vmem:[%s1273 + $0x14] sm:$0xf]
    %v1280 = vld [vmem:[%s1273 + $0x18] sm:$0xf]
    %v1281 = vld [vmem:[%s1273 + $0x1c] sm:$0xf]
    %v1282 = vld [vmem:[%s1273 + $0x20] sm:$0xf]
    %v1283 = vld [vmem:[%s1273 + $0x24] sm:$0xf]
    %v1284 = vld [vmem:[%s1273 + $0x28] sm:$0xf]
    %v1285 = vld [vmem:[%s1273 + $0x2c] sm:$0xf]
    %v1286 = vld [vmem:[%s1273 + $0x30] sm:$0xf]
    %v1287 = vld [vmem:[%s1273 + $0x34] sm:$0xf]
    %v1288 = vld [vmem:[%s1273 + $0x38] sm:$0xf]
    %v1289 = vld [vmem:[%s1273 + $0x3c] sm:$0xf]
    %v1306 = vunpack.c.l.b16 %v1274
    %v1307 = vunpack.c.l.b16 %v1275
    %v1308 = vunpack.c.l.b16 %v1276
    %v1309 = vunpack.c.l.b16 %v1277
    %v1310 = vunpack.c.l.b16 %v1278
    %v1311 = vunpack.c.l.b16 %v1279
    %v1312 = vunpack.c.l.b16 %v1280
    %v1313 = vunpack.c.l.b16 %v1281
    %v1314 = vunpack.c.l.b16 %v1282
    %v1315 = vunpack.c.l.b16 %v1283
    %v1316 = vunpack.c.l.b16 %v1284
    %v1317 = vunpack.c.l.b16 %v1285
    %v1318 = vunpack.c.l.b16 %v1286
    %v1319 = vunpack.c.l.b16 %v1287
    %v1320 = vunpack.c.l.b16 %v1288
    %v1321 = vunpack.c.l.b16 %v1289
    %v1322 = vpack.c.b16 %v1307, %v1306
    %v1323 = vpack.c.b16 %v1309, %v1308
    %v1324 = vpack.c.b16 %v1311, %v1310
    %v1325 = vpack.c.b16 %v1313, %v1312
    %v1326 = vpack.c.b16 %v1315, %v1314
    %v1327 = vpack.c.b16 %v1317, %v1316
    %v1328 = vpack.c.b16 %v1319, %v1318
    %v1329 = vpack.c.b16 %v1321, %v1320
    %1338 = vmatpush.bf16.msra.mxu0 %v1329
    %1339 = vmatpush.bf16.msra.mxu0 %v1328
    %1340 = vmatpush.bf16.msra.mxu0 %v1327
    %1341 = vmatpush.bf16.msra.mxu0 %v1326
    %1342 = vmatpush.bf16.msra.mxu0 %v1325
    %1343 = vmatpush.bf16.msra.mxu0 %v1324
    %1344 = vmatpush.bf16.msra.mxu0 %v1323
    %1345 = vmatpush.bf16.msra.mxu0 %v1322
    %1346 = vmatmul.bf16.gmra.mxu0 %v1272
    %v1347 = vpop.f32.mrf.mxu0
    %v1348 = vadd.f32 0.0, %v1347
    %v1349 = vpop.f32.mrf.mxu0
    %v1350 = vadd.f32 0.0, %v1349
    %1351 = vdwg.mxu0
    %v1368 = vunpack.c.l.b16 %v1254
    %v1369 = vunpack.c.l.b16 %v1255
    %v1370 = vunpack.c.l.b16 %v1256
    %v1371 = vunpack.c.l.b16 %v1257
    %v1372 = vunpack.c.l.b16 %v1258
    %v1373 = vunpack.c.l.b16 %v1259
    %v1374 = vunpack.c.l.b16 %v1260
    %v1375 = vunpack.c.l.b16 %v1261
    %v1376 = vunpack.c.l.b16 %v1262
    %v1377 = vunpack.c.l.b16 %v1263
    %v1378 = vunpack.c.l.b16 %v1264
    %v1379 = vunpack.c.l.b16 %v1265
    %v1380 = vunpack.c.l.b16 %v1266
    %v1381 = vunpack.c.l.b16 %v1267
    %v1382 = vunpack.c.l.b16 %v1268
    %v1383 = vunpack.c.l.b16 %v1269
    %v1384 = vpack.c.b16 %v1369, %v1368
    %v1385 = vpack.c.b16 %v1371, %v1370
    %v1386 = vpack.c.b16 %v1373, %v1372
    %v1387 = vpack.c.b16 %v1375, %v1374
    %v1388 = vpack.c.b16 %v1377, %v1376
    %v1389 = vpack.c.b16 %v1379, %v1378
    %v1390 = vpack.c.b16 %v1381, %v1380
    %v1391 = vpack.c.b16 %v1383, %v1382
    %1400 = vmatpush.bf16.msra.mxu0 %v1391
    %1401 = vmatpush.bf16.msra.mxu0 %v1390
    %1402 = vmatpush.bf16.msra.mxu0 %v1389
    %1403 = vmatpush.bf16.msra.mxu0 %v1388
    %1404 = vmatpush.bf16.msra.mxu0 %v1387
    %1405 = vmatpush.bf16.msra.mxu0 %v1386
    %1406 = vmatpush.bf16.msra.mxu0 %v1385
    %1407 = vmatpush.bf16.msra.mxu0 %v1384
    %1408 = vmatmul.bf16.gmra.mxu0 %v1253
    %v1409 = vpop.f32.mrf.mxu0
    %v1410 = vadd.f32 %v1348, %v1409
    %v1411 = vpop.f32.mrf.mxu0
    %v1412 = vadd.f32 %v1350, %v1411
    %1413 = vdwg.mxu0
    %v1414 = vld [vmem:[#allocation5 + $0x2] sm:$0xff]
    %v1415 = vld [vmem:[#allocation5 + $0xa] sm:$0xff]
    %v1416 = vpack.c.bf16 %v1415, %v1414
    %s1417 = scalar_lea.vmem %s16, 128
    %v1418 = vld [vmem:[%s1417] sm:$0xf]
    %v1419 = vld [vmem:[%s1417 + $0x4] sm:$0xf]
    %v1420 = vld [vmem:[%s1417 + $0x8] sm:$0xf]
    %v1421 = vld [vmem:[%s1417 + $0xc] sm:$0xf]
    %v1422 = vld [vmem:[%s1417 + $0x10] sm:$0xf]
    %v1423 = vld [vmem:[%s1417 + $0x14] sm:$0xf]
    %v1424 = vld [vmem:[%s1417 + $0x18] sm:$0xf]
    %v1425 = vld [vmem:[%s1417 + $0x1c] sm:$0xf]
    %v1426 = vld [vmem:[%s1417 + $0x20] sm:$0xf]
    %v1427 = vld [vmem:[%s1417 + $0x24] sm:$0xf]
    %v1428 = vld [vmem:[%s1417 + $0x28] sm:$0xf]
    %v1429 = vld [vmem:[%s1417 + $0x2c] sm:$0xf]
    %v1430 = vld [vmem:[%s1417 + $0x30] sm:$0xf]
    %v1431 = vld [vmem:[%s1417 + $0x34] sm:$0xf]
    %v1432 = vld [vmem:[%s1417 + $0x38] sm:$0xf]
    %v1433 = vld [vmem:[%s1417 + $0x3c] sm:$0xf]
    %v1450 = vunpack.c.l.b16 %v1418
    %v1451 = vunpack.c.l.b16 %v1419
    %v1452 = vunpack.c.l.b16 %v1420
    %v1453 = vunpack.c.l.b16 %v1421
    %v1454 = vunpack.c.l.b16 %v1422
    %v1455 = vunpack.c.l.b16 %v1423
    %v1456 = vunpack.c.l.b16 %v1424
    %v1457 = vunpack.c.l.b16 %v1425
    %v1458 = vunpack.c.l.b16 %v1426
    %v1459 = vunpack.c.l.b16 %v1427
    %v1460 = vunpack.c.l.b16 %v1428
    %v1461 = vunpack.c.l.b16 %v1429
    %v1462 = vunpack.c.l.b16 %v1430
    %v1463 = vunpack.c.l.b16 %v1431
    %v1464 = vunpack.c.l.b16 %v1432
    %v1465 = vunpack.c.l.b16 %v1433
    %v1466 = vpack.c.b16 %v1451, %v1450
    %v1467 = vpack.c.b16 %v1453, %v1452
    %v1468 = vpack.c.b16 %v1455, %v1454
    %v1469 = vpack.c.b16 %v1457, %v1456
    %v1470 = vpack.c.b16 %v1459, %v1458
    %v1471 = vpack.c.b16 %v1461, %v1460
    %v1472 = vpack.c.b16 %v1463, %v1462
    %v1473 = vpack.c.b16 %v1465, %v1464
    %1482 = vmatpush.bf16.msra.mxu0 %v1473
    %1483 = vmatpush.bf16.msra.mxu0 %v1472
    %1484 = vmatpush.bf16.msra.mxu0 %v1471
    %1485 = vmatpush.bf16.msra.mxu0 %v1470
    %1486 = vmatpush.bf16.msra.mxu0 %v1469
    %1487 = vmatpush.bf16.msra.mxu0 %v1468
    %1488 = vmatpush.bf16.msra.mxu0 %v1467
    %1489 = vmatpush.bf16.msra.mxu0 %v1466
    %1490 = vmatmul.bf16.gmra.mxu0 %v1416
    %v1491 = vpop.f32.mrf.mxu0
    %v1492 = vadd.f32 0.0, %v1491
    %v1493 = vpop.f32.mrf.mxu0
    %v1494 = vadd.f32 0.0, %v1493
    %1495 = vdwg.mxu0
    %v1496 = vadd.f32 %v1410, %v1492
    %v1497 = vadd.f32 %v1412, %v1494
    %v1498 = vld [vmem:[%s17] sm:$0x1]
    %v1500 = vperm.slane %v1498, 0
    %v1502 = vadd.f32 %v1496, %v1500
    %v1503 = vadd.f32 %v1497, %v1500
    %v1504 = vadd.f32 %v1502, %v1503
    %v1505 = vrot.slane %v1504, 4
    %v1506 = vadd.f32 %v1504, %v1505
    %v1507 = vrot.slane %v1506, 2
    %v1508 = vadd.f32 %v1506, %v1507
    %v1509 = vrot.slane %v1508, 1
    %v1510 = vadd.f32 %v1508, %v1509
    %v1511 = vld [vmem:[#allocation6] sm:$0xff]
    %v1512 = vld [vmem:[#allocation6 + $0x8] sm:$0xff]
    %v1513 = vld [vmem:[#allocation6 + $0x10] sm:$0xff]
    %v1514 = vld [vmem:[#allocation6 + $0x18] sm:$0xff]
    %v1515 = vld [vmem:[#allocation6 + $0x20] sm:$0xff]
    %v1516 = vld [vmem:[#allocation6 + $0x28] sm:$0xff]
    %v1517 = vld [vmem:[#allocation6 + $0x30] sm:$0xff]
    %v1518 = vld [vmem:[#allocation6 + $0x38] sm:$0xff]
    %v1519 = vld [vmem:[#allocation6 + $0x40] sm:$0xff]
    %v1520 = vld [vmem:[#allocation6 + $0x48] sm:$0xff]
    %v1521 = vld [vmem:[#allocation6 + $0x50] sm:$0xff]
    %v1522 = vld [vmem:[#allocation6 + $0x58] sm:$0xff]
    %v1523 = vld [vmem:[#allocation6 + $0x60] sm:$0xff]
    %v1524 = vld [vmem:[#allocation6 + $0x68] sm:$0xff]
    %v1525 = vld [vmem:[#allocation6 + $0x70] sm:$0xff]
    %v1526 = vld [vmem:[#allocation6 + $0x78] sm:$0xff]
    %1527 = vmatpush.msra.mxu0 %v1526
    %1528 = vmatpush.msra.mxu0 %v1525
    %1529 = vmatpush.msra.mxu0 %v1524
    %1530 = vmatpush.msra.mxu0 %v1523
    %1531 = vmatpush.msra.mxu0 %v1522
    %1532 = vmatpush.msra.mxu0 %v1521
    %1533 = vmatpush.msra.mxu0 %v1520
    %1534 = vmatpush.msra.mxu0 %v1519
    %1535 = vmatpush.msra.mxu0 %v1518
    %1536 = vmatpush.msra.mxu0 %v1517
    %1537 = vmatpush.msra.mxu0 %v1516
    %1538 = vmatpush.msra.mxu0 %v1515
    %1539 = vmatpush.msra.mxu0 %v1514
    %1540 = vmatpush.msra.mxu0 %v1513
    %1541 = vmatpush.msra.mxu0 %v1512
    %1542 = vmatpush.msra.mxu0 %v1511
    %1543 = vmatmul.f32.gmra.mxu0 %v1510
    %v1544 = vpop.f32.mrf.mxu0
    %v1545 = vadd.f32 0.0, %v1544
    %1546 = vdwg.mxu0
    %v1547 = vmul.f32 %v1545, 0.00390625
    %v1548 = vperm.slane %v1547, 0
    %v1549 = vsub.f32 %v1502, %v1548
    %v1550 = vsub.f32 %v1503, %v1548
    %v1551 = vmul.f32 %v1549, %v1549
    %v1552 = vmul.f32 %v1550, %v1550
    %v1553 = vadd.f32 %v1551, %v1552
    %v1554 = vrot.slane %v1553, 4
    %v1555 = vadd.f32 %v1553, %v1554
    %v1556 = vrot.slane %v1555, 2
    %v1557 = vadd.f32 %v1555, %v1556
    %v1558 = vrot.slane %v1557, 1
    %v1559 = vadd.f32 %v1557, %v1558
    %1560 = vmatpush.msra.mxu0 %v1526
    %1561 = vmatpush.msra.mxu0 %v1525
    %1562 = vmatpush.msra.mxu0 %v1524
    %1563 = vmatpush.msra.mxu0 %v1523
    %1564 = vmatpush.msra.mxu0 %v1522
    %1565 = vmatpush.msra.mxu0 %v1521
    %1566 = vmatpush.msra.mxu0 %v1520
    %1567 = vmatpush.msra.mxu0 %v1519
    %1568 = vmatpush.msra.mxu0 %v1518
    %1569 = vmatpush.msra.mxu0 %v1517
    %1570 = vmatpush.msra.mxu0 %v1516
    %1571 = vmatpush.msra.mxu0 %v1515
    %1572 = vmatpush.msra.mxu0 %v1514
    %1573 = vmatpush.msra.mxu0 %v1513
    %1574 = vmatpush.msra.mxu0 %v1512
    %1575 = vmatpush.msra.mxu0 %v1511
    %1576 = vmatmul.f32.gmra.mxu0 %v1559
    %v1577 = vpop.f32.mrf.mxu0
    %v1578 = vadd.f32 0.0, %v1577
    %1579 = vdwg.mxu0
    %v1580 = vmul.f32 %v1578, 0.00390625
    %v1581 = vmax.f32 %v1580, 0.0
    %v1582 = vadd.f32 %v1581, 1e-05
    %v1583 = vrsqrt.pop %v1582
    %v1584 = vmul.f32 %v1583, %v1582
    %v1585 = vmul.f32 %v1584, %v1583
    %v1586 = vmul.f32 0.5, %v1585
    %v1587 = vsub.f32 1.5, %v1586
    %v1588 = vmul.f32 %v1583, %v1587
    %vm1589 = vweird.f32 %v1582
    %vm1590 = vweird.f32 %v1583
    %vm1591 = vmor %vm1589, %vm1590
    %v1592 = vsel %vm1591, %v1583, %v1588
    %v1593 = vld [vmem:[%s18] sm:$0x1]
    %v1594 = vmul.f32 %v1592, %v1593
    %v1595 = vperm.slane %v1594, 0
    %v1596 = vmul.f32 %v1549, %v1595
    %v1597 = vmul.f32 %v1550, %v1595
    %v1598 = vld [vmem:[%s19] sm:$0x1]
    %v1600 = vperm.slane %v1598, 0
    %v1602 = vadd.f32 %v1596, %v1600
    %v1603 = vadd.f32 %v1597, %v1600
    %v1604 = vmul.f32 %v1602, 0.2
    %v1605 = vmul.f32 %v1603, 0.2
    %v1606 = vmax.f32 %v1602, %v1604
    %v1607 = vmax.f32 %v1603, %v1605
    %1608 = vst [vmem:[#allocation5 + $0x1] sm:$0xff] %v1606
    %1609 = vst [vmem:[#allocation5 + $0x9] sm:$0xff] %v1607
    %v1610 = vld [vmem:[#allocation5] sm:$0xff]
    %v1611 = vld [vmem:[#allocation5 + $0x8] sm:$0xff]
    %v1612 = vpack.c.bf16 %v1611, %v1610
    %v1613 = vld [vmem:[#allocation8] sm:$0xf]
    %v1614 = vld [vmem:[#allocation8 + $0x4] sm:$0xf]
    %v1615 = vld [vmem:[#allocation8 + $0x8] sm:$0xf]
    %v1616 = vld [vmem:[#allocation8 + $0xc] sm:$0xf]
    %v1617 = vld [vmem:[#allocation8 + $0x10] sm:$0xf]
    %v1618 = vld [vmem:[#allocation8 + $0x14] sm:$0xf]
    %v1619 = vld [vmem:[#allocation8 + $0x18] sm:$0xf]
    %v1620 = vld [vmem:[#allocation8 + $0x1c] sm:$0xf]
    %v1621 = vld [vmem:[#allocation8 + $0x20] sm:$0xf]
    %v1622 = vld [vmem:[#allocation8 + $0x24] sm:$0xf]
    %v1623 = vld [vmem:[#allocation8 + $0x28] sm:$0xf]
    %v1624 = vld [vmem:[#allocation8 + $0x2c] sm:$0xf]
    %v1625 = vld [vmem:[#allocation8 + $0x30] sm:$0xf]
    %v1626 = vld [vmem:[#allocation8 + $0x34] sm:$0xf]
    %v1627 = vld [vmem:[#allocation8 + $0x38] sm:$0xf]
    %v1628 = vld [vmem:[#allocation8 + $0x3c] sm:$0xf]
    %v1629 = vld [vmem:[#allocation5 + $0x1] sm:$0xff]
    %v1630 = vld [vmem:[#allocation5 + $0x9] sm:$0xff]
    %v1631 = vpack.c.bf16 %v1630, %v1629
    %s1632 = scalar_lea.vmem [#allocation8], 64
    %v1633 = vld [vmem:[%s1632] sm:$0xf]
    %v1634 = vld [vmem:[%s1632 + $0x4] sm:$0xf]
    %v1635 = vld [vmem:[%s1632 + $0x8] sm:$0xf]
    %v1636 = vld [vmem:[%s1632 + $0xc] sm:$0xf]
    %v1637 = vld [vmem:[%s1632 + $0x10] sm:$0xf]
    %v1638 = vld [vmem:[%s1632 + $0x14] sm:$0xf]
    %v1639 = vld [vmem:[%s1632 + $0x18] sm:$0xf]
    %v1640 = vld [vmem:[%s1632 + $0x1c] sm:$0xf]
    %v1641 = vld [vmem:[%s1632 + $0x20] sm:$0xf]
    %v1642 = vld [vmem:[%s1632 + $0x24] sm:$0xf]
    %v1643 = vld [vmem:[%s1632 + $0x28] sm:$0xf]
    %v1644 = vld [vmem:[%s1632 + $0x2c] sm:$0xf]
    %v1645 = vld [vmem:[%s1632 + $0x30] sm:$0xf]
    %v1646 = vld [vmem:[%s1632 + $0x34] sm:$0xf]
    %v1647 = vld [vmem:[%s1632 + $0x38] sm:$0xf]
    %v1648 = vld [vmem:[%s1632 + $0x3c] sm:$0xf]
    %v1665 = vunpack.c.l.b16 %v1633
    %v1666 = vunpack.c.l.b16 %v1634
    %v1667 = vunpack.c.l.b16 %v1635
    %v1668 = vunpack.c.l.b16 %v1636
    %v1669 = vunpack.c.l.b16 %v1637
    %v1670 = vunpack.c.l.b16 %v1638
    %v1671 = vunpack.c.l.b16 %v1639
    %v1672 = vunpack.c.l.b16 %v1640
    %v1673 = vunpack.c.l.b16 %v1641
    %v1674 = vunpack.c.l.b16 %v1642
    %v1675 = vunpack.c.l.b16 %v1643
    %v1676 = vunpack.c.l.b16 %v1644
    %v1677 = vunpack.c.l.b16 %v1645
    %v1678 = vunpack.c.l.b16 %v1646
    %v1679 = vunpack.c.l.b16 %v1647
    %v1680 = vunpack.c.l.b16 %v1648
    %v1681 = vpack.c.b16 %v1666, %v1665
    %v1682 = vpack.c.b16 %v1668, %v1667
    %v1683 = vpack.c.b16 %v1670, %v1669
    %v1684 = vpack.c.b16 %v1672, %v1671
    %v1685 = vpack.c.b16 %v1674, %v1673
    %v1686 = vpack.c.b16 %v1676, %v1675
    %v1687 = vpack.c.b16 %v1678, %v1677
    %v1688 = vpack.c.b16 %v1680, %v1679
    %1697 = vmatpush.bf16.msra.mxu0 %v1688
    %1698 = vmatpush.bf16.msra.mxu0 %v1687
    %1699 = vmatpush.bf16.msra.mxu0 %v1686
    %1700 = vmatpush.bf16.msra.mxu0 %v1685
    %1701 = vmatpush.bf16.msra.mxu0 %v1684
    %1702 = vmatpush.bf16.msra.mxu0 %v1683
    %1703 = vmatpush.bf16.msra.mxu0 %v1682
    %1704 = vmatpush.bf16.msra.mxu0 %v1681
    %1705 = vmatmul.bf16.gmra.mxu0 %v1631
    %v1706 = vpop.f32.mrf.mxu0
    %v1707 = vadd.f32 0.0, %v1706
    %v1708 = vpop.f32.mrf.mxu0
    %v1709 = vadd.f32 0.0, %v1708
    %1710 = vdwg.mxu0
    %v1727 = vunpack.c.l.b16 %v1613
    %v1728 = vunpack.c.l.b16 %v1614
    %v1729 = vunpack.c.l.b16 %v1615
    %v1730 = vunpack.c.l.b16 %v1616
    %v1731 = vunpack.c.l.b16 %v1617
    %v1732 = vunpack.c.l.b16 %v1618
    %v1733 = vunpack.c.l.b16 %v1619
    %v1734 = vunpack.c.l.b16 %v1620
    %v1735 = vunpack.c.l.b16 %v1621
    %v1736 = vunpack.c.l.b16 %v1622
    %v1737 = vunpack.c.l.b16 %v1623
    %v1738 = vunpack.c.l.b16 %v1624
    %v1739 = vunpack.c.l.b16 %v1625
    %v1740 = vunpack.c.l.b16 %v1626
    %v1741 = vunpack.c.l.b16 %v1627
    %v1742 = vunpack.c.l.b16 %v1628
    %v1743 = vpack.c.b16 %v1728, %v1727
    %v1744 = vpack.c.b16 %v1730, %v1729
    %v1745 = vpack.c.b16 %v1732, %v1731
    %v1746 = vpack.c.b16 %v1734, %v1733
    %v1747 = vpack.c.b16 %v1736, %v1735
    %v1748 = vpack.c.b16 %v1738, %v1737
    %v1749 = vpack.c.b16 %v1740, %v1739
    %v1750 = vpack.c.b16 %v1742, %v1741
    %1759 = vmatpush.bf16.msra.mxu0 %v1750
    %1760 = vmatpush.bf16.msra.mxu0 %v1749
    %1761 = vmatpush.bf16.msra.mxu0 %v1748
    %1762 = vmatpush.bf16.msra.mxu0 %v1747
    %1763 = vmatpush.bf16.msra.mxu0 %v1746
    %1764 = vmatpush.bf16.msra.mxu0 %v1745
    %1765 = vmatpush.bf16.msra.mxu0 %v1744
    %1766 = vmatpush.bf16.msra.mxu0 %v1743
    %1767 = vmatmul.bf16.gmra.mxu0 %v1612
    %v1768 = vpop.f32.mrf.mxu0
    %v1769 = vadd.f32 %v1707, %v1768
    %v1770 = vpop.f32.mrf.mxu0
    %v1771 = vadd.f32 %v1709, %v1770
    %1772 = vdwg.mxu0
    %v1773 = vld [vmem:[#allocation5 + $0x2] sm:$0xff]
    %v1774 = vld [vmem:[#allocation5 + $0xa] sm:$0xff]
    %v1775 = vpack.c.bf16 %v1774, %v1773
    %s1776 = scalar_lea.vmem [#allocation8], 128
    %v1777 = vld [vmem:[%s1776] sm:$0xf]
    %v1778 = vld [vmem:[%s1776 + $0x4] sm:$0xf]
    %v1779 = vld [vmem:[%s1776 + $0x8] sm:$0xf]
    %v1780 = vld [vmem:[%s1776 + $0xc] sm:$0xf]
    %v1781 = vld [vmem:[%s1776 + $0x10] sm:$0xf]
    %v1782 = vld [vmem:[%s1776 + $0x14] sm:$0xf]
    %v1783 = vld [vmem:[%s1776 + $0x18] sm:$0xf]
    %v1784 = vld [vmem:[%s1776 + $0x1c] sm:$0xf]
    %v1785 = vld [vmem:[%s1776 + $0x20] sm:$0xf]
    %v1786 = vld [vmem:[%s1776 + $0x24] sm:$0xf]
    %v1787 = vld [vmem:[%s1776 + $0x28] sm:$0xf]
    %v1788 = vld [vmem:[%s1776 + $0x2c] sm:$0xf]
    %v1789 = vld [vmem:[%s1776 + $0x30] sm:$0xf]
    %v1790 = vld [vmem:[%s1776 + $0x34] sm:$0xf]
    %v1791 = vld [vmem:[%s1776 + $0x38] sm:$0xf]
    %v1792 = vld [vmem:[%s1776 + $0x3c] sm:$0xf]
    %v1809 = vunpack.c.l.b16 %v1777
    %v1810 = vunpack.c.l.b16 %v1778
    %v1811 = vunpack.c.l.b16 %v1779
    %v1812 = vunpack.c.l.b16 %v1780
    %v1813 = vunpack.c.l.b16 %v1781
    %v1814 = vunpack.c.l.b16 %v1782
    %v1815 = vunpack.c.l.b16 %v1783
    %v1816 = vunpack.c.l.b16 %v1784
    %v1817 = vunpack.c.l.b16 %v1785
    %v1818 = vunpack.c.l.b16 %v1786
    %v1819 = vunpack.c.l.b16 %v1787
    %v1820 = vunpack.c.l.b16 %v1788
    %v1821 = vunpack.c.l.b16 %v1789
    %v1822 = vunpack.c.l.b16 %v1790
    %v1823 = vunpack.c.l.b16 %v1791
    %v1824 = vunpack.c.l.b16 %v1792
    %v1825 = vpack.c.b16 %v1810, %v1809
    %v1826 = vpack.c.b16 %v1812, %v1811
    %v1827 = vpack.c.b16 %v1814, %v1813
    %v1828 = vpack.c.b16 %v1816, %v1815
    %v1829 = vpack.c.b16 %v1818, %v1817
    %v1830 = vpack.c.b16 %v1820, %v1819
    %v1831 = vpack.c.b16 %v1822, %v1821
    %v1832 = vpack.c.b16 %v1824, %v1823
    %1841 = vmatpush.bf16.msra.mxu0 %v1832
    %1842 = vmatpush.bf16.msra.mxu0 %v1831
    %1843 = vmatpush.bf16.msra.mxu0 %v1830
    %1844 = vmatpush.bf16.msra.mxu0 %v1829
    %1845 = vmatpush.bf16.msra.mxu0 %v1828
    %1846 = vmatpush.bf16.msra.mxu0 %v1827
    %1847 = vmatpush.bf16.msra.mxu0 %v1826
    %1848 = vmatpush.bf16.msra.mxu0 %v1825
    %1849 = vmatmul.bf16.gmra.mxu0 %v1775
    %v1850 = vpop.f32.mrf.mxu0
    %v1851 = vadd.f32 0.0, %v1850
    %v1852 = vpop.f32.mrf.mxu0
    %v1853 = vadd.f32 0.0, %v1852
    %1854 = vdwg.mxu0
    %v1855 = vadd.f32 %v1769, %v1851
    %v1856 = vadd.f32 %v1771, %v1853
    %v1857 = vld [vmem:[%s21] sm:$0x1]
    %v1859 = vperm.slane %v1857, 0
    %v1861 = vadd.f32 %v1855, %v1859
    %v1862 = vadd.f32 %v1856, %v1859
    %v1863 = vtanh.pop %v1861
    %v1864 = vtanh.pop %v1862
    %1865 = vst [vmem:[#allocation3 + $0x1] sm:$0xff] %v1863
    %1866 = vst [vmem:[#allocation3 + $0x9] sm:$0xff] %v1864
    %v1867 = vld [vmem:[#allocation2] sm:$0xff]
    %v1868 = vld [vmem:[#allocation2 + $0x8] sm:$0xff]
    %v1869 = vpack.c.bf16 %v1868, %v1867
    %v1870 = vld [vmem:[#allocation10] sm:$0xf]
    %v1871 = vld [vmem:[#allocation10 + $0x4] sm:$0xf]
    %v1872 = vld [vmem:[#allocation10 + $0x8] sm:$0xf]
    %v1873 = vld [vmem:[#allocation10 + $0xc] sm:$0xf]
    %v1874 = vld [vmem:[#allocation10 + $0x10] sm:$0xf]
    %v1875 = vld [vmem:[#allocation10 + $0x14] sm:$0xf]
    %v1876 = vld [vmem:[#allocation10 + $0x18] sm:$0xf]
    %v1877 = vld [vmem:[#allocation10 + $0x1c] sm:$0xf]
    %v1878 = vld [vmem:[#allocation10 + $0x20] sm:$0xf]
    %v1879 = vld [vmem:[#allocation10 + $0x24] sm:$0xf]
    %v1880 = vld [vmem:[#allocation10 + $0x28] sm:$0xf]
    %v1881 = vld [vmem:[#allocation10 + $0x2c] sm:$0xf]
    %v1882 = vld [vmem:[#allocation10 + $0x30] sm:$0xf]
    %v1883 = vld [vmem:[#allocation10 + $0x34] sm:$0xf]
    %v1884 = vld [vmem:[#allocation10 + $0x38] sm:$0xf]
    %v1885 = vld [vmem:[#allocation10 + $0x3c] sm:$0xf]
    %v1886 = vld [vmem:[#allocation3] sm:$0xff]
    %v1887 = vld [vmem:[#allocation3 + $0x8] sm:$0xff]
    %v1888 = vpack.c.bf16 %v1887, %v1886
    %s1889 = scalar_lea.vmem [#allocation10], 64
    %v1890 = vld [vmem:[%s1889] sm:$0xf]
    %v1891 = vld [vmem:[%s1889 + $0x4] sm:$0xf]
    %v1892 = vld [vmem:[%s1889 + $0x8] sm:$0xf]
    %v1893 = vld [vmem:[%s1889 + $0xc] sm:$0xf]
    %v1894 = vld [vmem:[%s1889 + $0x10] sm:$0xf]
    %v1895 = vld [vmem:[%s1889 + $0x14] sm:$0xf]
    %v1896 = vld [vmem:[%s1889 + $0x18] sm:$0xf]
    %v1897 = vld [vmem:[%s1889 + $0x1c] sm:$0xf]
    %v1898 = vld [vmem:[%s1889 + $0x20] sm:$0xf]
    %v1899 = vld [vmem:[%s1889 + $0x24] sm:$0xf]
    %v1900 = vld [vmem:[%s1889 + $0x28] sm:$0xf]
    %v1901 = vld [vmem:[%s1889 + $0x2c] sm:$0xf]
    %v1902 = vld [vmem:[%s1889 + $0x30] sm:$0xf]
    %v1903 = vld [vmem:[%s1889 + $0x34] sm:$0xf]
    %v1904 = vld [vmem:[%s1889 + $0x38] sm:$0xf]
    %v1905 = vld [vmem:[%s1889 + $0x3c] sm:$0xf]
    %v1922 = vunpack.c.l.b16 %v1890
    %v1923 = vunpack.c.l.b16 %v1891
    %v1924 = vunpack.c.l.b16 %v1892
    %v1925 = vunpack.c.l.b16 %v1893
    %v1926 = vunpack.c.l.b16 %v1894
    %v1927 = vunpack.c.l.b16 %v1895
    %v1928 = vunpack.c.l.b16 %v1896
    %v1929 = vunpack.c.l.b16 %v1897
    %v1930 = vunpack.c.l.b16 %v1898
    %v1931 = vunpack.c.l.b16 %v1899
    %v1932 = vunpack.c.l.b16 %v1900
    %v1933 = vunpack.c.l.b16 %v1901
    %v1934 = vunpack.c.l.b16 %v1902
    %v1935 = vunpack.c.l.b16 %v1903
    %v1936 = vunpack.c.l.b16 %v1904
    %v1937 = vunpack.c.l.b16 %v1905
    %v1938 = vpack.c.b16 %v1923, %v1922
    %v1939 = vpack.c.b16 %v1925, %v1924
    %v1940 = vpack.c.b16 %v1927, %v1926
    %v1941 = vpack.c.b16 %v1929, %v1928
    %v1942 = vpack.c.b16 %v1931, %v1930
    %v1943 = vpack.c.b16 %v1933, %v1932
    %v1944 = vpack.c.b16 %v1935, %v1934
    %v1945 = vpack.c.b16 %v1937, %v1936
    %1954 = vmatpush.bf16.msra.mxu0 %v1945
    %1955 = vmatpush.bf16.msra.mxu0 %v1944
    %1956 = vmatpush.bf16.msra.mxu0 %v1943
    %1957 = vmatpush.bf16.msra.mxu0 %v1942
    %1958 = vmatpush.bf16.msra.mxu0 %v1941
    %1959 = vmatpush.bf16.msra.mxu0 %v1940
    %1960 = vmatpush.bf16.msra.mxu0 %v1939
    %1961 = vmatpush.bf16.msra.mxu0 %v1938
    %1962 = vmatmul.bf16.gmra.mxu0 %v1888
    %v1963 = vpop.f32.mrf.mxu0
    %v1964 = vadd.f32 0.0, %v1963
    %v1965 = vpop.f32.mrf.mxu0
    %v1966 = vadd.f32 0.0, %v1965
    %1967 = vdwg.mxu0
    %v1984 = vunpack.c.l.b16 %v1870
    %v1985 = vunpack.c.l.b16 %v1871
    %v1986 = vunpack.c.l.b16 %v1872
    %v1987 = vunpack.c.l.b16 %v1873
    %v1988 = vunpack.c.l.b16 %v1874
    %v1989 = vunpack.c.l.b16 %v1875
    %v1990 = vunpack.c.l.b16 %v1876
    %v1991 = vunpack.c.l.b16 %v1877
    %v1992 = vunpack.c.l.b16 %v1878
    %v1993 = vunpack.c.l.b16 %v1879
    %v1994 = vunpack.c.l.b16 %v1880
    %v1995 = vunpack.c.l.b16 %v1881
    %v1996 = vunpack.c.l.b16 %v1882
    %v1997 = vunpack.c.l.b16 %v1883
    %v1998 = vunpack.c.l.b16 %v1884
    %v1999 = vunpack.c.l.b16 %v1885
    %v2000 = vpack.c.b16 %v1985, %v1984
    %v2001 = vpack.c.b16 %v1987, %v1986
    %v2002 = vpack.c.b16 %v1989, %v1988
    %v2003 = vpack.c.b16 %v1991, %v1990
    %v2004 = vpack.c.b16 %v1993, %v1992
    %v2005 = vpack.c.b16 %v1995, %v1994
    %v2006 = vpack.c.b16 %v1997, %v1996
    %v2007 = vpack.c.b16 %v1999, %v1998
    %2016 = vmatpush.bf16.msra.mxu0 %v2007
    %2017 = vmatpush.bf16.msra.mxu0 %v2006
    %2018 = vmatpush.bf16.msra.mxu0 %v2005
    %2019 = vmatpush.bf16.msra.mxu0 %v2004
    %2020 = vmatpush.bf16.msra.mxu0 %v2003
    %2021 = vmatpush.bf16.msra.mxu0 %v2002
    %2022 = vmatpush.bf16.msra.mxu0 %v2001
    %2023 = vmatpush.bf16.msra.mxu0 %v2000
    %2024 = vmatmul.bf16.gmra.mxu0 %v1869
    %v2025 = vpop.f32.mrf.mxu0
    %v2026 = vadd.f32 %v1964, %v2025
    %v2027 = vpop.f32.mrf.mxu0
    %v2028 = vadd.f32 %v1966, %v2027
    %2029 = vdwg.mxu0
    %v2030 = vld [vmem:[#allocation4] sm:$0xff]
    %v2031 = vld [vmem:[#allocation4 + $0x8] sm:$0xff]
    %v2032 = vpack.c.bf16 %v2031, %v2030
    %s2033 = scalar_lea.vmem [#allocation10], 128
    %v2034 = vld [vmem:[%s2033] sm:$0xf]
    %v2035 = vld [vmem:[%s2033 + $0x4] sm:$0xf]
    %v2036 = vld [vmem:[%s2033 + $0x8] sm:$0xf]
    %v2037 = vld [vmem:[%s2033 + $0xc] sm:$0xf]
    %v2038 = vld [vmem:[%s2033 + $0x10] sm:$0xf]
    %v2039 = vld [vmem:[%s2033 + $0x14] sm:$0xf]
    %v2040 = vld [vmem:[%s2033 + $0x18] sm:$0xf]
    %v2041 = vld [vmem:[%s2033 + $0x1c] sm:$0xf]
    %v2042 = vld [vmem:[%s2033 + $0x20] sm:$0xf]
    %v2043 = vld [vmem:[%s2033 + $0x24] sm:$0xf]
    %v2044 = vld [vmem:[%s2033 + $0x28] sm:$0xf]
    %v2045 = vld [vmem:[%s2033 + $0x2c] sm:$0xf]
    %v2046 = vld [vmem:[%s2033 + $0x30] sm:$0xf]
    %v2047 = vld [vmem:[%s2033 + $0x34] sm:$0xf]
    %v2048 = vld [vmem:[%s2033 + $0x38] sm:$0xf]
    %v2049 = vld [vmem:[%s2033 + $0x3c] sm:$0xf]
    %v2066 = vunpack.c.l.b16 %v2034
    %v2067 = vunpack.c.l.b16 %v2035
    %v2068 = vunpack.c.l.b16 %v2036
    %v2069 = vunpack.c.l.b16 %v2037
    %v2070 = vunpack.c.l.b16 %v2038
    %v2071 = vunpack.c.l.b16 %v2039
    %v2072 = vunpack.c.l.b16 %v2040
    %v2073 = vunpack.c.l.b16 %v2041
    %v2074 = vunpack.c.l.b16 %v2042
    %v2075 = vunpack.c.l.b16 %v2043
    %v2076 = vunpack.c.l.b16 %v2044
    %v2077 = vunpack.c.l.b16 %v2045
    %v2078 = vunpack.c.l.b16 %v2046
    %v2079 = vunpack.c.l.b16 %v2047
    %v2080 = vunpack.c.l.b16 %v2048
    %v2081 = vunpack.c.l.b16 %v2049
    %v2082 = vpack.c.b16 %v2067, %v2066
    %v2083 = vpack.c.b16 %v2069, %v2068
    %v2084 = vpack.c.b16 %v2071, %v2070
    %v2085 = vpack.c.b16 %v2073, %v2072
    %v2086 = vpack.c.b16 %v2075, %v2074
    %v2087 = vpack.c.b16 %v2077, %v2076
    %v2088 = vpack.c.b16 %v2079, %v2078
    %v2089 = vpack.c.b16 %v2081, %v2080
    %2098 = vmatpush.bf16.msra.mxu0 %v2089
    %2099 = vmatpush.bf16.msra.mxu0 %v2088
    %2100 = vmatpush.bf16.msra.mxu0 %v2087
    %2101 = vmatpush.bf16.msra.mxu0 %v2086
    %2102 = vmatpush.bf16.msra.mxu0 %v2085
    %2103 = vmatpush.bf16.msra.mxu0 %v2084
    %2104 = vmatpush.bf16.msra.mxu0 %v2083
    %2105 = vmatpush.bf16.msra.mxu0 %v2082
    %2106 = vmatmul.bf16.gmra.mxu0 %v2032
    %v2107 = vpop.f32.mrf.mxu0
    %v2108 = vadd.f32 0.0, %v2107
    %v2109 = vpop.f32.mrf.mxu0
    %v2110 = vadd.f32 0.0, %v2109
    %2111 = vdwg.mxu0
    %v2112 = vadd.f32 %v2026, %v2108
    %v2113 = vadd.f32 %v2028, %v2110
    %v2114 = vld [vmem:[#allocation2 + $0x1] sm:$0xff]
    %v2115 = vld [vmem:[#allocation2 + $0x9] sm:$0xff]
    %v2116 = vpack.c.bf16 %v2115, %v2114
    %s2117 = scalar_lea.vmem [#allocation10], 192
    %v2118 = vld [vmem:[%s2117] sm:$0xf]
    %v2119 = vld [vmem:[%s2117 + $0x4] sm:$0xf]
    %v2120 = vld [vmem:[%s2117 + $0x8] sm:$0xf]
    %v2121 = vld [vmem:[%s2117 + $0xc] sm:$0xf]
    %v2122 = vld [vmem:[%s2117 + $0x10] sm:$0xf]
    %v2123 = vld [vmem:[%s2117 + $0x14] sm:$0xf]
    %v2124 = vld [vmem:[%s2117 + $0x18] sm:$0xf]
    %v2125 = vld [vmem:[%s2117 + $0x1c] sm:$0xf]
    %v2126 = vld [vmem:[%s2117 + $0x20] sm:$0xf]
    %v2127 = vld [vmem:[%s2117 + $0x24] sm:$0xf]
    %v2128 = vld [vmem:[%s2117 + $0x28] sm:$0xf]
    %v2129 = vld [vmem:[%s2117 + $0x2c] sm:$0xf]
    %v2130 = vld [vmem:[%s2117 + $0x30] sm:$0xf]
    %v2131 = vld [vmem:[%s2117 + $0x34] sm:$0xf]
    %v2132 = vld [vmem:[%s2117 + $0x38] sm:$0xf]
    %v2133 = vld [vmem:[%s2117 + $0x3c] sm:$0xf]
    %v2150 = vunpack.c.l.b16 %v2118
    %v2151 = vunpack.c.l.b16 %v2119
    %v2152 = vunpack.c.l.b16 %v2120
    %v2153 = vunpack.c.l.b16 %v2121
    %v2154 = vunpack.c.l.b16 %v2122
    %v2155 = vunpack.c.l.b16 %v2123
    %v2156 = vunpack.c.l.b16 %v2124
    %v2157 = vunpack.c.l.b16 %v2125
    %v2158 = vunpack.c.l.b16 %v2126
    %v2159 = vunpack.c.l.b16 %v2127
    %v2160 = vunpack.c.l.b16 %v2128
    %v2161 = vunpack.c.l.b16 %v2129
    %v2162 = vunpack.c.l.b16 %v2130
    %v2163 = vunpack.c.l.b16 %v2131
    %v2164 = vunpack.c.l.b16 %v2132
    %v2165 = vunpack.c.l.b16 %v2133
    %v2166 = vpack.c.b16 %v2151, %v2150
    %v2167 = vpack.c.b16 %v2153, %v2152
    %v2168 = vpack.c.b16 %v2155, %v2154
    %v2169 = vpack.c.b16 %v2157, %v2156
    %v2170 = vpack.c.b16 %v2159, %v2158
    %v2171 = vpack.c.b16 %v2161, %v2160
    %v2172 = vpack.c.b16 %v2163, %v2162
    %v2173 = vpack.c.b16 %v2165, %v2164
    %2182 = vmatpush.bf16.msra.mxu0 %v2173
    %2183 = vmatpush.bf16.msra.mxu0 %v2172
    %2184 = vmatpush.bf16.msra.mxu0 %v2171
    %2185 = vmatpush.bf16.msra.mxu0 %v2170
    %2186 = vmatpush.bf16.msra.mxu0 %v2169
    %2187 = vmatpush.bf16.msra.mxu0 %v2168
    %2188 = vmatpush.bf16.msra.mxu0 %v2167
    %2189 = vmatpush.bf16.msra.mxu0 %v2166
    %2190 = vmatmul.bf16.gmra.mxu0 %v2116
    %v2191 = vpop.f32.mrf.mxu0
    %v2192 = vadd.f32 0.0, %v2191
    %v2193 = vpop.f32.mrf.mxu0
    %v2194 = vadd.f32 0.0, %v2193
    %2195 = vdwg.mxu0
    %v2196 = vadd.f32 %v2112, %v2192
    %v2197 = vadd.f32 %v2113, %v2194
    %v2198 = vld [vmem:[#allocation3 + $0x1] sm:$0xff]
    %v2199 = vld [vmem:[#allocation3 + $0x9] sm:$0xff]
    %v2200 = vpack.c.bf16 %v2199, %v2198
    %s2201 = scalar_lea.vmem [#allocation10], 256
    %v2202 = vld [vmem:[%s2201] sm:$0xf]
    %v2203 = vld [vmem:[%s2201 + $0x4] sm:$0xf]
    %v2204 = vld [vmem:[%s2201 + $0x8] sm:$0xf]
    %v2205 = vld [vmem:[%s2201 + $0xc] sm:$0xf]
    %v2206 = vld [vmem:[%s2201 + $0x10] sm:$0xf]
    %v2207 = vld [vmem:[%s2201 + $0x14] sm:$0xf]
    %v2208 = vld [vmem:[%s2201 + $0x18] sm:$0xf]
    %v2209 = vld [vmem:[%s2201 + $0x1c] sm:$0xf]
    %v2210 = vld [vmem:[%s2201 + $0x20] sm:$0xf]
    %v2211 = vld [vmem:[%s2201 + $0x24] sm:$0xf]
    %v2212 = vld [vmem:[%s2201 + $0x28] sm:$0xf]
    %v2213 = vld [vmem:[%s2201 + $0x2c] sm:$0xf]
    %v2214 = vld [vmem:[%s2201 + $0x30] sm:$0xf]
    %v2215 = vld [vmem:[%s2201 + $0x34] sm:$0xf]
    %v2216 = vld [vmem:[%s2201 + $0x38] sm:$0xf]
    %v2217 = vld [vmem:[%s2201 + $0x3c] sm:$0xf]
    %v2234 = vunpack.c.l.b16 %v2202
    %v2235 = vunpack.c.l.b16 %v2203
    %v2236 = vunpack.c.l.b16 %v2204
    %v2237 = vunpack.c.l.b16 %v2205
    %v2238 = vunpack.c.l.b16 %v2206
    %v2239 = vunpack.c.l.b16 %v2207
    %v2240 = vunpack.c.l.b16 %v2208
    %v2241 = vunpack.c.l.b16 %v2209
    %v2242 = vunpack.c.l.b16 %v2210
    %v2243 = vunpack.c.l.b16 %v2211
    %v2244 = vunpack.c.l.b16 %v2212
    %v2245 = vunpack.c.l.b16 %v2213
    %v2246 = vunpack.c.l.b16 %v2214
    %v2247 = vunpack.c.l.b16 %v2215
    %v2248 = vunpack.c.l.b16 %v2216
    %v2249 = vunpack.c.l.b16 %v2217
    %v2250 = vpack.c.b16 %v2235, %v2234
    %v2251 = vpack.c.b16 %v2237, %v2236
    %v2252 = vpack.c.b16 %v2239, %v2238
    %v2253 = vpack.c.b16 %v2241, %v2240
    %v2254 = vpack.c.b16 %v2243, %v2242
    %v2255 = vpack.c.b16 %v2245, %v2244
    %v2256 = vpack.c.b16 %v2247, %v2246
    %v2257 = vpack.c.b16 %v2249, %v2248
    %2266 = vmatpush.bf16.msra.mxu0 %v2257
    %2267 = vmatpush.bf16.msra.mxu0 %v2256
    %2268 = vmatpush.bf16.msra.mxu0 %v2255
    %2269 = vmatpush.bf16.msra.mxu0 %v2254
    %2270 = vmatpush.bf16.msra.mxu0 %v2253
    %2271 = vmatpush.bf16.msra.mxu0 %v2252
    %2272 = vmatpush.bf16.msra.mxu0 %v2251
    %2273 = vmatpush.bf16.msra.mxu0 %v2250
    %2274 = vmatmul.bf16.gmra.mxu0 %v2200
    %v2275 = vpop.f32.mrf.mxu0
    %v2276 = vadd.f32 0.0, %v2275
    %v2277 = vpop.f32.mrf.mxu0
    %v2278 = vadd.f32 0.0, %v2277
    %2279 = vdwg.mxu0
    %v2280 = vadd.f32 %v2196, %v2276
    %v2281 = vadd.f32 %v2197, %v2278
    %v2282 = vld [vmem:[#allocation4 + $0x1] sm:$0xff]
    %v2283 = vld [vmem:[#allocation4 + $0x9] sm:$0xff]
    %v2284 = vpack.c.bf16 %v2283, %v2282
    %s2285 = scalar_lea.vmem [#allocation10], 320
    %v2286 = vld [vmem:[%s2285] sm:$0xf]
    %v2287 = vld [vmem:[%s2285 + $0x4] sm:$0xf]
    %v2288 = vld [vmem:[%s2285 + $0x8] sm:$0xf]
    %v2289 = vld [vmem:[%s2285 + $0xc] sm:$0xf]
    %v2290 = vld [vmem:[%s2285 + $0x10] sm:$0xf]
    %v2291 = vld [vmem:[%s2285 + $0x14] sm:$0xf]
    %v2292 = vld [vmem:[%s2285 + $0x18] sm:$0xf]
    %v2293 = vld [vmem:[%s2285 + $0x1c] sm:$0xf]
    %v2294 = vld [vmem:[%s2285 + $0x20] sm:$0xf]
    %v2295 = vld [vmem:[%s2285 + $0x24] sm:$0xf]
    %v2296 = vld [vmem:[%s2285 + $0x28] sm:$0xf]
    %v2297 = vld [vmem:[%s2285 + $0x2c] sm:$0xf]
    %v2298 = vld [vmem:[%s2285 + $0x30] sm:$0xf]
    %v2299 = vld [vmem:[%s2285 + $0x34] sm:$0xf]
    %v2300 = vld [vmem:[%s2285 + $0x38] sm:$0xf]
    %v2301 = vld [vmem:[%s2285 + $0x3c] sm:$0xf]
    %v2318 = vunpack.c.l.b16 %v2286
    %v2319 = vunpack.c.l.b16 %v2287
    %v2320 = vunpack.c.l.b16 %v2288
    %v2321 = vunpack.c.l.b16 %v2289
    %v2322 = vunpack.c.l.b16 %v2290
    %v2323 = vunpack.c.l.b16 %v2291
    %v2324 = vunpack.c.l.b16 %v2292
    %v2325 = vunpack.c.l.b16 %v2293
    %v2326 = vunpack.c.l.b16 %v2294
    %v2327 = vunpack.c.l.b16 %v2295
    %v2328 = vunpack.c.l.b16 %v2296
    %v2329 = vunpack.c.l.b16 %v2297
    %v2330 = vunpack.c.l.b16 %v2298
    %v2331 = vunpack.c.l.b16 %v2299
    %v2332 = vunpack.c.l.b16 %v2300
    %v2333 = vunpack.c.l.b16 %v2301
    %v2334 = vpack.c.b16 %v2319, %v2318
    %v2335 = vpack.c.b16 %v2321, %v2320
    %v2336 = vpack.c.b16 %v2323, %v2322
    %v2337 = vpack.c.b16 %v2325, %v2324
    %v2338 = vpack.c.b16 %v2327, %v2326
    %v2339 = vpack.c.b16 %v2329, %v2328
    %v2340 = vpack.c.b16 %v2331, %v2330
    %v2341 = vpack.c.b16 %v2333, %v2332
    %2350 = vmatpush.bf16.msra.mxu0 %v2341
    %2351 = vmatpush.bf16.msra.mxu0 %v2340
    %2352 = vmatpush.bf16.msra.mxu0 %v2339
    %2353 = vmatpush.bf16.msra.mxu0 %v2338
    %2354 = vmatpush.bf16.msra.mxu0 %v2337
    %2355 = vmatpush.bf16.msra.mxu0 %v2336
    %2356 = vmatpush.bf16.msra.mxu0 %v2335
    %2357 = vmatpush.bf16.msra.mxu0 %v2334
    %2358 = vmatmul.bf16.gmra.mxu0 %v2284
    %v2359 = vpop.f32.mrf.mxu0
    %v2360 = vadd.f32 0.0, %v2359
    %v2361 = vpop.f32.mrf.mxu0
    %v2362 = vadd.f32 0.0, %v2361
    %2363 = vdwg.mxu0
    %v2364 = vadd.f32 %v2280, %v2360
    %v2365 = vadd.f32 %v2281, %v2362
    %v2366 = vld [vmem:[#allocation2 + $0x2] sm:$0xff]
    %v2367 = vld [vmem:[#allocation2 + $0xa] sm:$0xff]
    %v2368 = vpack.c.bf16 %v2367, %v2366
    %s2369 = scalar_lea.vmem [#allocation10], 384
    %v2370 = vld [vmem:[%s2369] sm:$0xf]
    %v2371 = vld [vmem:[%s2369 + $0x4] sm:$0xf]
    %v2372 = vld [vmem:[%s2369 + $0x8] sm:$0xf]
    %v2373 = vld [vmem:[%s2369 + $0xc] sm:$0xf]
    %v2374 = vld [vmem:[%s2369 + $0x10] sm:$0xf]
    %v2375 = vld [vmem:[%s2369 + $0x14] sm:$0xf]
    %v2376 = vld [vmem:[%s2369 + $0x18] sm:$0xf]
    %v2377 = vld [vmem:[%s2369 + $0x1c] sm:$0xf]
    %v2378 = vld [vmem:[%s2369 + $0x20] sm:$0xf]
    %v2379 = vld [vmem:[%s2369 + $0x24] sm:$0xf]
    %v2380 = vld [vmem:[%s2369 + $0x28] sm:$0xf]
    %v2381 = vld [vmem:[%s2369 + $0x2c] sm:$0xf]
    %v2382 = vld [vmem:[%s2369 + $0x30] sm:$0xf]
    %v2383 = vld [vmem:[%s2369 + $0x34] sm:$0xf]
    %v2384 = vld [vmem:[%s2369 + $0x38] sm:$0xf]
    %v2385 = vld [vmem:[%s2369 + $0x3c] sm:$0xf]
    %v2402 = vunpack.c.l.b16 %v2370
    %v2403 = vunpack.c.l.b16 %v2371
    %v2404 = vunpack.c.l.b16 %v2372
    %v2405 = vunpack.c.l.b16 %v2373
    %v2406 = vunpack.c.l.b16 %v2374
    %v2407 = vunpack.c.l.b16 %v2375
    %v2408 = vunpack.c.l.b16 %v2376
    %v2409 = vunpack.c.l.b16 %v2377
    %v2410 = vunpack.c.l.b16 %v2378
    %v2411 = vunpack.c.l.b16 %v2379
    %v2412 = vunpack.c.l.b16 %v2380
    %v2413 = vunpack.c.l.b16 %v2381
    %v2414 = vunpack.c.l.b16 %v2382
    %v2415 = vunpack.c.l.b16 %v2383
    %v2416 = vunpack.c.l.b16 %v2384
    %v2417 = vunpack.c.l.b16 %v2385
    %v2418 = vpack.c.b16 %v2403, %v2402
    %v2419 = vpack.c.b16 %v2405, %v2404
    %v2420 = vpack.c.b16 %v2407, %v2406
    %v2421 = vpack.c.b16 %v2409, %v2408
    %v2422 = vpack.c.b16 %v2411, %v2410
    %v2423 = vpack.c.b16 %v2413, %v2412
    %v2424 = vpack.c.b16 %v2415, %v2414
    %v2425 = vpack.c.b16 %v2417, %v2416
    %2434 = vmatpush.bf16.msra.mxu0 %v2425
    %2435 = vmatpush.bf16.msra.mxu0 %v2424
    %2436 = vmatpush.bf16.msra.mxu0 %v2423
    %2437 = vmatpush.bf16.msra.mxu0 %v2422
    %2438 = vmatpush.bf16.msra.mxu0 %v2421
    %2439 = vmatpush.bf16.msra.mxu0 %v2420
    %2440 = vmatpush.bf16.msra.mxu0 %v2419
    %2441 = vmatpush.bf16.msra.mxu0 %v2418
    %2442 = vmatmul.bf16.gmra.mxu0 %v2368
    %v2443 = vpop.f32.mrf.mxu0
    %v2444 = vadd.f32 0.0, %v2443
    %v2445 = vpop.f32.mrf.mxu0
    %v2446 = vadd.f32 0.0, %v2445
    %2447 = vdwg.mxu0
    %v2448 = vadd.f32 %v2364, %v2444
    %v2449 = vadd.f32 %v2365, %v2446
    %v2450 = vld [vmem:[#allocation3 + $0x2] sm:$0xff]
    %v2451 = vld [vmem:[#allocation3 + $0xa] sm:$0xff]
    %v2452 = vpack.c.bf16 %v2451, %v2450
    %s2453 = scalar_lea.vmem [#allocation10], 448
    %v2454 = vld [vmem:[%s2453] sm:$0xf]
    %v2455 = vld [vmem:[%s2453 + $0x4] sm:$0xf]
    %v2456 = vld [vmem:[%s2453 + $0x8] sm:$0xf]
    %v2457 = vld [vmem:[%s2453 + $0xc] sm:$0xf]
    %v2458 = vld [vmem:[%s2453 + $0x10] sm:$0xf]
    %v2459 = vld [vmem:[%s2453 + $0x14] sm:$0xf]
    %v2460 = vld [vmem:[%s2453 + $0x18] sm:$0xf]
    %v2461 = vld [vmem:[%s2453 + $0x1c] sm:$0xf]
    %v2462 = vld [vmem:[%s2453 + $0x20] sm:$0xf]
    %v2463 = vld [vmem:[%s2453 + $0x24] sm:$0xf]
    %v2464 = vld [vmem:[%s2453 + $0x28] sm:$0xf]
    %v2465 = vld [vmem:[%s2453 + $0x2c] sm:$0xf]
    %v2466 = vld [vmem:[%s2453 + $0x30] sm:$0xf]
    %v2467 = vld [vmem:[%s2453 + $0x34] sm:$0xf]
    %v2468 = vld [vmem:[%s2453 + $0x38] sm:$0xf]
    %v2469 = vld [vmem:[%s2453 + $0x3c] sm:$0xf]
    %v2486 = vunpack.c.l.b16 %v2454
    %v2487 = vunpack.c.l.b16 %v2455
    %v2488 = vunpack.c.l.b16 %v2456
    %v2489 = vunpack.c.l.b16 %v2457
    %v2490 = vunpack.c.l.b16 %v2458
    %v2491 = vunpack.c.l.b16 %v2459
    %v2492 = vunpack.c.l.b16 %v2460
    %v2493 = vunpack.c.l.b16 %v2461
    %v2494 = vunpack.c.l.b16 %v2462
    %v2495 = vunpack.c.l.b16 %v2463
    %v2496 = vunpack.c.l.b16 %v2464
    %v2497 = vunpack.c.l.b16 %v2465
    %v2498 = vunpack.c.l.b16 %v2466
    %v2499 = vunpack.c.l.b16 %v2467
    %v2500 = vunpack.c.l.b16 %v2468
    %v2501 = vunpack.c.l.b16 %v2469
    %v2502 = vpack.c.b16 %v2487, %v2486
    %v2503 = vpack.c.b16 %v2489, %v2488
    %v2504 = vpack.c.b16 %v2491, %v2490
    %v2505 = vpack.c.b16 %v2493, %v2492
    %v2506 = vpack.c.b16 %v2495, %v2494
    %v2507 = vpack.c.b16 %v2497, %v2496
    %v2508 = vpack.c.b16 %v2499, %v2498
    %v2509 = vpack.c.b16 %v2501, %v2500
    %2518 = vmatpush.bf16.msra.mxu0 %v2509
    %2519 = vmatpush.bf16.msra.mxu0 %v2508
    %2520 = vmatpush.bf16.msra.mxu0 %v2507
    %2521 = vmatpush.bf16.msra.mxu0 %v2506
    %2522 = vmatpush.bf16.msra.mxu0 %v2505
    %2523 = vmatpush.bf16.msra.mxu0 %v2504
    %2524 = vmatpush.bf16.msra.mxu0 %v2503
    %2525 = vmatpush.bf16.msra.mxu0 %v2502
    %2526 = vmatmul.bf16.gmra.mxu0 %v2452
    %v2527 = vpop.f32.mrf.mxu0
    %v2528 = vadd.f32 0.0, %v2527
    %v2529 = vpop.f32.mrf.mxu0
    %v2530 = vadd.f32 0.0, %v2529
    %2531 = vdwg.mxu0
    %v2532 = vadd.f32 %v2448, %v2528
    %v2533 = vadd.f32 %v2449, %v2530
    %v2534 = vld [vmem:[#allocation4 + $0x2] sm:$0xff]
    %v2535 = vld [vmem:[#allocation4 + $0xa] sm:$0xff]
    %v2536 = vpack.c.bf16 %v2535, %v2534
    %s2537 = scalar_lea.vmem [#allocation10], 512
    %v2538 = vld [vmem:[%s2537] sm:$0xf]
    %v2539 = vld [vmem:[%s2537 + $0x4] sm:$0xf]
    %v2540 = vld [vmem:[%s2537 + $0x8] sm:$0xf]
    %v2541 = vld [vmem:[%s2537 + $0xc] sm:$0xf]
    %v2542 = vld [vmem:[%s2537 + $0x10] sm:$0xf]
    %v2543 = vld [vmem:[%s2537 + $0x14] sm:$0xf]
    %v2544 = vld [vmem:[%s2537 + $0x18] sm:$0xf]
    %v2545 = vld [vmem:[%s2537 + $0x1c] sm:$0xf]
    %v2546 = vld [vmem:[%s2537 + $0x20] sm:$0xf]
    %v2547 = vld [vmem:[%s2537 + $0x24] sm:$0xf]
    %v2548 = vld [vmem:[%s2537 + $0x28] sm:$0xf]
    %v2549 = vld [vmem:[%s2537 + $0x2c] sm:$0xf]
    %v2550 = vld [vmem:[%s2537 + $0x30] sm:$0xf]
    %v2551 = vld [vmem:[%s2537 + $0x34] sm:$0xf]
    %v2552 = vld [vmem:[%s2537 + $0x38] sm:$0xf]
    %v2553 = vld [vmem:[%s2537 + $0x3c] sm:$0xf]
    %v2570 = vunpack.c.l.b16 %v2538
    %v2571 = vunpack.c.l.b16 %v2539
    %v2572 = vunpack.c.l.b16 %v2540
    %v2573 = vunpack.c.l.b16 %v2541
    %v2574 = vunpack.c.l.b16 %v2542
    %v2575 = vunpack.c.l.b16 %v2543
    %v2576 = vunpack.c.l.b16 %v2544
    %v2577 = vunpack.c.l.b16 %v2545
    %v2578 = vunpack.c.l.b16 %v2546
    %v2579 = vunpack.c.l.b16 %v2547
    %v2580 = vunpack.c.l.b16 %v2548
    %v2581 = vunpack.c.l.b16 %v2549
    %v2582 = vunpack.c.l.b16 %v2550
    %v2583 = vunpack.c.l.b16 %v2551
    %v2584 = vunpack.c.l.b16 %v2552
    %v2585 = vunpack.c.l.b16 %v2553
    %v2586 = vpack.c.b16 %v2571, %v2570
    %v2587 = vpack.c.b16 %v2573, %v2572
    %v2588 = vpack.c.b16 %v2575, %v2574
    %v2589 = vpack.c.b16 %v2577, %v2576
    %v2590 = vpack.c.b16 %v2579, %v2578
    %v2591 = vpack.c.b16 %v2581, %v2580
    %v2592 = vpack.c.b16 %v2583, %v2582
    %v2593 = vpack.c.b16 %v2585, %v2584
    %2602 = vmatpush.bf16.msra.mxu0 %v2593
    %2603 = vmatpush.bf16.msra.mxu0 %v2592
    %2604 = vmatpush.bf16.msra.mxu0 %v2591
    %2605 = vmatpush.bf16.msra.mxu0 %v2590
    %2606 = vmatpush.bf16.msra.mxu0 %v2589
    %2607 = vmatpush.bf16.msra.mxu0 %v2588
    %2608 = vmatpush.bf16.msra.mxu0 %v2587
    %2609 = vmatpush.bf16.msra.mxu0 %v2586
    %2610 = vmatmul.bf16.gmra.mxu0 %v2536
    %v2611 = vpop.f32.mrf.mxu0
    %v2612 = vadd.f32 0.0, %v2611
    %v2613 = vpop.f32.mrf.mxu0
    %v2614 = vadd.f32 0.0, %v2613
    %2615 = vdwg.mxu0
    %v2616 = vadd.f32 %v2532, %v2612
    %v2617 = vadd.f32 %v2533, %v2614
    %v2618 = vld [vmem:[%s23] sm:$0x1]
    %v2620 = vperm.slane %v2618, 0
    %v2622 = vadd.f32 %v2616, %v2620
    %v2623 = vadd.f32 %v2617, %v2620
    %v2624 = vadd.f32 %v2622, %v2623
    %v2625 = vrot.slane %v2624, 4
    %v2626 = vadd.f32 %v2624, %v2625
    %v2627 = vrot.slane %v2626, 2
    %v2628 = vadd.f32 %v2626, %v2627
    %v2629 = vrot.slane %v2628, 1
    %v2630 = vadd.f32 %v2628, %v2629
    %v2631 = vld [vmem:[#allocation6] sm:$0xff]
    %v2632 = vld [vmem:[#allocation6 + $0x8] sm:$0xff]
    %v2633 = vld [vmem:[#allocation6 + $0x10] sm:$0xff]
    %v2634 = vld [vmem:[#allocation6 + $0x18] sm:$0xff]
    %v2635 = vld [vmem:[#allocation6 + $0x20] sm:$0xff]
    %v2636 = vld [vmem:[#allocation6 + $0x28] sm:$0xff]
    %v2637 = vld [vmem:[#allocation6 + $0x30] sm:$0xff]
    %v2638 = vld [vmem:[#allocation6 + $0x38] sm:$0xff]
    %v2639 = vld [vmem:[#allocation6 + $0x40] sm:$0xff]
    %v2640 = vld [vmem:[#allocation6 + $0x48] sm:$0xff]
    %v2641 = vld [vmem:[#allocation6 + $0x50] sm:$0xff]
    %v2642 = vld [vmem:[#allocation6 + $0x58] sm:$0xff]
    %v2643 = vld [vmem:[#allocation6 + $0x60] sm:$0xff]
    %v2644 = vld [vmem:[#allocation6 + $0x68] sm:$0xff]
    %v2645 = vld [vmem:[#allocation6 + $0x70] sm:$0xff]
    %v2646 = vld [vmem:[#allocation6 + $0x78] sm:$0xff]
    %2647 = vmatpush.msra.mxu0 %v2646
    %2648 = vmatpush.msra.mxu0 %v2645
    %2649 = vmatpush.msra.mxu0 %v2644
    %2650 = vmatpush.msra.mxu0 %v2643
    %2651 = vmatpush.msra.mxu0 %v2642
    %2652 = vmatpush.msra.mxu0 %v2641
    %2653 = vmatpush.msra.mxu0 %v2640
    %2654 = vmatpush.msra.mxu0 %v2639
    %2655 = vmatpush.msra.mxu0 %v2638
    %2656 = vmatpush.msra.mxu0 %v2637
    %2657 = vmatpush.msra.mxu0 %v2636
    %2658 = vmatpush.msra.mxu0 %v2635
    %2659 = vmatpush.msra.mxu0 %v2634
    %2660 = vmatpush.msra.mxu0 %v2633
    %2661 = vmatpush.msra.mxu0 %v2632
    %2662 = vmatpush.msra.mxu0 %v2631
    %2663 = vmatmul.f32.gmra.mxu0 %v2630
    %v2664 = vpop.f32.mrf.mxu0
    %v2665 = vadd.f32 0.0, %v2664
    %2666 = vdwg.mxu0
    %v2667 = vmul.f32 %v2665, 0.00390625
    %v2668 = vperm.slane %v2667, 0
    %v2669 = vsub.f32 %v2622, %v2668
    %v2670 = vsub.f32 %v2623, %v2668
    %v2671 = vmul.f32 %v2669, %v2669
    %v2672 = vmul.f32 %v2670, %v2670
    %v2673 = vadd.f32 %v2671, %v2672
    %v2674 = vrot.slane %v2673, 4
    %v2675 = vadd.f32 %v2673, %v2674
    %v2676 = vrot.slane %v2675, 2
    %v2677 = vadd.f32 %v2675, %v2676
    %v2678 = vrot.slane %v2677, 1
    %v2679 = vadd.f32 %v2677, %v2678
    %2680 = vmatpush.msra.mxu0 %v2646
    %2681 = vmatpush.msra.mxu0 %v2645
    %2682 = vmatpush.msra.mxu0 %v2644
    %2683 = vmatpush.msra.mxu0 %v2643
    %2684 = vmatpush.msra.mxu0 %v2642
    %2685 = vmatpush.msra.mxu0 %v2641
    %2686 = vmatpush.msra.mxu0 %v2640
    %2687 = vmatpush.msra.mxu0 %v2639
    %2688 = vmatpush.msra.mxu0 %v2638
    %2689 = vmatpush.msra.mxu0 %v2637
    %2690 = vmatpush.msra.mxu0 %v2636
    %2691 = vmatpush.msra.mxu0 %v2635
    %2692 = vmatpush.msra.mxu0 %v2634
    %2693 = vmatpush.msra.mxu0 %v2633
    %2694 = vmatpush.msra.mxu0 %v2632
    %2695 = vmatpush.msra.mxu0 %v2631
    %2696 = vmatmul.f32.gmra.mxu0 %v2679
    %v2697 = vpop.f32.mrf.mxu0
    %v2698 = vadd.f32 0.0, %v2697
    %2699 = vdwg.mxu0
    %v2700 = vmul.f32 %v2698, 0.00390625
    %v2701 = vmax.f32 %v2700, 0.0
    %v2702 = vadd.f32 %v2701, 1e-05
    %v2703 = vrsqrt.pop %v2702
    %v2704 = vmul.f32 %v2703, %v2702
    %v2705 = vmul.f32 %v2704, %v2703
    %v2706 = vmul.f32 0.5, %v2705
    %v2707 = vsub.f32 1.5, %v2706
    %v2708 = vmul.f32 %v2703, %v2707
    %vm2709 = vweird.f32 %v2702
    %vm2710 = vweird.f32 %v2703
    %vm2711 = vmor %vm2709, %vm2710
    %v2712 = vsel %vm2711, %v2703, %v2708
    %v2713 = vld [vmem:[%s24] sm:$0x1]
    %v2714 = vmul.f32 %v2712, %v2713
    %v2715 = vperm.slane %v2714, 0
    %v2716 = vmul.f32 %v2669, %v2715
    %v2717 = vmul.f32 %v2670, %v2715
    %v2718 = vld [vmem:[%s25] sm:$0x1]
    %v2720 = vperm.slane %v2718, 0
    %v2722 = vadd.f32 %v2716, %v2720
    %v2723 = vadd.f32 %v2717, %v2720
    %v2724 = vmul.f32 %v2722, 0.2
    %v2725 = vmul.f32 %v2723, 0.2
    %v2726 = vmax.f32 %v2722, %v2724
    %v2727 = vmax.f32 %v2723, %v2725
    %2728 = vst [vmem:[#allocation5 + $0x1] sm:$0xff] %v2726
    %2729 = vst [vmem:[#allocation5 + $0x9] sm:$0xff] %v2727
    %v2730 = vld [vmem:[#allocation5] sm:$0xff]
    %v2731 = vld [vmem:[#allocation5 + $0x8] sm:$0xff]
    %v2732 = vpack.c.bf16 %v2731, %v2730
    %v2733 = vld [vmem:[#allocation11] sm:$0xf]
    %v2734 = vld [vmem:[#allocation11 + $0x4] sm:$0xf]
    %v2735 = vld [vmem:[#allocation11 + $0x8] sm:$0xf]
    %v2736 = vld [vmem:[#allocation11 + $0xc] sm:$0xf]
    %v2737 = vld [vmem:[#allocation11 + $0x10] sm:$0xf]
    %v2738 = vld [vmem:[#allocation11 + $0x14] sm:$0xf]
    %v2739 = vld [vmem:[#allocation11 + $0x18] sm:$0xf]
    %v2740 = vld [vmem:[#allocation11 + $0x1c] sm:$0xf]
    %v2741 = vld [vmem:[#allocation11 + $0x20] sm:$0xf]
    %v2742 = vld [vmem:[#allocation11 + $0x24] sm:$0xf]
    %v2743 = vld [vmem:[#allocation11 + $0x28] sm:$0xf]
    %v2744 = vld [vmem:[#allocation11 + $0x2c] sm:$0xf]
    %v2745 = vld [vmem:[#allocation11 + $0x30] sm:$0xf]
    %v2746 = vld [vmem:[#allocation11 + $0x34] sm:$0xf]
    %v2747 = vld [vmem:[#allocation11 + $0x38] sm:$0xf]
    %v2748 = vld [vmem:[#allocation11 + $0x3c] sm:$0xf]
    %v2749 = vld [vmem:[#allocation5 + $0x1] sm:$0xff]
    %v2750 = vld [vmem:[#allocation5 + $0x9] sm:$0xff]
    %v2751 = vpack.c.bf16 %v2750, %v2749
    %s2752 = scalar_lea.vmem [#allocation11], 64
    %v2753 = vld [vmem:[%s2752] sm:$0xf]
    %v2754 = vld [vmem:[%s2752 + $0x4] sm:$0xf]
    %v2755 = vld [vmem:[%s2752 + $0x8] sm:$0xf]
    %v2756 = vld [vmem:[%s2752 + $0xc] sm:$0xf]
    %v2757 = vld [vmem:[%s2752 + $0x10] sm:$0xf]
    %v2758 = vld [vmem:[%s2752 + $0x14] sm:$0xf]
    %v2759 = vld [vmem:[%s2752 + $0x18] sm:$0xf]
    %v2760 = vld [vmem:[%s2752 + $0x1c] sm:$0xf]
    %v2761 = vld [vmem:[%s2752 + $0x20] sm:$0xf]
    %v2762 = vld [vmem:[%s2752 + $0x24] sm:$0xf]
    %v2763 = vld [vmem:[%s2752 + $0x28] sm:$0xf]
    %v2764 = vld [vmem:[%s2752 + $0x2c] sm:$0xf]
    %v2765 = vld [vmem:[%s2752 + $0x30] sm:$0xf]
    %v2766 = vld [vmem:[%s2752 + $0x34] sm:$0xf]
    %v2767 = vld [vmem:[%s2752 + $0x38] sm:$0xf]
    %v2768 = vld [vmem:[%s2752 + $0x3c] sm:$0xf]
    %v2785 = vunpack.c.l.b16 %v2753
    %v2786 = vunpack.c.l.b16 %v2754
    %v2787 = vunpack.c.l.b16 %v2755
    %v2788 = vunpack.c.l.b16 %v2756
    %v2789 = vunpack.c.l.b16 %v2757
    %v2790 = vunpack.c.l.b16 %v2758
    %v2791 = vunpack.c.l.b16 %v2759
    %v2792 = vunpack.c.l.b16 %v2760
    %v2793 = vunpack.c.l.b16 %v2761
    %v2794 = vunpack.c.l.b16 %v2762
    %v2795 = vunpack.c.l.b16 %v2763
    %v2796 = vunpack.c.l.b16 %v2764
    %v2797 = vunpack.c.l.b16 %v2765
    %v2798 = vunpack.c.l.b16 %v2766
    %v2799 = vunpack.c.l.b16 %v2767
    %v2800 = vunpack.c.l.b16 %v2768
    %v2801 = vpack.c.b16 %v2786, %v2785
    %v2802 = vpack.c.b16 %v2788, %v2787
    %v2803 = vpack.c.b16 %v2790, %v2789
    %v2804 = vpack.c.b16 %v2792, %v2791
    %v2805 = vpack.c.b16 %v2794, %v2793
    %v2806 = vpack.c.b16 %v2796, %v2795
    %v2807 = vpack.c.b16 %v2798, %v2797
    %v2808 = vpack.c.b16 %v2800, %v2799
    %2817 = vmatpush.bf16.msra.mxu0 %v2808
    %2818 = vmatpush.bf16.msra.mxu0 %v2807
    %2819 = vmatpush.bf16.msra.mxu0 %v2806
    %2820 = vmatpush.bf16.msra.mxu0 %v2805
    %2821 = vmatpush.bf16.msra.mxu0 %v2804
    %2822 = vmatpush.bf16.msra.mxu0 %v2803
    %2823 = vmatpush.bf16.msra.mxu0 %v2802
    %2824 = vmatpush.bf16.msra.mxu0 %v2801
    %2825 = vmatmul.bf16.gmra.mxu0 %v2751
    %v2826 = vpop.f32.mrf.mxu0
    %v2827 = vadd.f32 0.0, %v2826
    %v2828 = vpop.f32.mrf.mxu0
    %v2829 = vadd.f32 0.0, %v2828
    %2830 = vdwg.mxu0
    %v2847 = vunpack.c.l.b16 %v2733
    %v2848 = vunpack.c.l.b16 %v2734
    %v2849 = vunpack.c.l.b16 %v2735
    %v2850 = vunpack.c.l.b16 %v2736
    %v2851 = vunpack.c.l.b16 %v2737
    %v2852 = vunpack.c.l.b16 %v2738
    %v2853 = vunpack.c.l.b16 %v2739
    %v2854 = vunpack.c.l.b16 %v2740
    %v2855 = vunpack.c.l.b16 %v2741
    %v2856 = vunpack.c.l.b16 %v2742
    %v2857 = vunpack.c.l.b16 %v2743
    %v2858 = vunpack.c.l.b16 %v2744
    %v2859 = vunpack.c.l.b16 %v2745
    %v2860 = vunpack.c.l.b16 %v2746
    %v2861 = vunpack.c.l.b16 %v2747
    %v2862 = vunpack.c.l.b16 %v2748
    %v2863 = vpack.c.b16 %v2848, %v2847
    %v2864 = vpack.c.b16 %v2850, %v2849
    %v2865 = vpack.c.b16 %v2852, %v2851
    %v2866 = vpack.c.b16 %v2854, %v2853
    %v2867 = vpack.c.b16 %v2856, %v2855
    %v2868 = vpack.c.b16 %v2858, %v2857
    %v2869 = vpack.c.b16 %v2860, %v2859
    %v2870 = vpack.c.b16 %v2862, %v2861
    %2879 = vmatpush.bf16.msra.mxu0 %v2870
    %2880 = vmatpush.bf16.msra.mxu0 %v2869
    %2881 = vmatpush.bf16.msra.mxu0 %v2868
    %2882 = vmatpush.bf16.msra.mxu0 %v2867
    %2883 = vmatpush.bf16.msra.mxu0 %v2866
    %2884 = vmatpush.bf16.msra.mxu0 %v2865
    %2885 = vmatpush.bf16.msra.mxu0 %v2864
    %2886 = vmatpush.bf16.msra.mxu0 %v2863
    %2887 = vmatmul.bf16.gmra.mxu0 %v2732
    %v2888 = vpop.f32.mrf.mxu0
    %v2889 = vadd.f32 %v2827, %v2888
    %v2890 = vpop.f32.mrf.mxu0
    %v2891 = vadd.f32 %v2829, %v2890
    %2892 = vdwg.mxu0
    %v2893 = vld [vmem:[#allocation5 + $0x2] sm:$0xff]
    %v2894 = vld [vmem:[#allocation5 + $0xa] sm:$0xff]
    %v2895 = vpack.c.bf16 %v2894, %v2893
    %s2896 = scalar_lea.vmem [#allocation11], 128
    %v2897 = vld [vmem:[%s2896] sm:$0xf]
    %v2898 = vld [vmem:[%s2896 + $0x4] sm:$0xf]
    %v2899 = vld [vmem:[%s2896 + $0x8] sm:$0xf]
    %v2900 = vld [vmem:[%s2896 + $0xc] sm:$0xf]
    %v2901 = vld [vmem:[%s2896 + $0x10] sm:$0xf]
    %v2902 = vld [vmem:[%s2896 + $0x14] sm:$0xf]
    %v2903 = vld [vmem:[%s2896 + $0x18] sm:$0xf]
    %v2904 = vld [vmem:[%s2896 + $0x1c] sm:$0xf]
    %v2905 = vld [vmem:[%s2896 + $0x20] sm:$0xf]
    %v2906 = vld [vmem:[%s2896 + $0x24] sm:$0xf]
    %v2907 = vld [vmem:[%s2896 + $0x28] sm:$0xf]
    %v2908 = vld [vmem:[%s2896 + $0x2c] sm:$0xf]
    %v2909 = vld [vmem:[%s2896 + $0x30] sm:$0xf]
    %v2910 = vld [vmem:[%s2896 + $0x34] sm:$0xf]
    %v2911 = vld [vmem:[%s2896 + $0x38] sm:$0xf]
    %v2912 = vld [vmem:[%s2896 + $0x3c] sm:$0xf]
    %v2929 = vunpack.c.l.b16 %v2897
    %v2930 = vunpack.c.l.b16 %v2898
    %v2931 = vunpack.c.l.b16 %v2899
    %v2932 = vunpack.c.l.b16 %v2900
    %v2933 = vunpack.c.l.b16 %v2901
    %v2934 = vunpack.c.l.b16 %v2902
    %v2935 = vunpack.c.l.b16 %v2903
    %v2936 = vunpack.c.l.b16 %v2904
    %v2937 = vunpack.c.l.b16 %v2905
    %v2938 = vunpack.c.l.b16 %v2906
    %v2939 = vunpack.c.l.b16 %v2907
    %v2940 = vunpack.c.l.b16 %v2908
    %v2941 = vunpack.c.l.b16 %v2909
    %v2942 = vunpack.c.l.b16 %v2910
    %v2943 = vunpack.c.l.b16 %v2911
    %v2944 = vunpack.c.l.b16 %v2912
    %v2945 = vpack.c.b16 %v2930, %v2929
    %v2946 = vpack.c.b16 %v2932, %v2931
    %v2947 = vpack.c.b16 %v2934, %v2933
    %v2948 = vpack.c.b16 %v2936, %v2935
    %v2949 = vpack.c.b16 %v2938, %v2937
    %v2950 = vpack.c.b16 %v2940, %v2939
    %v2951 = vpack.c.b16 %v2942, %v2941
    %v2952 = vpack.c.b16 %v2944, %v2943
    %2961 = vmatpush.bf16.msra.mxu0 %v2952
    %2962 = vmatpush.bf16.msra.mxu0 %v2951
    %2963 = vmatpush.bf16.msra.mxu0 %v2950
    %2964 = vmatpush.bf16.msra.mxu0 %v2949
    %2965 = vmatpush.bf16.msra.mxu0 %v2948
    %2966 = vmatpush.bf16.msra.mxu0 %v2947
    %2967 = vmatpush.bf16.msra.mxu0 %v2946
    %2968 = vmatpush.bf16.msra.mxu0 %v2945
    %2969 = vmatmul.bf16.gmra.mxu0 %v2895
    %v2970 = vpop.f32.mrf.mxu0
    %v2971 = vadd.f32 0.0, %v2970
    %v2972 = vpop.f32.mrf.mxu0
    %v2973 = vadd.f32 0.0, %v2972
    %2974 = vdwg.mxu0
    %v2975 = vadd.f32 %v2889, %v2971
    %v2976 = vadd.f32 %v2891, %v2973
    %v2977 = vld [vmem:[%s27] sm:$0x1]
    %v2979 = vperm.slane %v2977, 0
    %v2981 = vadd.f32 %v2975, %v2979
    %v2982 = vadd.f32 %v2976, %v2979
    %v2983 = vxor.u32 %v2981, 2147483648
    %v2984 = vxor.u32 %v2982, 2147483648
    %v2985 = vmul.f32 %v2983, 1.442695
    %v2986 = vpow.pop %v2985
    %v2987 = vmul.f32 %v2984, 1.442695
    %v2988 = vpow.pop %v2987
    %v2989 = vadd.f32 %v2986, 1.0
    %v2990 = vadd.f32 %v2988, 1.0
    %v2991 = vrcp.pop %v2989
    %v2992 = vmul.f32 %v2989, %v2991
    %v2993 = vsub.f32 1.0, %v2992
    %v2994 = vmul.f32 %v2991, %v2993
    %v2995 = vadd.f32 %v2991, %v2994
    %vm2996 = vweird.f32 %v2989
    %vm2997 = vweird.f32 %v2991
    %vm2998 = vmor %vm2996, %vm2997
    %v2999 = vsel %vm2998, %v2991, %v2995
    %v3000 = vand.u32 2147483647, %v2989
    %vm3001 = vcmp.eq.f32.partialorder %v3000, 8.507059e+37
    %v3002 = vand.u32 %v2989, 2147483648
    %v3003 = vor.u32 1.1754944e-38, %v3002
    %v3004 = vsel %vm3001, %v3003, %v2999
    %v3005 = vmul.f32 1.0, %v3004
    %v3006 = vrcp.pop %v2990
    %v3007 = vmul.f32 %v2990, %v3006
    %v3008 = vsub.f32 1.0, %v3007
    %v3009 = vmul.f32 %v3006, %v3008
    %v3010 = vadd.f32 %v3006, %v3009
    %vm3011 = vweird.f32 %v2990
    %vm3012 = vweird.f32 %v3006
    %vm3013 = vmor %vm3011, %vm3012
    %v3014 = vsel %vm3013, %v3006, %v3010
    %v3015 = vand.u32 2147483647, %v2990
    %vm3016 = vcmp.eq.f32.partialorder %v3015, 8.507059e+37
    %v3017 = vand.u32 %v2990, 2147483648
    %v3018 = vor.u32 1.1754944e-38, %v3017
    %v3019 = vsel %vm3016, %v3018, %v3014
    %v3020 = vmul.f32 1.0, %v3019
    %v3021 = vmul.f32 %v3005, %v168
    %v3022 = vmul.f32 %v3020, %v169
    %v3023 = vsub.f32 1.0, %v3005
    %v3024 = vsub.f32 1.0, %v3020
    %v3025 = vmul.f32 %v3023, %v1863
    %v3026 = vmul.f32 %v3024, %v1864
    %v3027 = vadd.f32 %v3021, %v3025
    %v3028 = vadd.f32 %v3022, %v3026
    %3029 = vst [vmem:[%s28] sm:$0xff] %v3027
    %3030 = vst [vmem:[%s28 + $0x8] sm:$0xff] %v3028
    // Predicated region
    $region130: #{forward.1} parent=1 // pred_check
      _
    $region131: #{forward.1} parent=1 // pred_check_branch
      %3032 = sbr.rel (0) target = $region133
    $region132: #{forward.1} parent=1 // pred_region
      _
    $region133: #{forward.1} parent=1 // pred_fallthru
      _
    // Predicated region
    $region134: #{forward.1} parent=1 // pred_check
      _
    $region135: #{forward.1} parent=1 // pred_check_branch
      %3034 = sbr.rel (0) target = $region137
    $region136: #{forward.1} parent=1 // pred_region
      _
    $region137: #{forward.1} parent=1 // pred_fallthru
      _
    %3035 = vsyncpa [#allocation7], 1
    %3036 = vsyncpa [#allocation9], 1
    %3037 = vsyncpa [#allocation12], 1

</llo_original>
